<compile_context>
chip_gen: v5e
topology: v5e:2x2
jax: 0.10.0
libtpu: 0.0.40
codegen_flags: <defaults>
</compile_context>

<pallas_src>
import functools
import math

import jax
import jax.numpy as jnp
from jax import lax
from jax.experimental import pallas as pl
from jax.experimental.pallas import tpu as pltpu


def _pick_kv_tile(n, cap=256):
    """Largest 128-aligned divisor of n that is <= cap, else n (single tile).

    128-aligned tiles keep the dynamic lane/sublane slices of the K/V scratch
    aligned (pure address arithmetic); a single tile keeps everything static
    for small n.  cap=256 sizes the MXU tiles for v6e/v7x; 128 is already fine
    on v5e.
    """
    t = cap - (cap % 128)
    while t >= 128:
        if n % t == 0:
            return t
        t -= 128
    return n


def _sp_attention_kernel(x_ref, wqkv_ref, bqkv_ref, wp_ref, bp_ref, o_ref,
                         k_sc, v_sc, *, num_heads, scale, kv_tile,
                         compute_dtype):
    """Attention for one batch element, channel-major activations.

    x_ref : (C, N)    input tokens, channel-major (x^T)
    wqkv  : (3C, C)   fused QKV weight, PyTorch (out, in) layout
    bqkv  : (3C, 1)   fused QKV bias (zeros if the module has none)
    wp    : (C, C)    output-projection weight
    bp    : (C, 1)    output-projection bias
    o_ref : (C, N)    channel-major output
    k_sc  : (H, D, N) VMEM scratch, keys   (head-major, D-major)
    v_sc  : (H, N, D) VMEM scratch, values (head-major, token-major)
    """
    H = num_heads
    C, N = x_ref.shape
    D = C // H
    cdt = compute_dtype
    f32 = jnp.float32
    approx = jnp.dtype(cdt) != jnp.dtype(f32)

    x = x_ref[...].astype(cdt)                                     # (C, N)
    wqkv = wqkv_ref[...].astype(cdt)                               # (3C, C)
    wp = wp_ref[...].astype(cdt)                                   # (C, C)
    bqkv = bqkv_ref[...].astype(f32)                               # (3C, 1)
    bp = bp_ref[...].astype(f32)                                   # (C, 1)

    # ---- fused QKV projection: one wide MXU matmul, contraction depth C ----
    qkv = jnp.dot(wqkv, x, preferred_element_type=f32) + bqkv      # (3C, N) f32
    qkv = qkv.reshape(3, H, D, N)        # row-axis split only; lane axis untouched

    # Fold the softmax scale into q once (C*N mults, not H*N*N).
    q = jnp.swapaxes(qkv[0] * scale, 1, 2).astype(cdt)             # (H, N, D)
    k = qkv[1].astype(cdt)                                         # (H, D, N)
    # V token-major so the PV matmul contracts p's lane axis against v's
    # sublane axis (no relayout of the probability tile).
    v = jnp.swapaxes(qkv[2], 1, 2).astype(cdt)                     # (H, N, D)

    num_kv = N // kv_tile

    def kv_block(k_blk, v_blk, carry):
        m_p, l_p, a_p = carry
        # scores: contraction depth D; lane of q vs sublane of k (MXU friendly)
        s = jnp.einsum('hnd,hdm->hnm', q, k_blk,
                       preferred_element_type=f32)                 # (H, N, kt) f32
        m_n = jnp.maximum(m_p, jnp.max(s, axis=-1, keepdims=True))
        alpha = jnp.exp(m_p - m_n)
        p = jnp.exp(s - m_n)                                       # f32 (EUP)
        l_n = alpha * l_p + jnp.sum(p, axis=-1, keepdims=True)
        a_n = alpha * a_p + jnp.einsum('hnm,hmd->hnd', p.astype(cdt), v_blk,
                                       preferred_element_type=f32)
        return m_n, l_n, a_n

    init = (jnp.full((H, N, 1), -jnp.inf, f32),
            jnp.zeros((H, N, 1), f32),
            jnp.zeros((H, N, D), f32))

    if num_kv == 1:
        # Small N: a single fully-static KV tile (no dynamic slicing, no loop).
        _, l_fin, acc = kv_block(k, v, init)
    else:
        # Flash-style online softmax over 128-aligned KV tiles.
        k_sc[...] = k
        v_sc[...] = v

        def kv_step(t, carry):
            start = pl.multiple_of(t * kv_tile, kv_tile)
            k_blk = k_sc[:, :, pl.ds(start, kv_tile)]              # (H, D, kt)
            v_blk = v_sc[:, pl.ds(start, kv_tile), :]              # (H, kt, D)
            return kv_block(k_blk, v_blk, carry)

        _, l_fin, acc = lax.fori_loop(0, num_kv, kv_step, init,
                                      unroll=(num_kv <= 4))

    # ---- normalize with the small (H, N, 1) denominator (EUP reciprocal) ----
    o = acc * pl.reciprocal(l_fin, approx=approx)                  # (H, N, D) f32

    # ---- output projection (+ bias); heads merge back on the row axis ----
    attn_t = jnp.swapaxes(o, 1, 2).reshape(C, N).astype(cdt)       # (C, N)
    out = jnp.dot(wp, attn_t, preferred_element_type=f32) + bp     # (C, N) f32
    o_ref[...] = out.astype(o_ref.dtype)


def sp_attention(x, qkv_weight, proj_weight, proj_bias, *, num_heads,
                 qkv_bias=None, qk_scale=None, compute_dtype=jnp.bfloat16,
                 kv_tile=None):
    """Forward pass of SPAttention.

    x            : (B, N, C) float32
    qkv_weight   : (3C, C)  PyTorch nn.Linear layout (out_features, in_features)
    proj_weight  : (C, C)
    proj_bias    : (C,)
    qkv_bias     : optional (3C,)  (module default qkv_bias=False -> None)
    compute_dtype: dtype of MXU operands (bf16 fast path on v6e/v7x); softmax,
                   accumulation and the output stay float32.
    kv_tile      : optional KV tile size for the flash loop (must divide N).
    """
    B, N, C = x.shape
    assert C % num_heads == 0, "C must be divisible by num_heads"
    H = num_heads
    D = C // H
    scale = float(qk_scale) if qk_scale is not None else D ** -0.5
    kv_tile = int(kv_tile) if kv_tile is not None else _pick_kv_tile(N)
    assert N % kv_tile == 0, "kv_tile must divide N"

    # Channel-major activations; weights stay in PyTorch layout so the kernel
    # multiplies them on the left with no in-kernel weight transposes.
    xt = jnp.swapaxes(x, 1, 2).astype(compute_dtype)               # (B, C, N)
    wqkv = qkv_weight.astype(compute_dtype)                        # (3C, C)
    wp = proj_weight.astype(compute_dtype)                         # (C, C)
    bqkv = (jnp.zeros((3 * C,), jnp.float32) if qkv_bias is None
            else qkv_bias.astype(jnp.float32)).reshape(3 * C, 1)
    bp = proj_bias.astype(jnp.float32).reshape(C, 1)

    # ---- VMEM budget: working-set estimate, capped at physical VMEM ----
    it = jnp.dtype(compute_dtype).itemsize
    ot = jnp.dtype(x.dtype).itemsize
    w_bytes = (3 * C * C + C * C) * it + (3 * C + C) * 4
    act_bytes = 2 * C * N * (it + ot)              # double-buffered in/out blocks
    tmp_bytes = (3 * C * N * (4 + it)              # qkv f32 + q,k,v in MXU dtype
                 + 2 * C * N * it                  # K/V scratch
                 + H * N * kv_tile * (4 + it)      # score tile f32 + p tile
                 + H * N * (D + 2) * 4             # acc, running max, running sum
                 + 2 * C * N * 4)                  # head outputs + projection f32
    try:
        phys_vmem = int(pltpu.get_tpu_info().vmem_capacity_bytes)
    except Exception:
        phys_vmem = 64 * 1024 * 1024               # conservative (v7x per-core)
    vmem_cap = max(int(phys_vmem * 0.85), 32 * 1024 * 1024)
    vmem_limit = int(min(max(2 * (2 * w_bytes + act_bytes + tmp_bytes),
                             32 * 1024 * 1024), vmem_cap))

    kernel = functools.partial(_sp_attention_kernel, num_heads=H, scale=scale,
                               kv_tile=kv_tile, compute_dtype=compute_dtype)
    x_block = (pl.Squeezed(), C, N)                # kernel sees (C, N)

    def build(single_buffer_weights):
        def w_spec(shape):
            # Grid-invariant operands: double-buffering buys nothing, so ask
            # for a single buffer (frees VMEM for activations).
            if single_buffer_weights:
                return pl.BlockSpec(shape, lambda i: (0, 0),
                                    pipeline_mode=pl.Buffered(1))
            return pl.BlockSpec(shape, lambda i: (0, 0))

        return pl.pallas_call(
            kernel,
            out_shape=jax.ShapeDtypeStruct((B, C, N), x.dtype),
            grid_spec=pltpu.PrefetchScalarGridSpec(
                num_scalar_prefetch=0,
                grid=(B,),
                in_specs=[
                    pl.BlockSpec(x_block, lambda i: (i, 0, 0)),    # x^T block
                    w_spec((3 * C, C)),                            # fused QKV weight
                    w_spec((3 * C, 1)),                            # fused QKV bias
                    w_spec((C, C)),                                # proj weight
                    w_spec((C, 1)),                                # proj bias
                ],
                out_specs=pl.BlockSpec(x_block, lambda i: (i, 0, 0)),
                scratch_shapes=[
                    pltpu.VMEM((H, D, N), compute_dtype),          # K scratch
                    pltpu.VMEM((H, N, D), compute_dtype),          # V scratch
                ]),
            compiler_params=pltpu.CompilerParams(
                dimension_semantics=("parallel",),   # batch axis -> megacore / 2 TCs
                vmem_limit_bytes=vmem_limit),
        )

    try:
        out_t = build(True)(xt, wqkv, bqkv, wp, bp)
    except Exception:
        # Older Pallas builds may reject pipeline_mode=pl.Buffered(1) for
        # pipelined inputs; fall back to default (double-buffered) windows.
        out_t = build(False)(xt, wqkv, bqkv, wp, bp)

    return jnp.swapaxes(out_t, 1, 2)               # back to (B, N, C)


def _reference(x, qkv_weight, proj_weight, proj_bias, num_heads, qkv_bias=None):
    B, N, C = x.shape
    D = C // num_heads
    scale = D ** (-0.5)
    qkv = x @ qkv_weight.T
    if qkv_bias is not None:
        qkv = qkv + qkv_bias
    qkv = qkv.reshape(B, N, 3, num_heads, D).transpose(2, 0, 3, 1, 4)
    q, k, v = qkv[0], qkv[1], qkv[2]                               # (B, H, N, D)
    attn = (q @ jnp.swapaxes(k, -2, -1)) * scale
    attn = jax.nn.softmax(attn, axis=-1)
    out = (attn @ v).transpose(0, 2, 1, 3).reshape(B, N, C)
    return out @ proj_weight.T + proj_bias


if __name__ == "__main__":
    # Small shapes consistent with the module: B=2, N=8 tokens, C=32 dim, 8 heads.
    B, N, C, H = 2, 8, 32, 8
    key = jax.random.PRNGKey(0)
    kx, kqkv, kp, kb = jax.random.split(key, 4)

    x = jax.random.normal(kx, (B, N, C), dtype=jnp.float32)
    # Deterministic parameter init (qkv_bias=False as in the module default).
    qkv_weight = jax.random.normal(kqkv, (3 * C, C), dtype=jnp.float32) * 0.02
    proj_weight = jax.random.normal(kp, (C, C), dtype=jnp.float32) * 0.02
    proj_bias = jax.random.normal(kb, (C,), dtype=jnp.float32) * 0.02

    ref = _reference(x, qkv_weight, proj_weight, proj_bias, H)

    # bf16-MXU fast path (default): grid=(B,), parallel across cores.
    out_bf16 = jax.block_until_ready(
        sp_attention(x, qkv_weight, proj_weight, proj_bias, num_heads=H))
    assert out_bf16.shape == (B, N, C)
    assert jnp.allclose(out_bf16, ref, atol=2e-2, rtol=2e-2), \
        "bf16 path mismatch vs reference"

    # Pure-f32 path, tight tolerance.
    out_f32 = jax.block_until_ready(
        sp_attention(x, qkv_weight, proj_weight, proj_bias, num_heads=H,
                     compute_dtype=jnp.float32))
    assert out_f32.shape == (B, N, C)
    assert jnp.allclose(out_f32, ref, atol=2e-4, rtol=2e-4), \
        "f32 path mismatch vs reference"

    # Larger-N check that exercises the K-tiled online-softmax (flash) loop
    # with two 128-wide KV tiles, in f32 for a tight numerical comparison.
    B2, N2, C2 = 2, 256, 64
    kx2, kqkv2, kp2, kb2 = jax.random.split(jax.random.PRNGKey(1), 4)
    x2 = jax.random.normal(kx2, (B2, N2, C2), dtype=jnp.float32)
    qkv_w2 = jax.random.normal(kqkv2, (3 * C2, C2), dtype=jnp.float32) * 0.02
    proj_w2 = jax.random.normal(kp2, (C2, C2), dtype=jnp.float32) * 0.02
    proj_b2 = jax.random.normal(kb2, (C2,), dtype=jnp.float32) * 0.02
    ref2 = _reference(x2, qkv_w2, proj_w2, proj_b2, H)
    out2 = jax.block_until_ready(
        sp_attention(x2, qkv_w2, proj_w2, proj_b2, num_heads=H,
                     compute_dtype=jnp.float32, kv_tile=128))
    assert out2.shape == (B2, N2, C2)
    assert jnp.allclose(out2, ref2, atol=5e-4, rtol=5e-4), \
        "flash-loop path mismatch vs reference"

    print("KERNEL_OK")
</pallas_src>

<mosaic_0001>
module attributes {stable_mosaic.version = 11 : i64} {
  func.func @_sp_attention_kernel(%arg0: i32, %arg1: memref<1x32x8xbf16, #tpu.memory_space<vmem>>, %arg2: memref<96x32xbf16, #tpu.memory_space<vmem>>, %arg3: memref<96x1xf32, #tpu.memory_space<vmem>>, %arg4: memref<32x32xbf16, #tpu.memory_space<vmem>>, %arg5: memref<32x1xf32, #tpu.memory_space<vmem>>, %arg6: memref<1x32x8xf32, #tpu.memory_space<vmem>>, %arg7: memref<8x4x8xbf16, #tpu.memory_space<vmem>>, %arg8: memref<8x8x4xbf16, #tpu.memory_space<vmem>>) attributes {dimension_semantics = [#tpu.dimension_semantics<parallel>], iteration_bounds = array<i64: 2>, scalar_prefetch = 0 : i64, scratch_operands = 2 : i64, tpu.core_type = #tpu.core_type<tc>, window_params = [{transform_indices = @transform_0, window_bounds = array<i64: 1, 32, 8>}, {pipeline_mode = #tpu.pipeline_mode<synchronous>, transform_indices = @transform_1, window_bounds = array<i64: 96, 32>}, {pipeline_mode = #tpu.pipeline_mode<synchronous>, transform_indices = @transform_2, window_bounds = array<i64: 96, 1>}, {pipeline_mode = #tpu.pipeline_mode<synchronous>, transform_indices = @transform_3, window_bounds = array<i64: 32, 32>}, {pipeline_mode = #tpu.pipeline_mode<synchronous>, transform_indices = @transform_4, window_bounds = array<i64: 32, 1>}, {transform_indices = @transform_5, window_bounds = array<i64: 1, 32, 8>}]} {
    %c0 = arith.constant 0 : index
    %c0_0 = arith.constant 0 : index
    %c0_1 = arith.constant 0 : index
    %0 = vector.load %arg1[%c0, %c0_0, %c0_1] : memref<1x32x8xbf16, #tpu.memory_space<vmem>>, vector<1x32x8xbf16>
    %1 = vector.shape_cast %0 : vector<1x32x8xbf16> to vector<32x8xbf16>
    %c0_2 = arith.constant 0 : index
    %c0_3 = arith.constant 0 : index
    %2 = vector.load %arg2[%c0_2, %c0_3] : memref<96x32xbf16, #tpu.memory_space<vmem>>, vector<96x32xbf16>
    %c0_4 = arith.constant 0 : index
    %c0_5 = arith.constant 0 : index
    %3 = vector.load %arg4[%c0_4, %c0_5] : memref<32x32xbf16, #tpu.memory_space<vmem>>, vector<32x32xbf16>
    %c0_6 = arith.constant 0 : index
    %c0_7 = arith.constant 0 : index
    %4 = vector.load %arg3[%c0_6, %c0_7] : memref<96x1xf32, #tpu.memory_space<vmem>>, vector<96x1xf32>
    %c0_8 = arith.constant 0 : index
    %c0_9 = arith.constant 0 : index
    %5 = vector.load %arg5[%c0_8, %c0_9] : memref<32x1xf32, #tpu.memory_space<vmem>>, vector<32x1xf32>
    %cst = arith.constant dense<0.000000e+00> : vector<96x8xf32>
    %6 = tpu.matmul %2, %1, %cst {dimension_numbers = #tpu.dot_dimension_numbers<[1], [0], [0], [1], [0, 0, 1, 1], [], []>} : vector<96x32xbf16>, vector<32x8xbf16>, vector<96x8xf32> -> vector<96x8xf32>
    %7 = vector.broadcast %4 : vector<96x1xf32> to vector<96x8xf32>
    %8 = arith.addf %6, %7 : vector<96x8xf32>
    %9 = vector.shape_cast %8 : vector<96x8xf32> to vector<3x8x4x8xf32>
    %10 = vector.extract_strided_slice %9 {offsets = [0, 0, 0, 0], sizes = [1, 8, 4, 8], strides = [1, 1, 1, 1]} : vector<3x8x4x8xf32> to vector<1x8x4x8xf32>
    %11 = vector.shape_cast %10 : vector<1x8x4x8xf32> to vector<8x4x8xf32>
    %cst_10 = arith.constant 5.000000e-01 : f32
    %12 = vector.broadcast %cst_10 : f32 to vector<8x4x8xf32>
    %13 = arith.mulf %11, %12 : vector<8x4x8xf32>
    %14 = tpu.transpose %13, [0, 2, 1] : vector<8x4x8xf32> -> vector<8x8x4xf32>
    %15 = arith.truncf %14 : vector<8x8x4xf32> to vector<8x8x4xbf16>
    %16 = vector.extract_strided_slice %9 {offsets = [1, 0, 0, 0], sizes = [1, 8, 4, 8], strides = [1, 1, 1, 1]} : vector<3x8x4x8xf32> to vector<1x8x4x8xf32>
    %17 = vector.shape_cast %16 : vector<1x8x4x8xf32> to vector<8x4x8xf32>
    %18 = arith.truncf %17 : vector<8x4x8xf32> to vector<8x4x8xbf16>
    %19 = vector.extract_strided_slice %9 {offsets = [2, 0, 0, 0], sizes = [1, 8, 4, 8], strides = [1, 1, 1, 1]} : vector<3x8x4x8xf32> to vector<1x8x4x8xf32>
    %20 = vector.shape_cast %19 : vector<1x8x4x8xf32> to vector<8x4x8xf32>
    %21 = tpu.transpose %20, [0, 2, 1] : vector<8x4x8xf32> -> vector<8x8x4xf32>
    %22 = arith.truncf %21 : vector<8x8x4xf32> to vector<8x8x4xbf16>
    %cst_11 = arith.constant 0xFF800000 : f32
    %23 = vector.broadcast %cst_11 : f32 to vector<8x8x1xf32>
    %cst_12 = arith.constant 0.000000e+00 : f32
    %24 = vector.broadcast %cst_12 : f32 to vector<8x8x1xf32>
    %cst_13 = arith.constant 0.000000e+00 : f32
    %25 = vector.broadcast %cst_13 : f32 to vector<8x8x4xf32>
    "tpu.trace_start"() <{level = 10 : i32, message = "hnd,hdm->hnm"}> : () -> ()
    %cst_14 = arith.constant dense<0.000000e+00> : vector<8x8x8xf32>
    %26 = tpu.matmul %15, %18, %cst_14 {dimension_numbers = #tpu.dot_dimension_numbers<[2], [1], [1], [2], [0, 0, 0, 1, 1, 2], [0], [0]>} : vector<8x8x4xbf16>, vector<8x4x8xbf16>, vector<8x8x8xf32> -> vector<8x8x8xf32>
    "tpu.trace_stop"() : () -> ()
    %cst_15 = arith.constant dense<0xFF800000> : vector<8x8xf32>
    %27 = vector.multi_reduction <maximumf>, %26, %cst_15 [2] : vector<8x8x8xf32> to vector<8x8xf32>
    %28 = vector.shape_cast %27 : vector<8x8xf32> to vector<8x8x1xf32>
    %29 = arith.maximumf %23, %28 : vector<8x8x1xf32>
    %30 = arith.subf %23, %29 : vector<8x8x1xf32>
    %31 = math.exp %30 : vector<8x8x1xf32>
    %32 = vector.broadcast %29 : vector<8x8x1xf32> to vector<8x8x8xf32>
    %33 = arith.subf %26, %32 : vector<8x8x8xf32>
    %34 = math.exp %33 : vector<8x8x8xf32>
    %35 = arith.mulf %31, %24 : vector<8x8x1xf32>
    %cst_16 = arith.constant dense<0.000000e+00> : vector<8x8xf32>
    %36 = vector.multi_reduction <add>, %34, %cst_16 [2] : vector<8x8x8xf32> to vector<8x8xf32>
    %37 = vector.shape_cast %36 : vector<8x8xf32> to vector<8x8x1xf32>
    %38 = arith.addf %35, %37 : vector<8x8x1xf32>
    %39 = vector.broadcast %31 : vector<8x8x1xf32> to vector<8x8x4xf32>
    %40 = arith.mulf %39, %25 : vector<8x8x4xf32>
    %41 = arith.truncf %34 : vector<8x8x8xf32> to vector<8x8x8xbf16>
    "tpu.trace_start"() <{level = 10 : i32, message = "hnm,hmd->hnd"}> : () -> ()
    %cst_17 = arith.constant dense<0.000000e+00> : vector<8x8x4xf32>
    %42 = tpu.matmul %41, %22, %cst_17 {dimension_numbers = #tpu.dot_dimension_numbers<[2], [1], [1], [2], [0, 0, 0, 1, 1, 2], [0], [0]>} : vector<8x8x8xbf16>, vector<8x8x4xbf16>, vector<8x8x4xf32> -> vector<8x8x4xf32>
    "tpu.trace_stop"() : () -> ()
    %43 = arith.addf %40, %42 : vector<8x8x4xf32>
    %44 = tpu.reciprocal %38 {approx = true} : vector<8x8x1xf32> -> vector<8x8x1xf32>
    %45 = vector.broadcast %44 : vector<8x8x1xf32> to vector<8x8x4xf32>
    %46 = arith.mulf %43, %45 : vector<8x8x4xf32>
    %47 = tpu.transpose %46, [0, 2, 1] : vector<8x8x4xf32> -> vector<8x4x8xf32>
    %48 = vector.shape_cast %47 : vector<8x4x8xf32> to vector<32x8xf32>
    %49 = arith.truncf %48 : vector<32x8xf32> to vector<32x8xbf16>
    %cst_18 = arith.constant dense<0.000000e+00> : vector<32x8xf32>
    %50 = tpu.matmul %3, %49, %cst_18 {dimension_numbers = #tpu.dot_dimension_numbers<[1], [0], [0], [1], [0, 0, 1, 1], [], []>} : vector<32x32xbf16>, vector<32x8xbf16>, vector<32x8xf32> -> vector<32x8xf32>
    %51 = vector.broadcast %5 : vector<32x1xf32> to vector<32x8xf32>
    %52 = arith.addf %50, %51 : vector<32x8xf32>
    %c0_19 = arith.constant 0 : index
    %c0_20 = arith.constant 0 : index
    %c0_21 = arith.constant 0 : index
    %53 = vector.load %arg6[%c0_19, %c0_20, %c0_21] : memref<1x32x8xf32, #tpu.memory_space<vmem>>, vector<1x32x8xf32>
    %54 = vector.shape_cast %53 : vector<1x32x8xf32> to vector<32x8xf32>
    %55 = vector.shape_cast %52 : vector<32x8xf32> to vector<1x32x8xf32>
    tpu.vector_store %arg6[%c0_19, %c0_20, %c0_21], %55 {strides = array<i32>} : memref<1x32x8xf32, #tpu.memory_space<vmem>>, vector<1x32x8xf32>,
    return
  }
  func.func @transform_0(%arg0: i32) -> (i32, i32, i32) {
    %c0_i32 = arith.constant 0 : i32
    %c0_i32_0 = arith.constant 0 : i32
    %c0_i32_1 = arith.constant 0 : i32
    return %arg0, %c0_i32, %c0_i32_0 : i32, i32, i32
  }
  func.func @transform_1(%arg0: i32) -> (i32, i32) {
    %c0_i32 = arith.constant 0 : i32
    %c0_i32_0 = arith.constant 0 : i32
    %c0_i32_1 = arith.constant 0 : i32
    return %c0_i32, %c0_i32_0 : i32, i32
  }
  func.func @transform_2(%arg0: i32) -> (i32, i32) {
    %c0_i32 = arith.constant 0 : i32
    %c0_i32_0 = arith.constant 0 : i32
    %c0_i32_1 = arith.constant 0 : i32
    return %c0_i32, %c0_i32_0 : i32, i32
  }
  func.func @transform_3(%arg0: i32) -> (i32, i32) {
    %c0_i32 = arith.constant 0 : i32
    %c0_i32_0 = arith.constant 0 : i32
    %c0_i32_1 = arith.constant 0 : i32
    return %c0_i32, %c0_i32_0 : i32, i32
  }
  func.func @transform_4(%arg0: i32) -> (i32, i32) {
    %c0_i32 = arith.constant 0 : i32
    %c0_i32_0 = arith.constant 0 : i32
    %c0_i32_1 = arith.constant 0 : i32
    return %c0_i32, %c0_i32_0 : i32, i32
  }
  func.func @transform_5(%arg0: i32) -> (i32, i32, i32) {
    %c0_i32 = arith.constant 0 : i32
    %c0_i32_0 = arith.constant 0 : i32
    %c0_i32_1 = arith.constant 0 : i32
    return %arg0, %c0_i32, %c0_i32_0 : i32, i32, i32
  }
}

module attributes {stable_mosaic.version = 11 : i64} {
  func.func @_sp_attention_kernel(%arg0: i32, %arg1: memref<1x32x8xbf16, #tpu.memory_space<vmem>>, %arg2: memref<96x32xbf16, #tpu.memory_space<vmem>>, %arg3: memref<96x1xf32, #tpu.memory_space<vmem>>, %arg4: memref<32x32xbf16, #tpu.memory_space<vmem>>, %arg5: memref<32x1xf32, #tpu.memory_space<vmem>>, %arg6: memref<1x32x8xf32, #tpu.memory_space<vmem>>, %arg7: memref<8x4x8xbf16, #tpu.memory_space<vmem>>, %arg8: memref<8x8x4xbf16, #tpu.memory_space<vmem>>) attributes {dimension_semantics = [#tpu.dimension_semantics<parallel>], iteration_bounds = array<i64: 2>, scalar_prefetch = 0 : i64, scratch_operands = 2 : i64, tpu.core_type = #tpu.core_type<tc>, window_params = [{transform_indices = @transform_0, window_bounds = array<i64: 1, 32, 8>}, {pipeline_mode = #tpu.pipeline_mode<synchronous>, transform_indices = @transform_1, window_bounds = array<i64: 96, 32>}, {pipeline_mode = #tpu.pipeline_mode<synchronous>, transform_indices = @transform_2, window_bounds = array<i64: 96, 1>}, {pipeline_mode = #tpu.pipeline_mode<synchronous>, transform_indices = @transform_3, window_bounds = array<i64: 32, 32>}, {pipeline_mode = #tpu.pipeline_mode<synchronous>, transform_indices = @transform_4, window_bounds = array<i64: 32, 1>}, {transform_indices = @transform_5, window_bounds = array<i64: 1, 32, 8>}]} {
    %c0 = arith.constant 0 : index
    %c0_0 = arith.constant 0 : index
    %c0_1 = arith.constant 0 : index
    %0 = vector.load %arg1[%c0, %c0_0, %c0_1] : memref<1x32x8xbf16, #tpu.memory_space<vmem>>, vector<1x32x8xbf16>
    %1 = vector.shape_cast %0 : vector<1x32x8xbf16> to vector<32x8xbf16>
    %c0_2 = arith.constant 0 : index
    %c0_3 = arith.constant 0 : index
    %2 = vector.load %arg2[%c0_2, %c0_3] : memref<96x32xbf16, #tpu.memory_space<vmem>>, vector<96x32xbf16>
    %c0_4 = arith.constant 0 : index
    %c0_5 = arith.constant 0 : index
    %3 = vector.load %arg4[%c0_4, %c0_5] : memref<32x32xbf16, #tpu.memory_space<vmem>>, vector<32x32xbf16>
    %c0_6 = arith.constant 0 : index
    %c0_7 = arith.constant 0 : index
    %4 = vector.load %arg3[%c0_6, %c0_7] : memref<96x1xf32, #tpu.memory_space<vmem>>, vector<96x1xf32>
    %c0_8 = arith.constant 0 : index
    %c0_9 = arith.constant 0 : index
    %5 = vector.load %arg5[%c0_8, %c0_9] : memref<32x1xf32, #tpu.memory_space<vmem>>, vector<32x1xf32>
    %cst = arith.constant dense<0.000000e+00> : vector<96x8xf32>
    %6 = tpu.matmul %2, %1, %cst {dimension_numbers = #tpu.dot_dimension_numbers<[1], [0], [0], [1], [0, 0, 1, 1], [], []>} : vector<96x32xbf16>, vector<32x8xbf16>, vector<96x8xf32> -> vector<96x8xf32>
    %7 = vector.broadcast %4 : vector<96x1xf32> to vector<96x8xf32>
    %8 = arith.addf %6, %7 : vector<96x8xf32>
    %9 = vector.shape_cast %8 : vector<96x8xf32> to vector<3x8x4x8xf32>
    %10 = vector.extract_strided_slice %9 {offsets = [0, 0, 0, 0], sizes = [1, 8, 4, 8], strides = [1, 1, 1, 1]} : vector<3x8x4x8xf32> to vector<1x8x4x8xf32>
    %11 = vector.shape_cast %10 : vector<1x8x4x8xf32> to vector<8x4x8xf32>
    %cst_10 = arith.constant 5.000000e-01 : f32
    %12 = vector.broadcast %cst_10 : f32 to vector<8x4x8xf32>
    %13 = arith.mulf %11, %12 : vector<8x4x8xf32>
    %14 = tpu.transpose %13, [0, 2, 1] : vector<8x4x8xf32> -> vector<8x8x4xf32>
    %15 = arith.truncf %14 : vector<8x8x4xf32> to vector<8x8x4xbf16>
    %16 = vector.extract_strided_slice %9 {offsets = [1, 0, 0, 0], sizes = [1, 8, 4, 8], strides = [1, 1, 1, 1]} : vector<3x8x4x8xf32> to vector<1x8x4x8xf32>
    %17 = vector.shape_cast %16 : vector<1x8x4x8xf32> to vector<8x4x8xf32>
    %18 = arith.truncf %17 : vector<8x4x8xf32> to vector<8x4x8xbf16>
    %19 = vector.extract_strided_slice %9 {offsets = [2, 0, 0, 0], sizes = [1, 8, 4, 8], strides = [1, 1, 1, 1]} : vector<3x8x4x8xf32> to vector<1x8x4x8xf32>
    %20 = vector.shape_cast %19 : vector<1x8x4x8xf32> to vector<8x4x8xf32>
    %21 = tpu.transpose %20, [0, 2, 1] : vector<8x4x8xf32> -> vector<8x8x4xf32>
    %22 = arith.truncf %21 : vector<8x8x4xf32> to vector<8x8x4xbf16>
    %cst_11 = arith.constant 0xFF800000 : f32
    %23 = vector.broadcast %cst_11 : f32 to vector<8x8x1xf32>
    %cst_12 = arith.constant 0.000000e+00 : f32
    %24 = vector.broadcast %cst_12 : f32 to vector<8x8x1xf32>
    %cst_13 = arith.constant 0.000000e+00 : f32
    %25 = vector.broadcast %cst_13 : f32 to vector<8x8x4xf32>
    "tpu.trace_start"() <{level = 10 : i32, message = "hnd,hdm->hnm"}> : () -> ()
    %cst_14 = arith.constant dense<0.000000e+00> : vector<8x8x8xf32>
    %26 = tpu.matmul %15, %18, %cst_14 {dimension_numbers = #tpu.dot_dimension_numbers<[2], [1], [1], [2], [0, 0, 0, 1, 1, 2], [0], [0]>} : vector<8x8x4xbf16>, vector<8x4x8xbf16>, vector<8x8x8xf32> -> vector<8x8x8xf32>
    "tpu.trace_stop"() : () -> ()
    %cst_15 = arith.constant dense<0xFF800000> : vector<8x8xf32>
    %27 = vector.multi_reduction <maximumf>, %26, %cst_15 [2] : vector<8x8x8xf32> to vector<8x8xf32>
    %28 = vector.shape_cast %27 : vector<8x8xf32> to vector<8x8x1xf32>
    %29 = arith.maximumf %23, %28 : vector<8x8x1xf32>
    %30 = arith.subf %23, %29 : vector<8x8x1xf32>
    %31 = math.exp %30 : vector<8x8x1xf32>
    %32 = vector.broadcast %29 : vector<8x8x1xf32> to vector<8x8x8xf32>
    %33 = arith.subf %26, %32 : vector<8x8x8xf32>
    %34 = math.exp %33 : vector<8x8x8xf32>
    %35 = arith.mulf %31, %24 : vector<8x8x1xf32>
    %cst_16 = arith.constant dense<0.000000e+00> : vector<8x8xf32>
    %36 = vector.multi_reduction <add>, %34, %cst_16 [2] : vector<8x8x8xf32> to vector<8x8xf32>
    %37 = vector.shape_cast %36 : vector<8x8xf32> to vector<8x8x1xf32>
    %38 = arith.addf %35, %37 : vector<8x8x1xf32>
    %39 = vector.broadcast %31 : vector<8x8x1xf32> to vector<8x8x4xf32>
    %40 = arith.mulf %39, %25 : vector<8x8x4xf32>
    %41 = arith.truncf %34 : vector<8x8x8xf32> to vector<8x8x8xbf16>
    "tpu.trace_start"() <{level = 10 : i32, message = "hnm,hmd->hnd"}> : () -> ()
    %cst_17 = arith.constant dense<0.000000e+00> : vector<8x8x4xf32>
    %42 = tpu.matmul %41, %22, %cst_17 {dimension_numbers = #tpu.dot_dimension_numbers<[2], [1], [1], [2], [0, 0, 0, 1, 1, 2], [0], [0]>} : vector<8x8x8xbf16>, vector<8x8x4xbf16>, vector<8x8x4xf32> -> vector<8x8x4xf32>
    "tpu.trace_stop"() : () -> ()
    %43 = arith.addf %40, %42 : vector<8x8x4xf32>
    %44 = tpu.reciprocal %38 {approx = true} : vector<8x8x1xf32> -> vector<8x8x1xf32>
    %45 = vector.broadcast %44 : vector<8x8x1xf32> to vector<8x8x4xf32>
    %46 = arith.mulf %43, %45 : vector<8x8x4xf32>
    %47 = tpu.transpose %46, [0, 2, 1] : vector<8x8x4xf32> -> vector<8x4x8xf32>
    %48 = vector.shape_cast %47 : vector<8x4x8xf32> to vector<32x8xf32>
    %49 = arith.truncf %48 : vector<32x8xf32> to vector<32x8xbf16>
    %cst_18 = arith.constant dense<0.000000e+00> : vector<32x8xf32>
    %50 = tpu.matmul %3, %49, %cst_18 {dimension_numbers = #tpu.dot_dimension_numbers<[1], [0], [0], [1], [0, 0, 1, 1], [], []>} : vector<32x32xbf16>, vector<32x8xbf16>, vector<32x8xf32> -> vector<32x8xf32>
    %51 = vector.broadcast %5 : vector<32x1xf32> to vector<32x8xf32>
    %52 = arith.addf %50, %51 : vector<32x8xf32>
    %c0_19 = arith.constant 0 : index
    %c0_20 = arith.constant 0 : index
    %c0_21 = arith.constant 0 : index
    %53 = vector.load %arg6[%c0_19, %c0_20, %c0_21] : memref<1x32x8xf32, #tpu.memory_space<vmem>>, vector<1x32x8xf32>
    %54 = vector.shape_cast %53 : vector<1x32x8xf32> to vector<32x8xf32>
    %55 = vector.shape_cast %52 : vector<32x8xf32> to vector<1x32x8xf32>
    tpu.vector_store %arg6[%c0_19, %c0_20, %c0_21], %55 {strides = array<i32>} : memref<1x32x8xf32, #tpu.memory_space<vmem>>, vector<1x32x8xf32>,
    return
  }
  func.func @transform_0(%arg0: i32) -> (i32, i32, i32) {
    %c0_i32 = arith.constant 0 : i32
    %c0_i32_0 = arith.constant 0 : i32
    %c0_i32_1 = arith.constant 0 : i32
    return %arg0, %c0_i32, %c0_i32_0 : i32, i32, i32
  }
  func.func @transform_1(%arg0: i32) -> (i32, i32) {
    %c0_i32 = arith.constant 0 : i32
    %c0_i32_0 = arith.constant 0 : i32
    %c0_i32_1 = arith.constant 0 : i32
    return %c0_i32, %c0_i32_0 : i32, i32
  }
  func.func @transform_2(%arg0: i32) -> (i32, i32) {
    %c0_i32 = arith.constant 0 : i32
    %c0_i32_0 = arith.constant 0 : i32
    %c0_i32_1 = arith.constant 0 : i32
    return %c0_i32, %c0_i32_0 : i32, i32
  }
  func.func @transform_3(%arg0: i32) -> (i32, i32) {
    %c0_i32 = arith.constant 0 : i32
    %c0_i32_0 = arith.constant 0 : i32
    %c0_i32_1 = arith.constant 0 : i32
    return %c0_i32, %c0_i32_0 : i32, i32
  }
  func.func @transform_4(%arg0: i32) -> (i32, i32) {
    %c0_i32 = arith.constant 0 : i32
    %c0_i32_0 = arith.constant 0 : i32
    %c0_i32_1 = arith.constant 0 : i32
    return %c0_i32, %c0_i32_0 : i32, i32
  }
  func.func @transform_5(%arg0: i32) -> (i32, i32, i32) {
    %c0_i32 = arith.constant 0 : i32
    %c0_i32_0 = arith.constant 0 : i32
    %c0_i32_1 = arith.constant 0 : i32
    return %arg0, %c0_i32, %c0_i32_0 : i32, i32, i32
  }
}

</mosaic_0001>

<llo_original>
// kernel: tpu_custom_call.1
$region0: #{tpu_custom_call.1}
  #allocation0 [shape = 'u32[]', space=smem, size = 0x4, offset = 0x4, fixed_abs, tag = 'smem constant byte address 0x4 - core index']
  #allocation1 [shape = 'u32[72,128]{1,0:T(1,128)}', space=vmem, size = 0x9000, scoped, tag = 'internal scratch']
  #allocation2 [shape = 'bf16[8,4,8]{2,1,0:T(4,128)(2,1)}', space=vmem, size = 0x2000, scoped, tag = 'scratch operand']
  #allocation3 [shape = 'bf16[8,8,4]{2,1,0:T(8,128)(2,1)}', space=vmem, size = 0x4000, scoped, tag = 'scratch operand']
  %s0 = inlined_call_operand.vmem [shape: bf16[2,32,8], index: 0, kind: input, shape index: {}]
  %s1 = inlined_call_operand.vmem [shape: bf16[96,32], index: 1, kind: input, shape index: {}]
  %s2 = inlined_call_operand.vmem [shape: f32[96,1], index: 2, kind: input, shape index: {}]
  %s3 = inlined_call_operand.vmem [shape: bf16[32,32], index: 3, kind: input, shape index: {}]
  %s4 = inlined_call_operand.vmem [shape: f32[32,1], index: 4, kind: input, shape index: {}]
  %s5 = inlined_call_operand.vmem [shape: f32[2,32,8], index: 5, kind: output, shape index: {}]
  %s6 = sld [smem:[#allocation0]]
  $region53: #{tpu_custom_call.1} parent=0
    _
  %s8 = ssub.s32 1, %s6
  %s9 = scalar_select 0, %s8, %s6
  loop: start=0, step=1, limit=4
  $region2: #{tpu_custom_call.1} parent=0 // loop_pre_header
    _
  $region3: #{tpu_custom_call.1} parent=0 // loop_header
    %s11 = sphi 0, %s15
    %p12 = scmp.ge.s32.totalorder %s11, 4
    %s21 = sphi 0, %s23
    %s24 = sphi 0, %s21
    %s25 = sphi 0, %s24
    %s41 = sphi 0, %s25
    %s45 = sphi 0, %s45
    %s47 = sphi 0, %s45
    %s48 = sphi 0, %s47
    %s62 = sphi 0, %s48
    %s66 = sphi 0, %s66
    %s68 = sphi 0, %s66
    %s69 = sphi 0, %s68
    %s83 = sphi 0, %s69
    %s87 = sphi 0, %s87
    %s89 = sphi 0, %s87
    %s90 = sphi 0, %s89
    %s104 = sphi 0, %s90
    %s108 = sphi 0, %s108
    %s110 = sphi 0, %s108
    %s111 = sphi 0, %s110
    %s125 = sphi 0, %s111
    %s131 = sphi 0, %s133
    %s134 = sphi 0, %s131
    %s135 = sphi 0, %s134
    %s151 = sphi 0, %s135
  $region4: #{tpu_custom_call.1} parent=0 // loop_header_branch
    %14 = sbr.rel (%p12) target = $region8
  $region5: #{tpu_custom_call.1} parent=0 // loop_body
    %s16 = ssub.s32 %s11, 1
    %s17 = ssub.s32 %s11, 2
    %s18 = sadd.s32 %s11, 1
    %s19 = ssub.s32 %s11, %s18
    %p20 = scmp.eq.s32.totalorder %s19, 0
    %s22 = sadd.s32 %s21, 1
    %s23 = scalar_select %p20, %s21, %s22
    %p26 = pneg %p20
    %p27 = scmp.eq.s32.totalorder %s11, 1
    %p28 = por %p26, %p27
    %p29 = scmp.ne.s32.totalorder %s21, %s24
    %p30 = scmp.eq.s32.totalorder %s11, 0
    %p31 = por %p29, %p30
    %p32 = scmp.ne.s32.totalorder %s21, %s24
    %p33 = scmp.eq.s32.totalorder %s16, 1
    %p34 = por %p32, %p33
    %p35 = scmp.ne.s32.totalorder %s24, %s25
    %p36 = scmp.eq.s32.totalorder %s16, 0
    %p37 = por %p35, %p36
    %p38 = scmp.ne.s32.totalorder %s24, %s25
    %p39 = scmp.eq.s32.totalorder %s17, 1
    %p40 = por %p38, %p39
    %p42 = scmp.ne.s32.totalorder %s25, %s41
    %p43 = scmp.eq.s32.totalorder %s17, 0
    %p44 = por %p42, %p43
    %s46 = sadd.s32 %s45, 1
    %p49 = scmp.eq.s32.totalorder %s11, 1
    %p50 = scmp.ne.s32.totalorder %s45, %s47
    %p51 = scmp.eq.s32.totalorder %s11, 0
    %p52 = por %p50, %p51
    %p53 = scmp.ne.s32.totalorder %s45, %s47
    %p54 = scmp.eq.s32.totalorder %s16, 1
    %p55 = por %p53, %p54
    %p56 = scmp.ne.s32.totalorder %s47, %s48
    %p57 = scmp.eq.s32.totalorder %s16, 0
    %p58 = por %p56, %p57
    %p59 = scmp.ne.s32.totalorder %s47, %s48
    %p60 = scmp.eq.s32.totalorder %s17, 1
    %p61 = por %p59, %p60
    %p63 = scmp.ne.s32.totalorder %s48, %s62
    %p64 = scmp.eq.s32.totalorder %s17, 0
    %p65 = por %p63, %p64
    %s67 = sadd.s32 %s66, 1
    %p70 = scmp.eq.s32.totalorder %s11, 1
    %p71 = scmp.ne.s32.totalorder %s66, %s68
    %p72 = scmp.eq.s32.totalorder %s11, 0
    %p73 = por %p71, %p72
    %p74 = scmp.ne.s32.totalorder %s66, %s68
    %p75 = scmp.eq.s32.totalorder %s16, 1
    %p76 = por %p74, %p75
    %p77 = scmp.ne.s32.totalorder %s68, %s69
    %p78 = scmp.eq.s32.totalorder %s16, 0
    %p79 = por %p77, %p78
    %p80 = scmp.ne.s32.totalorder %s68, %s69
    %p81 = scmp.eq.s32.totalorder %s17, 1
    %p82 = por %p80, %p81
    %p84 = scmp.ne.s32.totalorder %s69, %s83
    %p85 = scmp.eq.s32.totalorder %s17, 0
    %p86 = por %p84, %p85
    %s88 = sadd.s32 %s87, 1
    %p91 = scmp.eq.s32.totalorder %s11, 1
    %p92 = scmp.ne.s32.totalorder %s87, %s89
    %p93 = scmp.eq.s32.totalorder %s11, 0
    %p94 = por %p92, %p93
    %p95 = scmp.ne.s32.totalorder %s87, %s89
    %p96 = scmp.eq.s32.totalorder %s16, 1
    %p97 = por %p95, %p96
    %p98 = scmp.ne.s32.totalorder %s89, %s90
    %p99 = scmp.eq.s32.totalorder %s16, 0
    %p100 = por %p98, %p99
    %p101 = scmp.ne.s32.totalorder %s89, %s90
    %p102 = scmp.eq.s32.totalorder %s17, 1
    %p103 = por %p101, %p102
    %p105 = scmp.ne.s32.totalorder %s90, %s104
    %p106 = scmp.eq.s32.totalorder %s17, 0
    %p107 = por %p105, %p106
    %s109 = sadd.s32 %s108, 1
    %p112 = scmp.eq.s32.totalorder %s11, 1
    %p113 = scmp.ne.s32.totalorder %s108, %s110
    %p114 = scmp.eq.s32.totalorder %s11, 0
    %p115 = por %p113, %p114
    %p116 = scmp.ne.s32.totalorder %s108, %s110
    %p117 = scmp.eq.s32.totalorder %s16, 1
    %p118 = por %p116, %p117
    %p119 = scmp.ne.s32.totalorder %s110, %s111
    %p120 = scmp.eq.s32.totalorder %s16, 0
    %p121 = por %p119, %p120
    %p122 = scmp.ne.s32.totalorder %s110, %s111
    %p123 = scmp.eq.s32.totalorder %s17, 1
    %p124 = por %p122, %p123
    %p126 = scmp.ne.s32.totalorder %s111, %s125
    %p127 = scmp.eq.s32.totalorder %s17, 0
    %p128 = por %p126, %p127
    %s129 = ssub.s32 %s11, %s18
    %p130 = scmp.eq.s32.totalorder %s129, 0
    %s132 = sadd.s32 %s131, 1
    %s133 = scalar_select %p130, %s131, %s132
    %p136 = pneg %p130
    %p137 = scmp.eq.s32.totalorder %s11, 1
    %p138 = por %p136, %p137
    %p139 = scmp.ne.s32.totalorder %s131, %s134
    %p140 = scmp.eq.s32.totalorder %s11, 0
    %p141 = por %p139, %p140
    %p142 = scmp.ne.s32.totalorder %s131, %s134
    %p143 = scmp.eq.s32.totalorder %s16, 1
    %p144 = por %p142, %p143
    %p145 = scmp.ne.s32.totalorder %s134, %s135
    %p146 = scmp.eq.s32.totalorder %s16, 0
    %p147 = por %p145, %p146
    %p148 = scmp.ne.s32.totalorder %s134, %s135
    %p149 = scmp.eq.s32.totalorder %s17, 1
    %p150 = por %p148, %p149
    %p152 = scmp.ne.s32.totalorder %s135, %s151
    %p153 = scmp.eq.s32.totalorder %s17, 0
    %p154 = por %p152, %p153
    %p155 = scmp.le.s32.totalorder 1, %s11
    %p156 = scmp.lt.s32.totalorder %s11, 3
    %p157 = pnand %p155, %p156
    %p158 = pneg %p157
    // Predicated region
    $region9: #{tpu_custom_call.1} parent=5 // pred_check
      _
    $region10: #{tpu_custom_call.1} parent=5 // pred_check_branch
      %160 = sbr.rel (%p157) target = $region12
    $region11: #{tpu_custom_call.1} parent=5 // pred_region
      %s161 = ssub.s32 %s11, 1
      // Predicated region
      $region13: #{tpu_custom_call.1} parent=11 // pred_check
        %p162 = pneg %p58
      $region14: #{tpu_custom_call.1} parent=11 // pred_check_branch
        %164 = sbr.rel (%p162) target = $region16
      $region15: #{tpu_custom_call.1} parent=11 // pred_region
        _
      $region16: #{tpu_custom_call.1} parent=11 // pred_fallthru
        _
      // Predicated region
      $region17: #{tpu_custom_call.1} parent=11 // pred_check
        %p165 = pneg %p79
      $region18: #{tpu_custom_call.1} parent=11 // pred_check_branch
        %167 = sbr.rel (%p165) target = $region20
      $region19: #{tpu_custom_call.1} parent=11 // pred_region
        _
      $region20: #{tpu_custom_call.1} parent=11 // pred_fallthru
        _
      // Predicated region
      $region21: #{tpu_custom_call.1} parent=11 // pred_check
        %p168 = pneg %p100
      $region22: #{tpu_custom_call.1} parent=11 // pred_check_branch
        %170 = sbr.rel (%p168) target = $region24
      $region23: #{tpu_custom_call.1} parent=11 // pred_region
        _
      $region24: #{tpu_custom_call.1} parent=11 // pred_fallthru
        _
      // Predicated region
      $region25: #{tpu_custom_call.1} parent=11 // pred_check
        %p171 = pneg %p121
      $region26: #{tpu_custom_call.1} parent=11 // pred_check_branch
        %173 = sbr.rel (%p171) target = $region28
      $region27: #{tpu_custom_call.1} parent=11 // pred_region
        _
      $region28: #{tpu_custom_call.1} parent=11 // pred_fallthru
        _
    $region12: #{tpu_custom_call.1} parent=5 // pred_fallthru
      _
    %p174 = scmp.lt.s32.totalorder %s11, 2
    // Predicated region
    $region29: #{tpu_custom_call.1} parent=5 // pred_check
      %p175 = pneg %p174
    $region30: #{tpu_custom_call.1} parent=5 // pred_check_branch
      %177 = sbr.rel (%p175) target = $region32
    $region31: #{tpu_custom_call.1} parent=5 // pred_region
      // Predicated region
      $region33: #{tpu_custom_call.1} parent=31 // pred_check
        %p178 = pneg %p31
      $region34: #{tpu_custom_call.1} parent=31 // pred_check_branch
        %180 = sbr.rel (%p178) target = $region36
      $region35: #{tpu_custom_call.1} parent=31 // pred_region
        %p181 = scmp.lt.s32.totalorder %s11, 1
        %s182 = scalar_select %p181, %s11, 1
        %s183 = smul.addr %s182, 4
        %s184 = smul.addr %s183, 4
        %s185 = scalar_lea.vmem %s0, %s184
      $region36: #{tpu_custom_call.1} parent=31 // pred_fallthru
        _
    $region32: #{tpu_custom_call.1} parent=5 // pred_fallthru
      _
    %p186 = scmp.le.s32.totalorder 1, %s11
    %p187 = scmp.lt.s32.totalorder %s11, 3
    %p188 = pnand %p186, %p187
    %p189 = pneg %p188
    // Predicated region
    $region37: #{tpu_custom_call.1} parent=5 // pred_check
      _
    $region38: #{tpu_custom_call.1} parent=5 // pred_check_branch
      %191 = sbr.rel (%p188) target = $region40
    $region39: #{tpu_custom_call.1} parent=5 // pred_region
      %s192 = ssub.s32 %s11, 1
      %p193 = scmp.lt.s32.totalorder %s16, 1
      %s194 = scalar_select %p193, %s16, 1
      %s195 = smul.addr %s194, 4
      %s196 = smul.addr %s195, 4
      %s197 = scalar_lea.vmem %s0, %s196
      %p198 = pneg %p37
      %p199 = pneg %p34
      %p200 = pneg %p58
      %p201 = pneg %p55
      %p202 = pneg %p79
      %p203 = pneg %p76
      %p204 = pneg %p100
      %p205 = pneg %p97
      %p206 = pneg %p121
      %p207 = pneg %p118
      %p208 = pneg %p147
      %p209 = pneg %p144
      %p210 = scmp.lt.s32.totalorder %s16, 1
      %s211 = scalar_select %p210, %s16, 1
      %s212 = smul.addr %s211, 4
      %s213 = smul.addr %s212, 8
      %s214 = scalar_lea.vmem %s5, %s213
      %p215 = scmp.lt.s32.totalorder %s16, 1
      %s216 = scalar_select %p215, %s16, 1
      %s217 = smul.addr %s216, 4
      %s218 = smul.addr %s217, 4
      %s219 = scalar_lea.vmem %s0, %s218
      %p220 = scmp.lt.s32.totalorder %s16, 1
      %s221 = scalar_select %p220, %s16, 1
      %s222 = smul.addr %s221, 4
      %s223 = smul.addr %s222, 8
      %s224 = scalar_lea.vmem %s5, %s223
      %v226 = vld [vmem:[%s219] sm:$0xf]
      %v227 = vld [vmem:[%s219 + $0x4] sm:$0xf]
      %v228 = vld [vmem:[%s219 + $0x8] sm:$0xf]
      %v229 = vld [vmem:[%s219 + $0xc] sm:$0xf]
      %v230 = vld [vmem:[%s1] sm:$0xf]
      %v231 = vld [vmem:[%s1 + $0x4] sm:$0xf]
      %v232 = vld [vmem:[%s1 + $0x8] sm:$0xf]
      %v233 = vld [vmem:[%s1 + $0xc] sm:$0xf]
      %v234 = vld [vmem:[%s1 + $0x10] sm:$0xf]
      %v235 = vld [vmem:[%s1 + $0x14] sm:$0xf]
      %v236 = vld [vmem:[%s1 + $0x18] sm:$0xf]
      %v237 = vld [vmem:[%s1 + $0x1c] sm:$0xf]
      %v238 = vld [vmem:[%s1 + $0x20] sm:$0xf]
      %v239 = vld [vmem:[%s1 + $0x24] sm:$0xf]
      %v240 = vld [vmem:[%s1 + $0x28] sm:$0xf]
      %v241 = vld [vmem:[%s1 + $0x2c] sm:$0xf]
      %v242 = vld [vmem:[%s3] sm:$0xf]
      %v243 = vld [vmem:[%s3 + $0x4] sm:$0xf]
      %v244 = vld [vmem:[%s3 + $0x8] sm:$0xf]
      %v245 = vld [vmem:[%s3 + $0xc] sm:$0xf]
      %v246 = vld [vmem:[%s2] sm:$0xff]
      %v247 = vld [vmem:[%s2 + $0x8] sm:$0xff]
      %v248 = vld [vmem:[%s2 + $0x10] sm:$0xff]
      %v249 = vld [vmem:[%s2 + $0x18] sm:$0xff]
      %v250 = vld [vmem:[%s2 + $0x20] sm:$0xff]
      %v251 = vld [vmem:[%s2 + $0x28] sm:$0xff]
      %v252 = vld [vmem:[%s2 + $0x30] sm:$0xff]
      %v253 = vld [vmem:[%s2 + $0x38] sm:$0xff]
      %v254 = vld [vmem:[%s2 + $0x40] sm:$0xff]
      %v255 = vld [vmem:[%s2 + $0x48] sm:$0xff]
      %v256 = vld [vmem:[%s2 + $0x50] sm:$0xff]
      %v257 = vld [vmem:[%s2 + $0x58] sm:$0xff]
      %v258 = vld [vmem:[%s4] sm:$0xff]
      %v259 = vld [vmem:[%s4 + $0x8] sm:$0xff]
      %v260 = vld [vmem:[%s4 + $0x10] sm:$0xff]
      %v261 = vld [vmem:[%s4 + $0x18] sm:$0xff]
      %263 = vset.pattern.permute.xlu0 0
      %264 = vperm.xlu0 %263, %v246
      %v265 = vpop.permute.xlu0 %264
      %268 = vset.pattern.permute.xlu0 0
      %269 = vperm.xlu0 %268, %v247
      %v270 = vpop.permute.xlu0 %269
      %273 = vset.pattern.permute.xlu0 0
      %274 = vperm.xlu0 %273, %v248
      %v275 = vpop.permute.xlu0 %274
      %278 = vset.pattern.permute.xlu0 0
      %279 = vperm.xlu0 %278, %v249
      %v280 = vpop.permute.xlu0 %279
      %283 = vset.pattern.permute.xlu0 0
      %284 = vperm.xlu0 %283, %v250
      %v285 = vpop.permute.xlu0 %284
      %288 = vset.pattern.permute.xlu0 0
      %289 = vperm.xlu0 %288, %v251
      %v290 = vpop.permute.xlu0 %289
      %293 = vset.pattern.permute.xlu0 0
      %294 = vperm.xlu0 %293, %v252
      %v295 = vpop.permute.xlu0 %294
      %298 = vset.pattern.permute.xlu0 0
      %299 = vperm.xlu0 %298, %v253
      %v300 = vpop.permute.xlu0 %299
      %303 = vset.pattern.permute.xlu0 0
      %304 = vperm.xlu0 %303, %v254
      %v305 = vpop.permute.xlu0 %304
      %308 = vset.pattern.permute.xlu0 0
      %309 = vperm.xlu0 %308, %v255
      %v310 = vpop.permute.xlu0 %309
      %313 = vset.pattern.permute.xlu0 0
      %314 = vperm.xlu0 %313, %v256
      %v315 = vpop.permute.xlu0 %314
      %318 = vset.pattern.permute.xlu0 0
      %319 = vperm.xlu0 %318, %v257
      %v320 = vpop.permute.xlu0 %319
      %v334 = vunpack.c.l.b16 %v230
      %v335 = vunpack.c.l.b16 %v231
      %v336 = vunpack.c.l.b16 %v232
      %v337 = vunpack.c.l.b16 %v233
      %v338 = vunpack.c.l.b16 %v234
      %v339 = vunpack.c.l.b16 %v235
      %v340 = vunpack.c.l.b16 %v236
      %v341 = vunpack.c.l.b16 %v237
      %v342 = vunpack.c.l.b16 %v238
      %v343 = vunpack.c.l.b16 %v239
      %v344 = vunpack.c.l.b16 %v240
      %v345 = vunpack.c.l.b16 %v241
      %v346 = vpack.c.b16 %v335, %v334
      %v347 = vpack.c.b16 %v337, %v336
      %v348 = vpack.c.b16 %v339, %v338
      %v349 = vpack.c.b16 %v341, %v340
      %v350 = vpack.c.b16 %v343, %v342
      %v351 = vpack.c.b16 %v345, %v344
      %v356 = vunpack.c.l.b16 %v226
      %v357 = vunpack.c.l.b16 %v227
      %v358 = vunpack.c.l.b16 %v228
      %v359 = vunpack.c.l.b16 %v229
      %v360 = vpack.c.b16 %v357, %v356
      %v361 = vpack.c.b16 %v359, %v358
      %vm364 = vcmask 261120
      %v366 = vsel %vm364, %v346, 0
      %v369 = vsel %vm364, %v347, 0
      %v372 = vsel %vm364, %v348, 0
      %v375 = vsel %vm364, %v349, 0
      %v378 = vsel %vm364, %v350, 0
      %v381 = vsel %vm364, %v351, 0
      %383 = vmatpush.bf16.msra.mxu0 0
      %384 = vmatpush.bf16.msra.mxu0 0
      %385 = vmatpush.bf16.msra.mxu0 0
      %386 = vmatpush.bf16.msra.mxu0 0
      %387 = vmatpush.bf16.msra.mxu0 0
      %388 = vmatpush.bf16.msra.mxu0 0
      %389 = vmatpush.bf16.msra.mxu0 %v361
      %390 = vmatpush.bf16.msra.mxu0 %v360
      %391 = vmatmul.bf16.gmra.mxu0 %v366
      %v392 = vpop.f32.mrf.mxu0
      %v393 = vadd.f32 %v265, %v392
      %v394 = vpop.f32.mrf.mxu0
      %v395 = vadd.f32 %v270, %v394
      %396 = vmatmul.bf16.gmra.mxu0 %v369
      %v397 = vpop.f32.mrf.mxu0
      %v398 = vadd.f32 %v275, %v397
      %v399 = vpop.f32.mrf.mxu0
      %v400 = vadd.f32 %v280, %v399
      %401 = vmatmul.bf16.gmra.mxu0 %v372
      %v402 = vpop.f32.mrf.mxu0
      %v403 = vadd.f32 %v285, %v402
      %v404 = vpop.f32.mrf.mxu0
      %v405 = vadd.f32 %v290, %v404
      %406 = vmatmul.bf16.gmra.mxu0 %v375
      %v407 = vpop.f32.mrf.mxu0
      %v408 = vadd.f32 %v295, %v407
      %v409 = vpop.f32.mrf.mxu0
      %v410 = vadd.f32 %v300, %v409
      %411 = vmatmul.bf16.gmra.mxu0 %v378
      %v412 = vpop.f32.mrf.mxu0
      %v413 = vadd.f32 %v305, %v412
      %v414 = vpop.f32.mrf.mxu0
      %v415 = vadd.f32 %v310, %v414
      %416 = vmatmul.bf16.gmra.mxu0 %v381
      %v417 = vpop.f32.mrf.mxu0
      %v418 = vadd.f32 %v315, %v417
      %v419 = vpop.f32.mrf.mxu0
      %v420 = vadd.f32 %v320, %v419
      %421 = vdwg.mxu0
      %v434 = vrot.slane %v393, 4
      %v435 = vrot.slane %v395, 4
      %v436 = vrot.slane %v398, 4
      %v437 = vrot.slane %v400, 4
      %v438 = vrot.slane %v403, 4
      %v439 = vrot.slane %v405, 4
      %v440 = vrot.slane %v408, 4
      %v441 = vrot.slane %v410, 4
      %v442 = vrot.slane %v413, 4
      %v443 = vrot.slane %v415, 4
      %v444 = vrot.slane %v418, 4
      %v445 = vrot.slane %v420, 4
      %v458 = vmul.f32 %v393, 0.5
      %v459 = vmul.f32 %v434, 0.5
      %v460 = vmul.f32 %v395, 0.5
      %v461 = vmul.f32 %v435, 0.5
      %v462 = vmul.f32 %v398, 0.5
      %v463 = vmul.f32 %v436, 0.5
      %v464 = vmul.f32 %v400, 0.5
      %v465 = vmul.f32 %v437, 0.5
      %466 = vxpose.xlu0.b32.start [1/16] %v458, 128
      %467 = vxpose.xlu0.b32.cont [2/16] 0.0, 128
      %468 = vxpose.xlu0.b32.cont [3/16] 0.0, 128
      %469 = vxpose.xlu0.b32.cont [4/16] 0.0, 128
      %470 = vxpose.xlu0.b32.cont [5/16] 0.0, 128
      %471 = vxpose.xlu0.b32.cont [6/16] 0.0, 128
      %472 = vxpose.xlu0.b32.cont [7/16] 0.0, 128
      %473 = vxpose.xlu0.b32.cont [8/16] 0.0, 128
      %474 = vxpose.xlu0.b32.cont [9/16] 0.0, 128
      %475 = vxpose.xlu0.b32.cont [10/16] 0.0, 128
      %476 = vxpose.xlu0.b32.cont [11/16] 0.0, 128
      %477 = vxpose.xlu0.b32.cont [12/16] 0.0, 128
      %478 = vxpose.xlu0.b32.cont [13/16] 0.0, 128
      %479 = vxpose.xlu0.b32.cont [14/16] 0.0, 128
      %480 = vxpose.xlu0.b32.cont [15/16] 0.0, 128
      %481 = vxpose.xlu0.b32.end [16/16] 0.0, 128
      %v482 = vpop.trf.xlu0
      %v483 = vpop.trf.xlu0
      %v484 = vpop.trf.xlu0
      %v485 = vpop.trf.xlu0
      %v486 = vpop.trf.xlu0
      %v487 = vpop.trf.xlu0
      %v488 = vpop.trf.xlu0
      %v489 = vpop.trf.xlu0
      %v490 = vpop.trf.xlu0
      %v491 = vpop.trf.xlu0
      %v492 = vpop.trf.xlu0
      %v493 = vpop.trf.xlu0
      %v494 = vpop.trf.xlu0
      %v495 = vpop.trf.xlu0
      %v496 = vpop.trf.xlu0
      %v497 = vpop.trf.xlu0
      %498 = vxpose.xlu0.b32.start [1/16] %v459, 128
      %499 = vxpose.xlu0.b32.cont [2/16] 0.0, 128
      %500 = vxpose.xlu0.b32.cont [3/16] 0.0, 128
      %501 = vxpose.xlu0.b32.cont [4/16] 0.0, 128
      %502 = vxpose.xlu0.b32.cont [5/16] 0.0, 128
      %503 = vxpose.xlu0.b32.cont [6/16] 0.0, 128
      %504 = vxpose.xlu0.b32.cont [7/16] 0.0, 128
      %505 = vxpose.xlu0.b32.cont [8/16] 0.0, 128
      %506 = vxpose.xlu0.b32.cont [9/16] 0.0, 128
      %507 = vxpose.xlu0.b32.cont [10/16] 0.0, 128
      %508 = vxpose.xlu0.b32.cont [11/16] 0.0, 128
      %509 = vxpose.xlu0.b32.cont [12/16] 0.0, 128
      %510 = vxpose.xlu0.b32.cont [13/16] 0.0, 128
      %511 = vxpose.xlu0.b32.cont [14/16] 0.0, 128
      %512 = vxpose.xlu0.b32.cont [15/16] 0.0, 128
      %513 = vxpose.xlu0.b32.end [16/16] 0.0, 128
      %v514 = vpop.trf.xlu0
      %v515 = vpop.trf.xlu0
      %v516 = vpop.trf.xlu0
      %v517 = vpop.trf.xlu0
      %v518 = vpop.trf.xlu0
      %v519 = vpop.trf.xlu0
      %v520 = vpop.trf.xlu0
      %v521 = vpop.trf.xlu0
      %v522 = vpop.trf.xlu0
      %v523 = vpop.trf.xlu0
      %v524 = vpop.trf.xlu0
      %v525 = vpop.trf.xlu0
      %v526 = vpop.trf.xlu0
      %v527 = vpop.trf.xlu0
      %v528 = vpop.trf.xlu0
      %v529 = vpop.trf.xlu0
      %530 = vxpose.xlu0.b32.start [1/16] %v460, 128
      %531 = vxpose.xlu0.b32.cont [2/16] 0.0, 128
      %532 = vxpose.xlu0.b32.cont [3/16] 0.0, 128
      %533 = vxpose.xlu0.b32.cont [4/16] 0.0, 128
      %534 = vxpose.xlu0.b32.cont [5/16] 0.0, 128
      %535 = vxpose.xlu0.b32.cont [6/16] 0.0, 128
      %536 = vxpose.xlu0.b32.cont [7/16] 0.0, 128
      %537 = vxpose.xlu0.b32.cont [8/16] 0.0, 128
      %538 = vxpose.xlu0.b32.cont [9/16] 0.0, 128
      %539 = vxpose.xlu0.b32.cont [10/16] 0.0, 128
      %540 = vxpose.xlu0.b32.cont [11/16] 0.0, 128
      %541 = vxpose.xlu0.b32.cont [12/16] 0.0, 128
      %542 = vxpose.xlu0.b32.cont [13/16] 0.0, 128
      %543 = vxpose.xlu0.b32.cont [14/16] 0.0, 128
      %544 = vxpose.xlu0.b32.cont [15/16] 0.0, 128
      %545 = vxpose.xlu0.b32.end [16/16] 0.0, 128
      %v546 = vpop.trf.xlu0
      %v547 = vpop.trf.xlu0
      %v548 = vpop.trf.xlu0
      %v549 = vpop.trf.xlu0
      %v550 = vpop.trf.xlu0
      %v551 = vpop.trf.xlu0
      %v552 = vpop.trf.xlu0
      %v553 = vpop.trf.xlu0
      %v554 = vpop.trf.xlu0
      %v555 = vpop.trf.xlu0
      %v556 = vpop.trf.xlu0
      %v557 = vpop.trf.xlu0
      %v558 = vpop.trf.xlu0
      %v559 = vpop.trf.xlu0
      %v560 = vpop.trf.xlu0
      %v561 = vpop.trf.xlu0
      %562 = vxpose.xlu0.b32.start [1/16] %v461, 128
      %563 = vxpose.xlu0.b32.cont [2/16] 0.0, 128
      %564 = vxpose.xlu0.b32.cont [3/16] 0.0, 128
      %565 = vxpose.xlu0.b32.cont [4/16] 0.0, 128
      %566 = vxpose.xlu0.b32.cont [5/16] 0.0, 128
      %567 = vxpose.xlu0.b32.cont [6/16] 0.0, 128
      %568 = vxpose.xlu0.b32.cont [7/16] 0.0, 128
      %569 = vxpose.xlu0.b32.cont [8/16] 0.0, 128
      %570 = vxpose.xlu0.b32.cont [9/16] 0.0, 128
      %571 = vxpose.xlu0.b32.cont [10/16] 0.0, 128
      %572 = vxpose.xlu0.b32.cont [11/16] 0.0, 128
      %573 = vxpose.xlu0.b32.cont [12/16] 0.0, 128
      %574 = vxpose.xlu0.b32.cont [13/16] 0.0, 128
      %575 = vxpose.xlu0.b32.cont [14/16] 0.0, 128
      %576 = vxpose.xlu0.b32.cont [15/16] 0.0, 128
      %577 = vxpose.xlu0.b32.end [16/16] 0.0, 128
      %v578 = vpop.trf.xlu0
      %v579 = vpop.trf.xlu0
      %v580 = vpop.trf.xlu0
      %v581 = vpop.trf.xlu0
      %v582 = vpop.trf.xlu0
      %v583 = vpop.trf.xlu0
      %v584 = vpop.trf.xlu0
      %v585 = vpop.trf.xlu0
      %v586 = vpop.trf.xlu0
      %v587 = vpop.trf.xlu0
      %v588 = vpop.trf.xlu0
      %v589 = vpop.trf.xlu0
      %v590 = vpop.trf.xlu0
      %v591 = vpop.trf.xlu0
      %v592 = vpop.trf.xlu0
      %v593 = vpop.trf.xlu0
      %594 = vxpose.xlu0.b32.start [1/16] %v462, 128
      %595 = vxpose.xlu0.b32.cont [2/16] 0.0, 128
      %596 = vxpose.xlu0.b32.cont [3/16] 0.0, 128
      %597 = vxpose.xlu0.b32.cont [4/16] 0.0, 128
      %598 = vxpose.xlu0.b32.cont [5/16] 0.0, 128
      %599 = vxpose.xlu0.b32.cont [6/16] 0.0, 128
      %600 = vxpose.xlu0.b32.cont [7/16] 0.0, 128
      %601 = vxpose.xlu0.b32.cont [8/16] 0.0, 128
      %602 = vxpose.xlu0.b32.cont [9/16] 0.0, 128
      %603 = vxpose.xlu0.b32.cont [10/16] 0.0, 128
      %604 = vxpose.xlu0.b32.cont [11/16] 0.0, 128
      %605 = vxpose.xlu0.b32.cont [12/16] 0.0, 128
      %606 = vxpose.xlu0.b32.cont [13/16] 0.0, 128
      %607 = vxpose.xlu0.b32.cont [14/16] 0.0, 128
      %608 = vxpose.xlu0.b32.cont [15/16] 0.0, 128
      %609 = vxpose.xlu0.b32.end [16/16] 0.0, 128
      %v610 = vpop.trf.xlu0
      %v611 = vpop.trf.xlu0
      %v612 = vpop.trf.xlu0
      %v613 = vpop.trf.xlu0
      %v614 = vpop.trf.xlu0
      %v615 = vpop.trf.xlu0
      %v616 = vpop.trf.xlu0
      %v617 = vpop.trf.xlu0
      %v618 = vpop.trf.xlu0
      %v619 = vpop.trf.xlu0
      %v620 = vpop.trf.xlu0
      %v621 = vpop.trf.xlu0
      %v622 = vpop.trf.xlu0
      %v623 = vpop.trf.xlu0
      %v624 = vpop.trf.xlu0
      %v625 = vpop.trf.xlu0
      %626 = vxpose.xlu0.b32.start [1/16] %v463, 128
      %627 = vxpose.xlu0.b32.cont [2/16] 0.0, 128
      %628 = vxpose.xlu0.b32.cont [3/16] 0.0, 128
      %629 = vxpose.xlu0.b32.cont [4/16] 0.0, 128
      %630 = vxpose.xlu0.b32.cont [5/16] 0.0, 128
      %631 = vxpose.xlu0.b32.cont [6/16] 0.0, 128
      %632 = vxpose.xlu0.b32.cont [7/16] 0.0, 128
      %633 = vxpose.xlu0.b32.cont [8/16] 0.0, 128
      %634 = vxpose.xlu0.b32.cont [9/16] 0.0, 128
      %635 = vxpose.xlu0.b32.cont [10/16] 0.0, 128
      %636 = vxpose.xlu0.b32.cont [11/16] 0.0, 128
      %637 = vxpose.xlu0.b32.cont [12/16] 0.0, 128
      %638 = vxpose.xlu0.b32.cont [13/16] 0.0, 128
      %639 = vxpose.xlu0.b32.cont [14/16] 0.0, 128
      %640 = vxpose.xlu0.b32.cont [15/16] 0.0, 128
      %641 = vxpose.xlu0.b32.end [16/16] 0.0, 128
      %v642 = vpop.trf.xlu0
      %v643 = vpop.trf.xlu0
      %v644 = vpop.trf.xlu0
      %v645 = vpop.trf.xlu0
      %v646 = vpop.trf.xlu0
      %v647 = vpop.trf.xlu0
      %v648 = vpop.trf.xlu0
      %v649 = vpop.trf.xlu0
      %v650 = vpop.trf.xlu0
      %v651 = vpop.trf.xlu0
      %v652 = vpop.trf.xlu0
      %v653 = vpop.trf.xlu0
      %v654 = vpop.trf.xlu0
      %v655 = vpop.trf.xlu0
      %v656 = vpop.trf.xlu0
      %v657 = vpop.trf.xlu0
      %658 = vxpose.xlu0.b32.start [1/16] %v464, 128
      %659 = vxpose.xlu0.b32.cont [2/16] 0.0, 128
      %660 = vxpose.xlu0.b32.cont [3/16] 0.0, 128
      %661 = vxpose.xlu0.b32.cont [4/16] 0.0, 128
      %662 = vxpose.xlu0.b32.cont [5/16] 0.0, 128
      %663 = vxpose.xlu0.b32.cont [6/16] 0.0, 128
      %664 = vxpose.xlu0.b32.cont [7/16] 0.0, 128
      %665 = vxpose.xlu0.b32.cont [8/16] 0.0, 128
      %666 = vxpose.xlu0.b32.cont [9/16] 0.0, 128
      %667 = vxpose.xlu0.b32.cont [10/16] 0.0, 128
      %668 = vxpose.xlu0.b32.cont [11/16] 0.0, 128
      %669 = vxpose.xlu0.b32.cont [12/16] 0.0, 128
      %670 = vxpose.xlu0.b32.cont [13/16] 0.0, 128
      %671 = vxpose.xlu0.b32.cont [14/16] 0.0, 128
      %672 = vxpose.xlu0.b32.cont [15/16] 0.0, 128
      %673 = vxpose.xlu0.b32.end [16/16] 0.0, 128
      %v674 = vpop.trf.xlu0
      %v675 = vpop.trf.xlu0
      %v676 = vpop.trf.xlu0
      %v677 = vpop.trf.xlu0
      %v678 = vpop.trf.xlu0
      %v679 = vpop.trf.xlu0
      %v680 = vpop.trf.xlu0
      %v681 = vpop.trf.xlu0
      %v682 = vpop.trf.xlu0
      %v683 = vpop.trf.xlu0
      %v684 = vpop.trf.xlu0
      %v685 = vpop.trf.xlu0
      %v686 = vpop.trf.xlu0
      %v687 = vpop.trf.xlu0
      %v688 = vpop.trf.xlu0
      %v689 = vpop.trf.xlu0
      %690 = vxpose.xlu0.b32.start [1/16] %v465, 128
      %691 = vxpose.xlu0.b32.cont [2/16] 0.0, 128
      %692 = vxpose.xlu0.b32.cont [3/16] 0.0, 128
      %693 = vxpose.xlu0.b32.cont [4/16] 0.0, 128
      %694 = vxpose.xlu0.b32.cont [5/16] 0.0, 128
      %695 = vxpose.xlu0.b32.cont [6/16] 0.0, 128
      %696 = vxpose.xlu0.b32.cont [7/16] 0.0, 128
      %697 = vxpose.xlu0.b32.cont [8/16] 0.0, 128
      %698 = vxpose.xlu0.b32.cont [9/16] 0.0, 128
      %699 = vxpose.xlu0.b32.cont [10/16] 0.0, 128
      %700 = vxpose.xlu0.b32.cont [11/16] 0.0, 128
      %701 = vxpose.xlu0.b32.cont [12/16] 0.0, 128
      %702 = vxpose.xlu0.b32.cont [13/16] 0.0, 128
      %703 = vxpose.xlu0.b32.cont [14/16] 0.0, 128
      %704 = vxpose.xlu0.b32.cont [15/16] 0.0, 128
      %705 = vxpose.xlu0.b32.end [16/16] 0.0, 128
      %v706 = vpop.trf.xlu0
      %v707 = vpop.trf.xlu0
      %v708 = vpop.trf.xlu0
      %v709 = vpop.trf.xlu0
      %v710 = vpop.trf.xlu0
      %v711 = vpop.trf.xlu0
      %v712 = vpop.trf.xlu0
      %v713 = vpop.trf.xlu0
      %v714 = vpop.trf.xlu0
      %v715 = vpop.trf.xlu0
      %v716 = vpop.trf.xlu0
      %v717 = vpop.trf.xlu0
      %v718 = vpop.trf.xlu0
      %v719 = vpop.trf.xlu0
      %v720 = vpop.trf.xlu0
      %v721 = vpop.trf.xlu0
      %v722 = vpack.c.bf16 %v482, %v482
      %v723 = vpack.c.bf16 %v514, %v514
      %v724 = vpack.c.bf16 %v546, %v546
      %v725 = vpack.c.bf16 %v578, %v578
      %v726 = vpack.c.bf16 %v610, %v610
      %v727 = vpack.c.bf16 %v642, %v642
      %v728 = vpack.c.bf16 %v674, %v674
      %v729 = vpack.c.bf16 %v706, %v706
      %v730 = vpack.c.bf16 %v403, %v403
      %v731 = vpack.c.bf16 %v438, %v438
      %v732 = vpack.c.bf16 %v405, %v405
      %v733 = vpack.c.bf16 %v439, %v439
      %v734 = vpack.c.bf16 %v408, %v408
      %v735 = vpack.c.bf16 %v440, %v440
      %v736 = vpack.c.bf16 %v410, %v410
      %v737 = vpack.c.bf16 %v441, %v441
      %738 = vxpose.xlu0.b32.start [1/16] %v413, 128
      %739 = vxpose.xlu0.b32.cont [2/16] 0.0, 128
      %740 = vxpose.xlu0.b32.cont [3/16] 0.0, 128
      %741 = vxpose.xlu0.b32.cont [4/16] 0.0, 128
      %742 = vxpose.xlu0.b32.cont [5/16] 0.0, 128
      %743 = vxpose.xlu0.b32.cont [6/16] 0.0, 128
      %744 = vxpose.xlu0.b32.cont [7/16] 0.0, 128
      %745 = vxpose.xlu0.b32.cont [8/16] 0.0, 128
      %746 = vxpose.xlu0.b32.cont [9/16] 0.0, 128
      %747 = vxpose.xlu0.b32.cont [10/16] 0.0, 128
      %748 = vxpose.xlu0.b32.cont [11/16] 0.0, 128
      %749 = vxpose.xlu0.b32.cont [12/16] 0.0, 128
      %750 = vxpose.xlu0.b32.cont [13/16] 0.0, 128
      %751 = vxpose.xlu0.b32.cont [14/16] 0.0, 128
      %752 = vxpose.xlu0.b32.cont [15/16] 0.0, 128
      %753 = vxpose.xlu0.b32.end [16/16] 0.0, 128
      %v754 = vpop.trf.xlu0
      %v755 = vpop.trf.xlu0
      %v756 = vpop.trf.xlu0
      %v757 = vpop.trf.xlu0
      %v758 = vpop.trf.xlu0
      %v759 = vpop.trf.xlu0
      %v760 = vpop.trf.xlu0
      %v761 = vpop.trf.xlu0
      %v762 = vpop.trf.xlu0
      %v763 = vpop.trf.xlu0
      %v764 = vpop.trf.xlu0
      %v765 = vpop.trf.xlu0
      %v766 = vpop.trf.xlu0
      %v767 = vpop.trf.xlu0
      %v768 = vpop.trf.xlu0
      %v769 = vpop.trf.xlu0
      %770 = vxpose.xlu0.b32.start [1/16] %v442, 128
      %771 = vxpose.xlu0.b32.cont [2/16] 0.0, 128
      %772 = vxpose.xlu0.b32.cont [3/16] 0.0, 128
      %773 = vxpose.xlu0.b32.cont [4/16] 0.0, 128
      %774 = vxpose.xlu0.b32.cont [5/16] 0.0, 128
      %775 = vxpose.xlu0.b32.cont [6/16] 0.0, 128
      %776 = vxpose.xlu0.b32.cont [7/16] 0.0, 128
      %777 = vxpose.xlu0.b32.cont [8/16] 0.0, 128
      %778 = vxpose.xlu0.b32.cont [9/16] 0.0, 128
      %779 = vxpose.xlu0.b32.cont [10/16] 0.0, 128
      %780 = vxpose.xlu0.b32.cont [11/16] 0.0, 128
      %781 = vxpose.xlu0.b32.cont [12/16] 0.0, 128
      %782 = vxpose.xlu0.b32.cont [13/16] 0.0, 128
      %783 = vxpose.xlu0.b32.cont [14/16] 0.0, 128
      %784 = vxpose.xlu0.b32.cont [15/16] 0.0, 128
      %785 = vxpose.xlu0.b32.end [16/16] 0.0, 128
      %v786 = vpop.trf.xlu0
      %v787 = vpop.trf.xlu0
      %v788 = vpop.trf.xlu0
      %v789 = vpop.trf.xlu0
      %v790 = vpop.trf.xlu0
      %v791 = vpop.trf.xlu0
      %v792 = vpop.trf.xlu0
      %v793 = vpop.trf.xlu0
      %v794 = vpop.trf.xlu0
      %v795 = vpop.trf.xlu0
      %v796 = vpop.trf.xlu0
      %v797 = vpop.trf.xlu0
      %v798 = vpop.trf.xlu0
      %v799 = vpop.trf.xlu0
      %v800 = vpop.trf.xlu0
      %v801 = vpop.trf.xlu0
      %802 = vxpose.xlu0.b32.start [1/16] %v415, 128
      %803 = vxpose.xlu0.b32.cont [2/16] 0.0, 128
      %804 = vxpose.xlu0.b32.cont [3/16] 0.0, 128
      %805 = vxpose.xlu0.b32.cont [4/16] 0.0, 128
      %806 = vxpose.xlu0.b32.cont [5/16] 0.0, 128
      %807 = vxpose.xlu0.b32.cont [6/16] 0.0, 128
      %808 = vxpose.xlu0.b32.cont [7/16] 0.0, 128
      %809 = vxpose.xlu0.b32.cont [8/16] 0.0, 128
      %810 = vxpose.xlu0.b32.cont [9/16] 0.0, 128
      %811 = vxpose.xlu0.b32.cont [10/16] 0.0, 128
      %812 = vxpose.xlu0.b32.cont [11/16] 0.0, 128
      %813 = vxpose.xlu0.b32.cont [12/16] 0.0, 128
      %814 = vxpose.xlu0.b32.cont [13/16] 0.0, 128
      %815 = vxpose.xlu0.b32.cont [14/16] 0.0, 128
      %816 = vxpose.xlu0.b32.cont [15/16] 0.0, 128
      %817 = vxpose.xlu0.b32.end [16/16] 0.0, 128
      %v818 = vpop.trf.xlu0
      %v819 = vpop.trf.xlu0
      %v820 = vpop.trf.xlu0
      %v821 = vpop.trf.xlu0
      %v822 = vpop.trf.xlu0
      %v823 = vpop.trf.xlu0
      %v824 = vpop.trf.xlu0
      %v825 = vpop.trf.xlu0
      %v826 = vpop.trf.xlu0
      %v827 = vpop.trf.xlu0
      %v828 = vpop.trf.xlu0
      %v829 = vpop.trf.xlu0
      %v830 = vpop.trf.xlu0
      %v831 = vpop.trf.xlu0
      %v832 = vpop.trf.xlu0
      %v833 = vpop.trf.xlu0
      %834 = vxpose.xlu0.b32.start [1/16] %v443, 128
      %835 = vxpose.xlu0.b32.cont [2/16] 0.0, 128
      %836 = vxpose.xlu0.b32.cont [3/16] 0.0, 128
      %837 = vxpose.xlu0.b32.cont [4/16] 0.0, 128
      %838 = vxpose.xlu0.b32.cont [5/16] 0.0, 128
      %839 = vxpose.xlu0.b32.cont [6/16] 0.0, 128
      %840 = vxpose.xlu0.b32.cont [7/16] 0.0, 128
      %841 = vxpose.xlu0.b32.cont [8/16] 0.0, 128
      %842 = vxpose.xlu0.b32.cont [9/16] 0.0, 128
      %843 = vxpose.xlu0.b32.cont [10/16] 0.0, 128
      %844 = vxpose.xlu0.b32.cont [11/16] 0.0, 128
      %845 = vxpose.xlu0.b32.cont [12/16] 0.0, 128
      %846 = vxpose.xlu0.b32.cont [13/16] 0.0, 128
      %847 = vxpose.xlu0.b32.cont [14/16] 0.0, 128
      %848 = vxpose.xlu0.b32.cont [15/16] 0.0, 128
      %849 = vxpose.xlu0.b32.end [16/16] 0.0, 128
      %v850 = vpop.trf.xlu0
      %v851 = vpop.trf.xlu0
      %v852 = vpop.trf.xlu0
      %v853 = vpop.trf.xlu0
      %v854 = vpop.trf.xlu0
      %v855 = vpop.trf.xlu0
      %v856 = vpop.trf.xlu0
      %v857 = vpop.trf.xlu0
      %v858 = vpop.trf.xlu0
      %v859 = vpop.trf.xlu0
      %v860 = vpop.trf.xlu0
      %v861 = vpop.trf.xlu0
      %v862 = vpop.trf.xlu0
      %v863 = vpop.trf.xlu0
      %v864 = vpop.trf.xlu0
      %v865 = vpop.trf.xlu0
      %866 = vxpose.xlu0.b32.start [1/16] %v418, 128
      %867 = vxpose.xlu0.b32.cont [2/16] 0.0, 128
      %868 = vxpose.xlu0.b32.cont [3/16] 0.0, 128
      %869 = vxpose.xlu0.b32.cont [4/16] 0.0, 128
      %870 = vxpose.xlu0.b32.cont [5/16] 0.0, 128
      %871 = vxpose.xlu0.b32.cont [6/16] 0.0, 128
      %872 = vxpose.xlu0.b32.cont [7/16] 0.0, 128
      %873 = vxpose.xlu0.b32.cont [8/16] 0.0, 128
      %874 = vxpose.xlu0.b32.cont [9/16] 0.0, 128
      %875 = vxpose.xlu0.b32.cont [10/16] 0.0, 128
      %876 = vxpose.xlu0.b32.cont [11/16] 0.0, 128
      %877 = vxpose.xlu0.b32.cont [12/16] 0.0, 128
      %878 = vxpose.xlu0.b32.cont [13/16] 0.0, 128
      %879 = vxpose.xlu0.b32.cont [14/16] 0.0, 128
      %880 = vxpose.xlu0.b32.cont [15/16] 0.0, 128
      %881 = vxpose.xlu0.b32.end [16/16] 0.0, 128
      %v882 = vpop.trf.xlu0
      %v883 = vpop.trf.xlu0
      %v884 = vpop.trf.xlu0
      %v885 = vpop.trf.xlu0
      %v886 = vpop.trf.xlu0
      %v887 = vpop.trf.xlu0
      %v888 = vpop.trf.xlu0
      %v889 = vpop.trf.xlu0
      %v890 = vpop.trf.xlu0
      %v891 = vpop.trf.xlu0
      %v892 = vpop.trf.xlu0
      %v893 = vpop.trf.xlu0
      %v894 = vpop.trf.xlu0
      %v895 = vpop.trf.xlu0
      %v896 = vpop.trf.xlu0
      %v897 = vpop.trf.xlu0
      %898 = vxpose.xlu0.b32.start [1/16] %v444, 128
      %899 = vxpose.xlu0.b32.cont [2/16] 0.0, 128
      %900 = vxpose.xlu0.b32.cont [3/16] 0.0, 128
      %901 = vxpose.xlu0.b32.cont [4/16] 0.0, 128
      %902 = vxpose.xlu0.b32.cont [5/16] 0.0, 128
      %903 = vxpose.xlu0.b32.cont [6/16] 0.0, 128
      %904 = vxpose.xlu0.b32.cont [7/16] 0.0, 128
      %905 = vxpose.xlu0.b32.cont [8/16] 0.0, 128
      %906 = vxpose.xlu0.b32.cont [9/16] 0.0, 128
      %907 = vxpose.xlu0.b32.cont [10/16] 0.0, 128
      %908 = vxpose.xlu0.b32.cont [11/16] 0.0, 128
      %909 = vxpose.xlu0.b32.cont [12/16] 0.0, 128
      %910 = vxpose.xlu0.b32.cont [13/16] 0.0, 128
      %911 = vxpose.xlu0.b32.cont [14/16] 0.0, 128
      %912 = vxpose.xlu0.b32.cont [15/16] 0.0, 128
      %913 = vxpose.xlu0.b32.end [16/16] 0.0, 128
      %v914 = vpop.trf.xlu0
      %v915 = vpop.trf.xlu0
      %v916 = vpop.trf.xlu0
      %v917 = vpop.trf.xlu0
      %v918 = vpop.trf.xlu0
      %v919 = vpop.trf.xlu0
      %v920 = vpop.trf.xlu0
      %v921 = vpop.trf.xlu0
      %v922 = vpop.trf.xlu0
      %v923 = vpop.trf.xlu0
      %v924 = vpop.trf.xlu0
      %v925 = vpop.trf.xlu0
      %v926 = vpop.trf.xlu0
      %v927 = vpop.trf.xlu0
      %v928 = vpop.trf.xlu0
      %v929 = vpop.trf.xlu0
      %930 = vxpose.xlu0.b32.start [1/16] %v420, 128
      %931 = vxpose.xlu0.b32.cont [2/16] 0.0, 128
      %932 = vxpose.xlu0.b32.cont [3/16] 0.0, 128
      %933 = vxpose.xlu0.b32.cont [4/16] 0.0, 128
      %934 = vxpose.xlu0.b32.cont [5/16] 0.0, 128
      %935 = vxpose.xlu0.b32.cont [6/16] 0.0, 128
      %936 = vxpose.xlu0.b32.cont [7/16] 0.0, 128
      %937 = vxpose.xlu0.b32.cont [8/16] 0.0, 128
      %938 = vxpose.xlu0.b32.cont [9/16] 0.0, 128
      %939 = vxpose.xlu0.b32.cont [10/16] 0.0, 128
      %940 = vxpose.xlu0.b32.cont [11/16] 0.0, 128
      %941 = vxpose.xlu0.b32.cont [12/16] 0.0, 128
      %942 = vxpose.xlu0.b32.cont [13/16] 0.0, 128
      %943 = vxpose.xlu0.b32.cont [14/16] 0.0, 128
      %944 = vxpose.xlu0.b32.cont [15/16] 0.0, 128
      %945 = vxpose.xlu0.b32.end [16/16] 0.0, 128
      %v946 = vpop.trf.xlu0
      %v947 = vpop.trf.xlu0
      %v948 = vpop.trf.xlu0
      %v949 = vpop.trf.xlu0
      %v950 = vpop.trf.xlu0
      %v951 = vpop.trf.xlu0
      %v952 = vpop.trf.xlu0
      %v953 = vpop.trf.xlu0
      %v954 = vpop.trf.xlu0
      %v955 = vpop.trf.xlu0
      %v956 = vpop.trf.xlu0
      %v957 = vpop.trf.xlu0
      %v958 = vpop.trf.xlu0
      %v959 = vpop.trf.xlu0
      %v960 = vpop.trf.xlu0
      %v961 = vpop.trf.xlu0
      %962 = vxpose.xlu0.b32.start [1/16] %v445, 128
      %963 = vxpose.xlu0.b32.cont [2/16] 0.0, 128
      %964 = vxpose.xlu0.b32.cont [3/16] 0.0, 128
      %965 = vxpose.xlu0.b32.cont [4/16] 0.0, 128
      %966 = vxpose.xlu0.b32.cont [5/16] 0.0, 128
      %967 = vxpose.xlu0.b32.cont [6/16] 0.0, 128
      %968 = vxpose.xlu0.b32.cont [7/16] 0.0, 128
      %969 = vxpose.xlu0.b32.cont [8/16] 0.0, 128
      %970 = vxpose.xlu0.b32.cont [9/16] 0.0, 128
      %971 = vxpose.xlu0.b32.cont [10/16] 0.0, 128
      %972 = vxpose.xlu0.b32.cont [11/16] 0.0, 128
      %973 = vxpose.xlu0.b32.cont [12/16] 0.0, 128
      %974 = vxpose.xlu0.b32.cont [13/16] 0.0, 128
      %975 = vxpose.xlu0.b32.cont [14/16] 0.0, 128
      %976 = vxpose.xlu0.b32.cont [15/16] 0.0, 128
      %977 = vxpose.xlu0.b32.end [16/16] 0.0, 128
      %v978 = vpop.trf.xlu0
      %v979 = vpop.trf.xlu0
      %v980 = vpop.trf.xlu0
      %v981 = vpop.trf.xlu0
      %v982 = vpop.trf.xlu0
      %v983 = vpop.trf.xlu0
      %v984 = vpop.trf.xlu0
      %v985 = vpop.trf.xlu0
      %v986 = vpop.trf.xlu0
      %v987 = vpop.trf.xlu0
      %v988 = vpop.trf.xlu0
      %v989 = vpop.trf.xlu0
      %v990 = vpop.trf.xlu0
      %v991 = vpop.trf.xlu0
      %v992 = vpop.trf.xlu0
      %v993 = vpop.trf.xlu0
      %v994 = vpack.c.bf16 %v754, %v754
      %v995 = vpack.c.bf16 %v786, %v786
      %v996 = vpack.c.bf16 %v818, %v818
      %v997 = vpack.c.bf16 %v850, %v850
      %v998 = vpack.c.bf16 %v882, %v882
      %v999 = vpack.c.bf16 %v914, %v914
      %v1000 = vpack.c.bf16 %v946, %v946
      %v1001 = vpack.c.bf16 %v978, %v978
      %vm1002 = vcmask 31744
      %v1004 = vsel %vm1002, %v722, 0
      %vm1006 = vcmask 1041408
      %v1008 = vsel %vm1006, %v730, 0
      %1010 = vmatpush.bf16.msra.mxu0 0
      %1011 = vmatpush.bf16.msra.mxu0 0
      %1012 = vmatpush.bf16.msra.mxu0 0
      %1013 = vmatpush.bf16.msra.mxu0 0
      %1014 = vmatpush.bf16.msra.mxu0 0
      %1015 = vmatpush.bf16.msra.mxu0 0
      %1016 = vmatpush.bf16.msra.mxu0 0
      %1017 = vmatpush.bf16.msra.mxu0 %v1008
      %1018 = vmatmul.bf16.gmra.mxu0 %v1004
      %v1019 = vpop.f32.mrf.mxu0
      %v1020 = vadd.f32 0.0, %v1019
      %v1021 = vpop.f32.mrf.mxu0
      %1022 = vdwg.mxu0
      %v1024 = vsel %vm1002, %v723, 0
      %v1027 = vsel %vm1006, %v731, 0
      %1029 = vmatpush.bf16.msra.mxu0 0
      %1030 = vmatpush.bf16.msra.mxu0 0
      %1031 = vmatpush.bf16.msra.mxu0 0
      %1032 = vmatpush.bf16.msra.mxu0 0
      %1033 = vmatpush.bf16.msra.mxu0 0
      %1034 = vmatpush.bf16.msra.mxu0 0
      %1035 = vmatpush.bf16.msra.mxu0 0
      %1036 = vmatpush.bf16.msra.mxu0 %v1027
      %1037 = vmatmul.bf16.gmra.mxu0 %v1024
      %v1038 = vpop.f32.mrf.mxu0
      %v1039 = vadd.f32 0.0, %v1038
      %v1040 = vpop.f32.mrf.mxu0
      %1041 = vdwg.mxu0
      %v1043 = vsel %vm1002, %v724, 0
      %v1046 = vsel %vm1006, %v732, 0
      %1048 = vmatpush.bf16.msra.mxu0 0
      %1049 = vmatpush.bf16.msra.mxu0 0
      %1050 = vmatpush.bf16.msra.mxu0 0
      %1051 = vmatpush.bf16.msra.mxu0 0
      %1052 = vmatpush.bf16.msra.mxu0 0
      %1053 = vmatpush.bf16.msra.mxu0 0
      %1054 = vmatpush.bf16.msra.mxu0 0
      %1055 = vmatpush.bf16.msra.mxu0 %v1046
      %1056 = vmatmul.bf16.gmra.mxu0 %v1043
      %v1057 = vpop.f32.mrf.mxu0
      %v1058 = vadd.f32 0.0, %v1057
      %v1059 = vpop.f32.mrf.mxu0
      %1060 = vdwg.mxu0
      %v1062 = vsel %vm1002, %v725, 0
      %v1065 = vsel %vm1006, %v733, 0
      %1067 = vmatpush.bf16.msra.mxu0 0
      %1068 = vmatpush.bf16.msra.mxu0 0
      %1069 = vmatpush.bf16.msra.mxu0 0
      %1070 = vmatpush.bf16.msra.mxu0 0
      %1071 = vmatpush.bf16.msra.mxu0 0
      %1072 = vmatpush.bf16.msra.mxu0 0
      %1073 = vmatpush.bf16.msra.mxu0 0
      %1074 = vmatpush.bf16.msra.mxu0 %v1065
      %1075 = vmatmul.bf16.gmra.mxu0 %v1062
      %v1076 = vpop.f32.mrf.mxu0
      %v1077 = vadd.f32 0.0, %v1076
      %v1078 = vpop.f32.mrf.mxu0
      %1079 = vdwg.mxu0
      %v1081 = vsel %vm1002, %v726, 0
      %v1084 = vsel %vm1006, %v734, 0
      %1086 = vmatpush.bf16.msra.mxu0 0
      %1087 = vmatpush.bf16.msra.mxu0 0
      %1088 = vmatpush.bf16.msra.mxu0 0
      %1089 = vmatpush.bf16.msra.mxu0 0
      %1090 = vmatpush.bf16.msra.mxu0 0
      %1091 = vmatpush.bf16.msra.mxu0 0
      %1092 = vmatpush.bf16.msra.mxu0 0
      %1093 = vmatpush.bf16.msra.mxu0 %v1084
      %1094 = vmatmul.bf16.gmra.mxu0 %v1081
      %v1095 = vpop.f32.mrf.mxu0
      %v1096 = vadd.f32 0.0, %v1095
      %v1097 = vpop.f32.mrf.mxu0
      %1098 = vdwg.mxu0
      %v1100 = vsel %vm1002, %v727, 0
      %v1103 = vsel %vm1006, %v735, 0
      %1105 = vmatpush.bf16.msra.mxu0 0
      %1106 = vmatpush.bf16.msra.mxu0 0
      %1107 = vmatpush.bf16.msra.mxu0 0
      %1108 = vmatpush.bf16.msra.mxu0 0
      %1109 = vmatpush.bf16.msra.mxu0 0
      %1110 = vmatpush.bf16.msra.mxu0 0
      %1111 = vmatpush.bf16.msra.mxu0 0
      %1112 = vmatpush.bf16.msra.mxu0 %v1103
      %1113 = vmatmul.bf16.gmra.mxu0 %v1100
      %v1114 = vpop.f32.mrf.mxu0
      %v1115 = vadd.f32 0.0, %v1114
      %v1116 = vpop.f32.mrf.mxu0
      %1117 = vdwg.mxu0
      %v1119 = vsel %vm1002, %v728, 0
      %v1122 = vsel %vm1006, %v736, 0
      %1124 = vmatpush.bf16.msra.mxu0 0
      %1125 = vmatpush.bf16.msra.mxu0 0
      %1126 = vmatpush.bf16.msra.mxu0 0
      %1127 = vmatpush.bf16.msra.mxu0 0
      %1128 = vmatpush.bf16.msra.mxu0 0
      %1129 = vmatpush.bf16.msra.mxu0 0
      %1130 = vmatpush.bf16.msra.mxu0 0
      %1131 = vmatpush.bf16.msra.mxu0 %v1122
      %1132 = vmatmul.bf16.gmra.mxu0 %v1119
      %v1133 = vpop.f32.mrf.mxu0
      %v1134 = vadd.f32 0.0, %v1133
      %v1135 = vpop.f32.mrf.mxu0
      %1136 = vdwg.mxu0
      %v1138 = vsel %vm1002, %v729, 0
      %v1141 = vsel %vm1006, %v737, 0
      %1143 = vmatpush.bf16.msra.mxu0 0
      %1144 = vmatpush.bf16.msra.mxu0 0
      %1145 = vmatpush.bf16.msra.mxu0 0
      %1146 = vmatpush.bf16.msra.mxu0 0
      %1147 = vmatpush.bf16.msra.mxu0 0
      %1148 = vmatpush.bf16.msra.mxu0 0
      %1149 = vmatpush.bf16.msra.mxu0 0
      %1150 = vmatpush.bf16.msra.mxu0 %v1141
      %1151 = vmatmul.bf16.gmra.mxu0 %v1138
      %v1152 = vpop.f32.mrf.mxu0
      %v1153 = vadd.f32 0.0, %v1152
      %v1154 = vpop.f32.mrf.mxu0
      %1155 = vdwg.mxu0
      %vm1156 = vcmask 64512
      %v1157 = vsel %vm1156, %v1020, -inf
      %1158 = vmax.xlane.f32.xlu0 %v1157
      %v1159 = vpop.xlane.xlu0 %1158
      %v1160 = vsel %vm1156, %v1039, -inf
      %1161 = vmax.xlane.f32.xlu0 %v1160
      %v1162 = vpop.xlane.xlu0 %1161
      %v1163 = vsel %vm1156, %v1058, -inf
      %1164 = vmax.xlane.f32.xlu0 %v1163
      %v1165 = vpop.xlane.xlu0 %1164
      %v1166 = vsel %vm1156, %v1077, -inf
      %1167 = vmax.xlane.f32.xlu0 %v1166
      %v1168 = vpop.xlane.xlu0 %1167
      %v1169 = vsel %vm1156, %v1096, -inf
      %1170 = vmax.xlane.f32.xlu0 %v1169
      %v1171 = vpop.xlane.xlu0 %1170
      %v1172 = vsel %vm1156, %v1115, -inf
      %1173 = vmax.xlane.f32.xlu0 %v1172
      %v1174 = vpop.xlane.xlu0 %1173
      %v1175 = vsel %vm1156, %v1134, -inf
      %1176 = vmax.xlane.f32.xlu0 %v1175
      %v1177 = vpop.xlane.xlu0 %1176
      %v1178 = vsel %vm1156, %v1153, -inf
      %1179 = vmax.xlane.f32.xlu0 %v1178
      %v1180 = vpop.xlane.xlu0 %1179
      %v1181 = vsub.f32 -inf, %v1159
      %v1182 = vsub.f32 -inf, %v1162
      %v1183 = vsub.f32 -inf, %v1165
      %v1184 = vsub.f32 -inf, %v1168
      %v1185 = vsub.f32 -inf, %v1171
      %v1186 = vsub.f32 -inf, %v1174
      %v1187 = vsub.f32 -inf, %v1177
      %v1188 = vsub.f32 -inf, %v1180
      %v1189 = vmul.f32 %v1181, 1.442695
      %v1190 = vpow.pop %v1189
      %v1191 = vmul.f32 %v1182, 1.442695
      %v1192 = vpow.pop %v1191
      %v1193 = vmul.f32 %v1183, 1.442695
      %v1194 = vpow.pop %v1193
      %v1195 = vmul.f32 %v1184, 1.442695
      %v1196 = vpow.pop %v1195
      %v1197 = vmul.f32 %v1185, 1.442695
      %v1198 = vpow.pop %v1197
      %v1199 = vmul.f32 %v1186, 1.442695
      %v1200 = vpow.pop %v1199
      %v1201 = vmul.f32 %v1187, 1.442695
      %v1202 = vpow.pop %v1201
      %v1203 = vmul.f32 %v1188, 1.442695
      %v1204 = vpow.pop %v1203
      %v1205 = vsub.f32 %v1020, %v1159
      %v1206 = vsub.f32 %v1039, %v1162
      %v1207 = vsub.f32 %v1058, %v1165
      %v1208 = vsub.f32 %v1077, %v1168
      %v1209 = vsub.f32 %v1096, %v1171
      %v1210 = vsub.f32 %v1115, %v1174
      %v1211 = vsub.f32 %v1134, %v1177
      %v1212 = vsub.f32 %v1153, %v1180
      %v1213 = vmul.f32 %v1205, 1.442695
      %v1214 = vpow.pop %v1213
      %v1215 = vmul.f32 %v1206, 1.442695
      %v1216 = vpow.pop %v1215
      %v1217 = vmul.f32 %v1207, 1.442695
      %v1218 = vpow.pop %v1217
      %v1219 = vmul.f32 %v1208, 1.442695
      %v1220 = vpow.pop %v1219
      %v1221 = vmul.f32 %v1209, 1.442695
      %v1222 = vpow.pop %v1221
      %v1223 = vmul.f32 %v1210, 1.442695
      %v1224 = vpow.pop %v1223
      %v1225 = vmul.f32 %v1211, 1.442695
      %v1226 = vpow.pop %v1225
      %v1227 = vmul.f32 %v1212, 1.442695
      %v1228 = vpow.pop %v1227
      %v1229 = vmul.f32 %v1190, 0.0
      %v1230 = vmul.f32 %v1192, 0.0
      %v1231 = vmul.f32 %v1194, 0.0
      %v1232 = vmul.f32 %v1196, 0.0
      %v1233 = vmul.f32 %v1198, 0.0
      %v1234 = vmul.f32 %v1200, 0.0
      %v1235 = vmul.f32 %v1202, 0.0
      %v1236 = vmul.f32 %v1204, 0.0
      %v1237 = vsel %vm1156, %v1214, 0.0
      %1238 = vadd.xlane.f32.xlu0 %v1237
      %v1239 = vpop.xlane.xlu0 %1238
      %v1240 = vsel %vm1156, %v1216, 0.0
      %1241 = vadd.xlane.f32.xlu0 %v1240
      %v1242 = vpop.xlane.xlu0 %1241
      %v1243 = vsel %vm1156, %v1218, 0.0
      %1244 = vadd.xlane.f32.xlu0 %v1243
      %v1245 = vpop.xlane.xlu0 %1244
      %v1246 = vsel %vm1156, %v1220, 0.0
      %1247 = vadd.xlane.f32.xlu0 %v1246
      %v1248 = vpop.xlane.xlu0 %1247
      %v1249 = vsel %vm1156, %v1222, 0.0
      %1250 = vadd.xlane.f32.xlu0 %v1249
      %v1251 = vpop.xlane.xlu0 %1250
      %v1252 = vsel %vm1156, %v1224, 0.0
      %1253 = vadd.xlane.f32.xlu0 %v1252
      %v1254 = vpop.xlane.xlu0 %1253
      %v1255 = vsel %vm1156, %v1226, 0.0
      %1256 = vadd.xlane.f32.xlu0 %v1255
      %v1257 = vpop.xlane.xlu0 %1256
      %v1258 = vsel %vm1156, %v1228, 0.0
      %1259 = vadd.xlane.f32.xlu0 %v1258
      %v1260 = vpop.xlane.xlu0 %1259
      %v1261 = vadd.f32 %v1229, %v1239
      %v1262 = vadd.f32 %v1230, %v1242
      %v1263 = vadd.f32 %v1231, %v1245
      %v1264 = vadd.f32 %v1232, %v1248
      %v1265 = vadd.f32 %v1233, %v1251
      %v1266 = vadd.f32 %v1234, %v1254
      %v1267 = vadd.f32 %v1235, %v1257
      %v1268 = vadd.f32 %v1236, %v1260
      %v1269 = vpack.c.bf16 %v1214, %v1214
      %v1270 = vpack.c.bf16 %v1216, %v1216
      %v1271 = vpack.c.bf16 %v1218, %v1218
      %v1272 = vpack.c.bf16 %v1220, %v1220
      %v1273 = vpack.c.bf16 %v1222, %v1222
      %v1274 = vpack.c.bf16 %v1224, %v1224
      %v1275 = vpack.c.bf16 %v1226, %v1226
      %v1276 = vpack.c.bf16 %v1228, %v1228
      %v1278 = vsel %vm1156, %v1269, 0
      %vm1280 = vcmask 1043456
      %v1282 = vsel %vm1280, %v994, 0
      %1284 = vmatpush.bf16.msra.mxu0 0
      %1285 = vmatpush.bf16.msra.mxu0 0
      %1286 = vmatpush.bf16.msra.mxu0 0
      %1287 = vmatpush.bf16.msra.mxu0 0
      %1288 = vmatpush.bf16.msra.mxu0 0
      %1289 = vmatpush.bf16.msra.mxu0 0
      %1290 = vmatpush.bf16.msra.mxu0 0
      %1291 = vmatpush.bf16.msra.mxu0 %v1282
      %1292 = vmatmul.bf16.gmra.mxu0 %v1278
      %v1293 = vpop.f32.mrf.mxu0
      %v1294 = vadd.f32 0.0, %v1293
      %v1295 = vpop.f32.mrf.mxu0
      %1296 = vdwg.mxu0
      %v1298 = vsel %vm1156, %v1270, 0
      %v1301 = vsel %vm1280, %v995, 0
      %1303 = vmatpush.bf16.msra.mxu0 0
      %1304 = vmatpush.bf16.msra.mxu0 0
      %1305 = vmatpush.bf16.msra.mxu0 0
      %1306 = vmatpush.bf16.msra.mxu0 0
      %1307 = vmatpush.bf16.msra.mxu0 0
      %1308 = vmatpush.bf16.msra.mxu0 0
      %1309 = vmatpush.bf16.msra.mxu0 0
      %1310 = vmatpush.bf16.msra.mxu0 %v1301
      %1311 = vmatmul.bf16.gmra.mxu0 %v1298
      %v1312 = vpop.f32.mrf.mxu0
      %v1313 = vadd.f32 0.0, %v1312
      %v1314 = vpop.f32.mrf.mxu0
      %1315 = vdwg.mxu0
      %v1317 = vsel %vm1156, %v1271, 0
      %v1320 = vsel %vm1280, %v996, 0
      %1322 = vmatpush.bf16.msra.mxu0 0
      %1323 = vmatpush.bf16.msra.mxu0 0
      %1324 = vmatpush.bf16.msra.mxu0 0
      %1325 = vmatpush.bf16.msra.mxu0 0
      %1326 = vmatpush.bf16.msra.mxu0 0
      %1327 = vmatpush.bf16.msra.mxu0 0
      %1328 = vmatpush.bf16.msra.mxu0 0
      %1329 = vmatpush.bf16.msra.mxu0 %v1320
      %1330 = vmatmul.bf16.gmra.mxu0 %v1317
      %v1331 = vpop.f32.mrf.mxu0
      %v1332 = vadd.f32 0.0, %v1331
      %v1333 = vpop.f32.mrf.mxu0
      %1334 = vdwg.mxu0
      %v1336 = vsel %vm1156, %v1272, 0
      %v1339 = vsel %vm1280, %v997, 0
      %1341 = vmatpush.bf16.msra.mxu0 0
      %1342 = vmatpush.bf16.msra.mxu0 0
      %1343 = vmatpush.bf16.msra.mxu0 0
      %1344 = vmatpush.bf16.msra.mxu0 0
      %1345 = vmatpush.bf16.msra.mxu0 0
      %1346 = vmatpush.bf16.msra.mxu0 0
      %1347 = vmatpush.bf16.msra.mxu0 0
      %1348 = vmatpush.bf16.msra.mxu0 %v1339
      %1349 = vmatmul.bf16.gmra.mxu0 %v1336
      %v1350 = vpop.f32.mrf.mxu0
      %v1351 = vadd.f32 0.0, %v1350
      %v1352 = vpop.f32.mrf.mxu0
      %1353 = vdwg.mxu0
      %v1355 = vsel %vm1156, %v1273, 0
      %v1358 = vsel %vm1280, %v998, 0
      %1360 = vmatpush.bf16.msra.mxu0 0
      %1361 = vmatpush.bf16.msra.mxu0 0
      %1362 = vmatpush.bf16.msra.mxu0 0
      %1363 = vmatpush.bf16.msra.mxu0 0
      %1364 = vmatpush.bf16.msra.mxu0 0
      %1365 = vmatpush.bf16.msra.mxu0 0
      %1366 = vmatpush.bf16.msra.mxu0 0
      %1367 = vmatpush.bf16.msra.mxu0 %v1358
      %1368 = vmatmul.bf16.gmra.mxu0 %v1355
      %v1369 = vpop.f32.mrf.mxu0
      %v1370 = vadd.f32 0.0, %v1369
      %v1371 = vpop.f32.mrf.mxu0
      %1372 = vdwg.mxu0
      %v1374 = vsel %vm1156, %v1274, 0
      %v1377 = vsel %vm1280, %v999, 0
      %1379 = vmatpush.bf16.msra.mxu0 0
      %1380 = vmatpush.bf16.msra.mxu0 0
      %1381 = vmatpush.bf16.msra.mxu0 0
      %1382 = vmatpush.bf16.msra.mxu0 0
      %1383 = vmatpush.bf16.msra.mxu0 0
      %1384 = vmatpush.bf16.msra.mxu0 0
      %1385 = vmatpush.bf16.msra.mxu0 0
      %1386 = vmatpush.bf16.msra.mxu0 %v1377
      %1387 = vmatmul.bf16.gmra.mxu0 %v1374
      %v1388 = vpop.f32.mrf.mxu0
      %v1389 = vadd.f32 0.0, %v1388
      %v1390 = vpop.f32.mrf.mxu0
      %1391 = vdwg.mxu0
      %v1393 = vsel %vm1156, %v1275, 0
      %v1396 = vsel %vm1280, %v1000, 0
      %1398 = vmatpush.bf16.msra.mxu0 0
      %1399 = vmatpush.bf16.msra.mxu0 0
      %1400 = vmatpush.bf16.msra.mxu0 0
      %1401 = vmatpush.bf16.msra.mxu0 0
      %1402 = vmatpush.bf16.msra.mxu0 0
      %1403 = vmatpush.bf16.msra.mxu0 0
      %1404 = vmatpush.bf16.msra.mxu0 0
      %1405 = vmatpush.bf16.msra.mxu0 %v1396
      %1406 = vmatmul.bf16.gmra.mxu0 %v1393
      %v1407 = vpop.f32.mrf.mxu0
      %v1408 = vadd.f32 0.0, %v1407
      %v1409 = vpop.f32.mrf.mxu0
      %1410 = vdwg.mxu0
      %v1412 = vsel %vm1156, %v1276, 0
      %v1415 = vsel %vm1280, %v1001, 0
      %1417 = vmatpush.bf16.msra.mxu0 0
      %1418 = vmatpush.bf16.msra.mxu0 0
      %1419 = vmatpush.bf16.msra.mxu0 0
      %1420 = vmatpush.bf16.msra.mxu0 0
      %1421 = vmatpush.bf16.msra.mxu0 0
      %1422 = vmatpush.bf16.msra.mxu0 0
      %1423 = vmatpush.bf16.msra.mxu0 0
      %1424 = vmatpush.bf16.msra.mxu0 %v1415
      %1425 = vmatmul.bf16.gmra.mxu0 %v1412
      %v1426 = vpop.f32.mrf.mxu0
      %v1427 = vadd.f32 0.0, %v1426
      %v1428 = vpop.f32.mrf.mxu0
      %1429 = vdwg.mxu0
      %v1430 = vadd.f32 %v1229, %v1294
      %v1431 = vadd.f32 %v1230, %v1313
      %v1432 = vadd.f32 %v1231, %v1332
      %v1433 = vadd.f32 %v1232, %v1351
      %v1434 = vadd.f32 %v1233, %v1370
      %v1435 = vadd.f32 %v1234, %v1389
      %v1436 = vadd.f32 %v1235, %v1408
      %v1437 = vadd.f32 %v1236, %v1427
      %v1438 = vrcp.pop %v1261
      %v1439 = vrcp.pop %v1262
      %v1440 = vrcp.pop %v1263
      %v1441 = vrcp.pop %v1264
      %v1442 = vrcp.pop %v1265
      %v1443 = vrcp.pop %v1266
      %v1444 = vrcp.pop %v1267
      %v1445 = vrcp.pop %v1268
      %v1446 = vmul.f32 %v1430, %v1438
      %v1447 = vmul.f32 %v1431, %v1439
      %v1448 = vmul.f32 %v1432, %v1440
      %v1449 = vmul.f32 %v1433, %v1441
      %v1450 = vmul.f32 %v1434, %v1442
      %v1451 = vmul.f32 %v1435, %v1443
      %v1452 = vmul.f32 %v1436, %v1444
      %v1453 = vmul.f32 %v1437, %v1445
      %1454 = vxpose.xlu0.b32.start [1/16] %v1446, 128
      %1455 = vxpose.xlu0.b32.cont [2/16] 0.0, 128
      %1456 = vxpose.xlu0.b32.cont [3/16] 0.0, 128
      %1457 = vxpose.xlu0.b32.cont [4/16] 0.0, 128
      %1458 = vxpose.xlu0.b32.cont [5/16] 0.0, 128
      %1459 = vxpose.xlu0.b32.cont [6/16] 0.0, 128
      %1460 = vxpose.xlu0.b32.cont [7/16] 0.0, 128
      %1461 = vxpose.xlu0.b32.cont [8/16] 0.0, 128
      %1462 = vxpose.xlu0.b32.cont [9/16] 0.0, 128
      %1463 = vxpose.xlu0.b32.cont [10/16] 0.0, 128
      %1464 = vxpose.xlu0.b32.cont [11/16] 0.0, 128
      %1465 = vxpose.xlu0.b32.cont [12/16] 0.0, 128
      %1466 = vxpose.xlu0.b32.cont [13/16] 0.0, 128
      %1467 = vxpose.xlu0.b32.cont [14/16] 0.0, 128
      %1468 = vxpose.xlu0.b32.cont [15/16] 0.0, 128
      %1469 = vxpose.xlu0.b32.end [16/16] 0.0, 128
      %v1470 = vpop.trf.xlu0
      %v1471 = vpop.trf.xlu0
      %v1472 = vpop.trf.xlu0
      %v1473 = vpop.trf.xlu0
      %v1474 = vpop.trf.xlu0
      %v1475 = vpop.trf.xlu0
      %v1476 = vpop.trf.xlu0
      %v1477 = vpop.trf.xlu0
      %v1478 = vpop.trf.xlu0
      %v1479 = vpop.trf.xlu0
      %v1480 = vpop.trf.xlu0
      %v1481 = vpop.trf.xlu0
      %v1482 = vpop.trf.xlu0
      %v1483 = vpop.trf.xlu0
      %v1484 = vpop.trf.xlu0
      %v1485 = vpop.trf.xlu0
      %1486 = vxpose.xlu0.b32.start [1/16] %v1447, 128
      %1487 = vxpose.xlu0.b32.cont [2/16] 0.0, 128
      %1488 = vxpose.xlu0.b32.cont [3/16] 0.0, 128
      %1489 = vxpose.xlu0.b32.cont [4/16] 0.0, 128
      %1490 = vxpose.xlu0.b32.cont [5/16] 0.0, 128
      %1491 = vxpose.xlu0.b32.cont [6/16] 0.0, 128
      %1492 = vxpose.xlu0.b32.cont [7/16] 0.0, 128
      %1493 = vxpose.xlu0.b32.cont [8/16] 0.0, 128
      %1494 = vxpose.xlu0.b32.cont [9/16] 0.0, 128
      %1495 = vxpose.xlu0.b32.cont [10/16] 0.0, 128
      %1496 = vxpose.xlu0.b32.cont [11/16] 0.0, 128
      %1497 = vxpose.xlu0.b32.cont [12/16] 0.0, 128
      %1498 = vxpose.xlu0.b32.cont [13/16] 0.0, 128
      %1499 = vxpose.xlu0.b32.cont [14/16] 0.0, 128
      %1500 = vxpose.xlu0.b32.cont [15/16] 0.0, 128
      %1501 = vxpose.xlu0.b32.end [16/16] 0.0, 128
      %v1502 = vpop.trf.xlu0
      %v1503 = vpop.trf.xlu0
      %v1504 = vpop.trf.xlu0
      %v1505 = vpop.trf.xlu0
      %v1506 = vpop.trf.xlu0
      %v1507 = vpop.trf.xlu0
      %v1508 = vpop.trf.xlu0
      %v1509 = vpop.trf.xlu0
      %v1510 = vpop.trf.xlu0
      %v1511 = vpop.trf.xlu0
      %v1512 = vpop.trf.xlu0
      %v1513 = vpop.trf.xlu0
      %v1514 = vpop.trf.xlu0
      %v1515 = vpop.trf.xlu0
      %v1516 = vpop.trf.xlu0
      %v1517 = vpop.trf.xlu0
      %1518 = vxpose.xlu0.b32.start [1/16] %v1448, 128
      %1519 = vxpose.xlu0.b32.cont [2/16] 0.0, 128
      %1520 = vxpose.xlu0.b32.cont [3/16] 0.0, 128
      %1521 = vxpose.xlu0.b32.cont [4/16] 0.0, 128
      %1522 = vxpose.xlu0.b32.cont [5/16] 0.0, 128
      %1523 = vxpose.xlu0.b32.cont [6/16] 0.0, 128
      %1524 = vxpose.xlu0.b32.cont [7/16] 0.0, 128
      %1525 = vxpose.xlu0.b32.cont [8/16] 0.0, 128
      %1526 = vxpose.xlu0.b32.cont [9/16] 0.0, 128
      %1527 = vxpose.xlu0.b32.cont [10/16] 0.0, 128
      %1528 = vxpose.xlu0.b32.cont [11/16] 0.0, 128
      %1529 = vxpose.xlu0.b32.cont [12/16] 0.0, 128
      %1530 = vxpose.xlu0.b32.cont [13/16] 0.0, 128
      %1531 = vxpose.xlu0.b32.cont [14/16] 0.0, 128
      %1532 = vxpose.xlu0.b32.cont [15/16] 0.0, 128
      %1533 = vxpose.xlu0.b32.end [16/16] 0.0, 128
      %v1534 = vpop.trf.xlu0
      %v1535 = vpop.trf.xlu0
      %v1536 = vpop.trf.xlu0
      %v1537 = vpop.trf.xlu0
      %v1538 = vpop.trf.xlu0
      %v1539 = vpop.trf.xlu0
      %v1540 = vpop.trf.xlu0
      %v1541 = vpop.trf.xlu0
      %v1542 = vpop.trf.xlu0
      %v1543 = vpop.trf.xlu0
      %v1544 = vpop.trf.xlu0
      %v1545 = vpop.trf.xlu0
      %v1546 = vpop.trf.xlu0
      %v1547 = vpop.trf.xlu0
      %v1548 = vpop.trf.xlu0
      %v1549 = vpop.trf.xlu0
      %1550 = vxpose.xlu0.b32.start [1/16] %v1449, 128
      %1551 = vxpose.xlu0.b32.cont [2/16] 0.0, 128
      %1552 = vxpose.xlu0.b32.cont [3/16] 0.0, 128
      %1553 = vxpose.xlu0.b32.cont [4/16] 0.0, 128
      %1554 = vxpose.xlu0.b32.cont [5/16] 0.0, 128
      %1555 = vxpose.xlu0.b32.cont [6/16] 0.0, 128
      %1556 = vxpose.xlu0.b32.cont [7/16] 0.0, 128
      %1557 = vxpose.xlu0.b32.cont [8/16] 0.0, 128
      %1558 = vxpose.xlu0.b32.cont [9/16] 0.0, 128
      %1559 = vxpose.xlu0.b32.cont [10/16] 0.0, 128
      %1560 = vxpose.xlu0.b32.cont [11/16] 0.0, 128
      %1561 = vxpose.xlu0.b32.cont [12/16] 0.0, 128
      %1562 = vxpose.xlu0.b32.cont [13/16] 0.0, 128
      %1563 = vxpose.xlu0.b32.cont [14/16] 0.0, 128
      %1564 = vxpose.xlu0.b32.cont [15/16] 0.0, 128
      %1565 = vxpose.xlu0.b32.end [16/16] 0.0, 128
      %v1566 = vpop.trf.xlu0
      %v1567 = vpop.trf.xlu0
      %v1568 = vpop.trf.xlu0
      %v1569 = vpop.trf.xlu0
      %v1570 = vpop.trf.xlu0
      %v1571 = vpop.trf.xlu0
      %v1572 = vpop.trf.xlu0
      %v1573 = vpop.trf.xlu0
      %v1574 = vpop.trf.xlu0
      %v1575 = vpop.trf.xlu0
      %v1576 = vpop.trf.xlu0
      %v1577 = vpop.trf.xlu0
      %v1578 = vpop.trf.xlu0
      %v1579 = vpop.trf.xlu0
      %v1580 = vpop.trf.xlu0
      %v1581 = vpop.trf.xlu0
      %1582 = vxpose.xlu0.b32.start [1/16] %v1450, 128
      %1583 = vxpose.xlu0.b32.cont [2/16] 0.0, 128
      %1584 = vxpose.xlu0.b32.cont [3/16] 0.0, 128
      %1585 = vxpose.xlu0.b32.cont [4/16] 0.0, 128
      %1586 = vxpose.xlu0.b32.cont [5/16] 0.0, 128
      %1587 = vxpose.xlu0.b32.cont [6/16] 0.0, 128
      %1588 = vxpose.xlu0.b32.cont [7/16] 0.0, 128
      %1589 = vxpose.xlu0.b32.cont [8/16] 0.0, 128
      %1590 = vxpose.xlu0.b32.cont [9/16] 0.0, 128
      %1591 = vxpose.xlu0.b32.cont [10/16] 0.0, 128
      %1592 = vxpose.xlu0.b32.cont [11/16] 0.0, 128
      %1593 = vxpose.xlu0.b32.cont [12/16] 0.0, 128
      %1594 = vxpose.xlu0.b32.cont [13/16] 0.0, 128
      %1595 = vxpose.xlu0.b32.cont [14/16] 0.0, 128
      %1596 = vxpose.xlu0.b32.cont [15/16] 0.0, 128
      %1597 = vxpose.xlu0.b32.end [16/16] 0.0, 128
      %v1598 = vpop.trf.xlu0
      %v1599 = vpop.trf.xlu0
      %v1600 = vpop.trf.xlu0
      %v1601 = vpop.trf.xlu0
      %v1602 = vpop.trf.xlu0
      %v1603 = vpop.trf.xlu0
      %v1604 = vpop.trf.xlu0
      %v1605 = vpop.trf.xlu0
      %v1606 = vpop.trf.xlu0
      %v1607 = vpop.trf.xlu0
      %v1608 = vpop.trf.xlu0
      %v1609 = vpop.trf.xlu0
      %v1610 = vpop.trf.xlu0
      %v1611 = vpop.trf.xlu0
      %v1612 = vpop.trf.xlu0
      %v1613 = vpop.trf.xlu0
      %1614 = vxpose.xlu0.b32.start [1/16] %v1451, 128
      %1615 = vxpose.xlu0.b32.cont [2/16] 0.0, 128
      %1616 = vxpose.xlu0.b32.cont [3/16] 0.0, 128
      %1617 = vxpose.xlu0.b32.cont [4/16] 0.0, 128
      %1618 = vxpose.xlu0.b32.cont [5/16] 0.0, 128
      %1619 = vxpose.xlu0.b32.cont [6/16] 0.0, 128
      %1620 = vxpose.xlu0.b32.cont [7/16] 0.0, 128
      %1621 = vxpose.xlu0.b32.cont [8/16] 0.0, 128
      %1622 = vxpose.xlu0.b32.cont [9/16] 0.0, 128
      %1623 = vxpose.xlu0.b32.cont [10/16] 0.0, 128
      %1624 = vxpose.xlu0.b32.cont [11/16] 0.0, 128
      %1625 = vxpose.xlu0.b32.cont [12/16] 0.0, 128
      %1626 = vxpose.xlu0.b32.cont [13/16] 0.0, 128
      %1627 = vxpose.xlu0.b32.cont [14/16] 0.0, 128
      %1628 = vxpose.xlu0.b32.cont [15/16] 0.0, 128
      %1629 = vxpose.xlu0.b32.end [16/16] 0.0, 128
      %v1630 = vpop.trf.xlu0
      %v1631 = vpop.trf.xlu0
      %v1632 = vpop.trf.xlu0
      %v1633 = vpop.trf.xlu0
      %v1634 = vpop.trf.xlu0
      %v1635 = vpop.trf.xlu0
      %v1636 = vpop.trf.xlu0
      %v1637 = vpop.trf.xlu0
      %v1638 = vpop.trf.xlu0
      %v1639 = vpop.trf.xlu0
      %v1640 = vpop.trf.xlu0
      %v1641 = vpop.trf.xlu0
      %v1642 = vpop.trf.xlu0
      %v1643 = vpop.trf.xlu0
      %v1644 = vpop.trf.xlu0
      %v1645 = vpop.trf.xlu0
      %1646 = vxpose.xlu0.b32.start [1/16] %v1452, 128
      %1647 = vxpose.xlu0.b32.cont [2/16] 0.0, 128
      %1648 = vxpose.xlu0.b32.cont [3/16] 0.0, 128
      %1649 = vxpose.xlu0.b32.cont [4/16] 0.0, 128
      %1650 = vxpose.xlu0.b32.cont [5/16] 0.0, 128
      %1651 = vxpose.xlu0.b32.cont [6/16] 0.0, 128
      %1652 = vxpose.xlu0.b32.cont [7/16] 0.0, 128
      %1653 = vxpose.xlu0.b32.cont [8/16] 0.0, 128
      %1654 = vxpose.xlu0.b32.cont [9/16] 0.0, 128
      %1655 = vxpose.xlu0.b32.cont [10/16] 0.0, 128
      %1656 = vxpose.xlu0.b32.cont [11/16] 0.0, 128
      %1657 = vxpose.xlu0.b32.cont [12/16] 0.0, 128
      %1658 = vxpose.xlu0.b32.cont [13/16] 0.0, 128
      %1659 = vxpose.xlu0.b32.cont [14/16] 0.0, 128
      %1660 = vxpose.xlu0.b32.cont [15/16] 0.0, 128
      %1661 = vxpose.xlu0.b32.end [16/16] 0.0, 128
      %v1662 = vpop.trf.xlu0
      %v1663 = vpop.trf.xlu0
      %v1664 = vpop.trf.xlu0
      %v1665 = vpop.trf.xlu0
      %v1666 = vpop.trf.xlu0
      %v1667 = vpop.trf.xlu0
      %v1668 = vpop.trf.xlu0
      %v1669 = vpop.trf.xlu0
      %v1670 = vpop.trf.xlu0
      %v1671 = vpop.trf.xlu0
      %v1672 = vpop.trf.xlu0
      %v1673 = vpop.trf.xlu0
      %v1674 = vpop.trf.xlu0
      %v1675 = vpop.trf.xlu0
      %v1676 = vpop.trf.xlu0
      %v1677 = vpop.trf.xlu0
      %1678 = vxpose.xlu0.b32.start [1/16] %v1453, 128
      %1679 = vxpose.xlu0.b32.cont [2/16] 0.0, 128
      %1680 = vxpose.xlu0.b32.cont [3/16] 0.0, 128
      %1681 = vxpose.xlu0.b32.cont [4/16] 0.0, 128
      %1682 = vxpose.xlu0.b32.cont [5/16] 0.0, 128
      %1683 = vxpose.xlu0.b32.cont [6/16] 0.0, 128
      %1684 = vxpose.xlu0.b32.cont [7/16] 0.0, 128
      %1685 = vxpose.xlu0.b32.cont [8/16] 0.0, 128
      %1686 = vxpose.xlu0.b32.cont [9/16] 0.0, 128
      %1687 = vxpose.xlu0.b32.cont [10/16] 0.0, 128
      %1688 = vxpose.xlu0.b32.cont [11/16] 0.0, 128
      %1689 = vxpose.xlu0.b32.cont [12/16] 0.0, 128
      %1690 = vxpose.xlu0.b32.cont [13/16] 0.0, 128
      %1691 = vxpose.xlu0.b32.cont [14/16] 0.0, 128
      %1692 = vxpose.xlu0.b32.cont [15/16] 0.0, 128
      %1693 = vxpose.xlu0.b32.end [16/16] 0.0, 128
      %v1694 = vpop.trf.xlu0
      %v1695 = vpop.trf.xlu0
      %v1696 = vpop.trf.xlu0
      %v1697 = vpop.trf.xlu0
      %v1698 = vpop.trf.xlu0
      %v1699 = vpop.trf.xlu0
      %v1700 = vpop.trf.xlu0
      %v1701 = vpop.trf.xlu0
      %v1702 = vpop.trf.xlu0
      %v1703 = vpop.trf.xlu0
      %v1704 = vpop.trf.xlu0
      %v1705 = vpop.trf.xlu0
      %v1706 = vpop.trf.xlu0
      %v1707 = vpop.trf.xlu0
      %v1708 = vpop.trf.xlu0
      %v1709 = vpop.trf.xlu0
      %1718 = vst [vmem:[#allocation1] ss:$2 sm:$0xff] %v1470
      %s1719 = scalar_lea.vmem [#allocation1], 1
      %1720 = vst [vmem:[%s1719] ss:$2 sm:$0xff] %v1502
      %s1721 = scalar_lea.vmem [#allocation1], 16
      %1722 = vst [vmem:[%s1721] ss:$2 sm:$0xff] %v1534
      %s1723 = scalar_lea.vmem [#allocation1], 17
      %1724 = vst [vmem:[%s1723] ss:$2 sm:$0xff] %v1566
      %s1725 = scalar_lea.vmem [#allocation1], 32
      %1726 = vst [vmem:[%s1725] ss:$2 sm:$0xff] %v1598
      %s1727 = scalar_lea.vmem [#allocation1], 33
      %1728 = vst [vmem:[%s1727] ss:$2 sm:$0xff] %v1630
      %s1729 = scalar_lea.vmem [#allocation1], 48
      %1730 = vst [vmem:[%s1729] ss:$2 sm:$0xff] %v1662
      %s1731 = scalar_lea.vmem [#allocation1], 49
      %1732 = vst [vmem:[%s1731] ss:$2 sm:$0xff] %v1694
      %v1733 = vld.sshfl [vmem:[#allocation1] sm:$0xff pattern:$0x75316420]
      %v1734 = vld.sshfl [vmem:[#allocation1 + $0x10] sm:$0xff pattern:$0x75316420]
      %v1735 = vld.sshfl [vmem:[#allocation1 + $0x20] sm:$0xff pattern:$0x75316420]
      %v1736 = vld.sshfl [vmem:[#allocation1 + $0x30] sm:$0xff pattern:$0x75316420]
      %v1741 = vpack.c.bf16 %v1734, %v1733
      %v1742 = vpack.c.bf16 %v1736, %v1735
      %1744 = vset.pattern.permute.xlu0 0
      %1745 = vperm.xlu0 %1744, %v258
      %v1746 = vpop.permute.xlu0 %1745
      %1749 = vset.pattern.permute.xlu0 0
      %1750 = vperm.xlu0 %1749, %v259
      %v1751 = vpop.permute.xlu0 %1750
      %1754 = vset.pattern.permute.xlu0 0
      %1755 = vperm.xlu0 %1754, %v260
      %v1756 = vpop.permute.xlu0 %1755
      %1759 = vset.pattern.permute.xlu0 0
      %1760 = vperm.xlu0 %1759, %v261
      %v1761 = vpop.permute.xlu0 %1760
      %v1767 = vunpack.c.l.b16 %v242
      %v1768 = vunpack.c.l.b16 %v243
      %v1769 = vunpack.c.l.b16 %v244
      %v1770 = vunpack.c.l.b16 %v245
      %v1771 = vpack.c.b16 %v1768, %v1767
      %v1772 = vpack.c.b16 %v1770, %v1769
      %v1774 = vsel %vm364, %v1771, 0
      %v1777 = vsel %vm364, %v1772, 0
      %1779 = vmatpush.bf16.msra.mxu0 0
      %1780 = vmatpush.bf16.msra.mxu0 0
      %1781 = vmatpush.bf16.msra.mxu0 0
      %1782 = vmatpush.bf16.msra.mxu0 0
      %1783 = vmatpush.bf16.msra.mxu0 0
      %1784 = vmatpush.bf16.msra.mxu0 0
      %1785 = vmatpush.bf16.msra.mxu0 %v1742
      %1786 = vmatpush.bf16.msra.mxu0 %v1741
      %1787 = vmatmul.bf16.gmra.mxu0 %v1774
      %v1788 = vpop.f32.mrf.mxu0
      %v1789 = vadd.f32 %v1746, %v1788
      %v1790 = vpop.f32.mrf.mxu0
      %v1791 = vadd.f32 %v1751, %v1790
      %1792 = vmatmul.bf16.gmra.mxu0 %v1777
      %v1793 = vpop.f32.mrf.mxu0
      %v1794 = vadd.f32 %v1756, %v1793
      %v1795 = vpop.f32.mrf.mxu0
      %v1796 = vadd.f32 %v1761, %v1795
      %1797 = vdwg.mxu0
      %1798 = vst.msk [vmem:[%s224] sm:$0xff] %vm1156, %v1789
      %1799 = vst.msk [vmem:[%s224 + $0x8] sm:$0xff] %vm1156, %v1791
      %1800 = vst.msk [vmem:[%s224 + $0x10] sm:$0xff] %vm1156, %v1794
      %1801 = vst.msk [vmem:[%s224 + $0x18] sm:$0xff] %vm1156, %v1796
      %p1802 = scmp.lt.s32.totalorder %s16, 1
      %s1803 = scalar_select %p1802, %s16, 1
      %s1804 = smul.addr %s1803, 4
      %s1805 = smul.addr %s1804, 8
      %s1806 = scalar_lea.vmem %s5, %s1805
      // Predicated region
      $region41: #{tpu_custom_call.1} parent=39 // pred_check
        %p1807 = pneg %p144
      $region42: #{tpu_custom_call.1} parent=39 // pred_check_branch
        %1809 = sbr.rel (%p1807) target = $region44
      $region43: #{tpu_custom_call.1} parent=39 // pred_region
        _
      $region44: #{tpu_custom_call.1} parent=39 // pred_fallthru
        _
    $region40: #{tpu_custom_call.1} parent=5 // pred_fallthru
      _
    %p1810 = scmp.le.s32.totalorder 2, %s11
    // Predicated region
    $region45: #{tpu_custom_call.1} parent=5 // pred_check
      %p1811 = pneg %p1810
    $region46: #{tpu_custom_call.1} parent=5 // pred_check_branch
      %1813 = sbr.rel (%p1811) target = $region48
    $region47: #{tpu_custom_call.1} parent=5 // pred_region
      %s1814 = ssub.s32 %s11, 2
      // Predicated region
      $region49: #{tpu_custom_call.1} parent=47 // pred_check
        %p1815 = pneg %p150
      $region50: #{tpu_custom_call.1} parent=47 // pred_check_branch
        %1817 = sbr.rel (%p1815) target = $region52
      $region51: #{tpu_custom_call.1} parent=47 // pred_region
        %p1818 = scmp.lt.s32.totalorder %s17, 1
        %s1819 = scalar_select %p1818, %s17, 1
        %s1820 = smul.addr %s1819, 4
        %s1821 = smul.addr %s1820, 8
        %s1822 = scalar_lea.vmem %s5, %s1821
      $region52: #{tpu_custom_call.1} parent=47 // pred_fallthru
        _
    $region48: #{tpu_custom_call.1} parent=5 // pred_fallthru
      _
  $region6: #{tpu_custom_call.1} parent=0 // loop_footer
    %s15 = sadd.s32 1, %s11
  $region7: #{tpu_custom_call.1} parent=0 // loop_footer_branch
    %10 = sbr.rel target = $region3
  $region8: #{tpu_custom_call.1} parent=0 // loop_exit
    _

// kernel: tpu_custom_call.1
$region0: #{tpu_custom_call.1}
  #allocation0 [shape = 'u32[]', space=smem, size = 0x4, offset = 0x4, fixed_abs, tag = 'smem constant byte address 0x4 - core index']
  #allocation1 [shape = 'u32[72,128]{1,0:T(1,128)}', space=vmem, size = 0x9000, scoped, tag = 'internal scratch']
  #allocation2 [shape = 'bf16[8,4,8]{2,1,0:T(4,128)(2,1)}', space=vmem, size = 0x2000, scoped, tag = 'scratch operand']
  #allocation3 [shape = 'bf16[8,8,4]{2,1,0:T(8,128)(2,1)}', space=vmem, size = 0x4000, scoped, tag = 'scratch operand']
  %s0 = inlined_call_operand.vmem [shape: bf16[2,32,8], index: 0, kind: input, shape index: {}]
  %s1 = inlined_call_operand.vmem [shape: bf16[96,32], index: 1, kind: input, shape index: {}]
  %s2 = inlined_call_operand.vmem [shape: f32[96,1], index: 2, kind: input, shape index: {}]
  %s3 = inlined_call_operand.vmem [shape: bf16[32,32], index: 3, kind: input, shape index: {}]
  %s4 = inlined_call_operand.vmem [shape: f32[32,1], index: 4, kind: input, shape index: {}]
  %s5 = inlined_call_operand.vmem [shape: f32[2,32,8], index: 5, kind: output, shape index: {}]
  %s6 = sld [smem:[#allocation0]]
  $region53: #{tpu_custom_call.1} parent=0
    _
  %s8 = ssub.s32 1, %s6
  %s9 = scalar_select 0, %s8, %s6
  loop: start=0, step=1, limit=4
  $region2: #{tpu_custom_call.1} parent=0 // loop_pre_header
    _
  $region3: #{tpu_custom_call.1} parent=0 // loop_header
    %s11 = sphi 0, %s15
    %p12 = scmp.ge.s32.totalorder %s11, 4
    %s21 = sphi 0, %s23
    %s24 = sphi 0, %s21
    %s25 = sphi 0, %s24
    %s41 = sphi 0, %s25
    %s45 = sphi 0, %s45
    %s47 = sphi 0, %s45
    %s48 = sphi 0, %s47
    %s62 = sphi 0, %s48
    %s66 = sphi 0, %s66
    %s68 = sphi 0, %s66
    %s69 = sphi 0, %s68
    %s83 = sphi 0, %s69
    %s87 = sphi 0, %s87
    %s89 = sphi 0, %s87
    %s90 = sphi 0, %s89
    %s104 = sphi 0, %s90
    %s108 = sphi 0, %s108
    %s110 = sphi 0, %s108
    %s111 = sphi 0, %s110
    %s125 = sphi 0, %s111
    %s131 = sphi 0, %s133
    %s134 = sphi 0, %s131
    %s135 = sphi 0, %s134
    %s151 = sphi 0, %s135
  $region4: #{tpu_custom_call.1} parent=0 // loop_header_branch
    %14 = sbr.rel (%p12) target = $region8
  $region5: #{tpu_custom_call.1} parent=0 // loop_body
    %s16 = ssub.s32 %s11, 1
    %s17 = ssub.s32 %s11, 2
    %s18 = sadd.s32 %s11, 1
    %s19 = ssub.s32 %s11, %s18
    %p20 = scmp.eq.s32.totalorder %s19, 0
    %s22 = sadd.s32 %s21, 1
    %s23 = scalar_select %p20, %s21, %s22
    %p26 = pneg %p20
    %p27 = scmp.eq.s32.totalorder %s11, 1
    %p28 = por %p26, %p27
    %p29 = scmp.ne.s32.totalorder %s21, %s24
    %p30 = scmp.eq.s32.totalorder %s11, 0
    %p31 = por %p29, %p30
    %p32 = scmp.ne.s32.totalorder %s21, %s24
    %p33 = scmp.eq.s32.totalorder %s16, 1
    %p34 = por %p32, %p33
    %p35 = scmp.ne.s32.totalorder %s24, %s25
    %p36 = scmp.eq.s32.totalorder %s16, 0
    %p37 = por %p35, %p36
    %p38 = scmp.ne.s32.totalorder %s24, %s25
    %p39 = scmp.eq.s32.totalorder %s17, 1
    %p40 = por %p38, %p39
    %p42 = scmp.ne.s32.totalorder %s25, %s41
    %p43 = scmp.eq.s32.totalorder %s17, 0
    %p44 = por %p42, %p43
    %s46 = sadd.s32 %s45, 1
    %p49 = scmp.eq.s32.totalorder %s11, 1
    %p50 = scmp.ne.s32.totalorder %s45, %s47
    %p51 = scmp.eq.s32.totalorder %s11, 0
    %p52 = por %p50, %p51
    %p53 = scmp.ne.s32.totalorder %s45, %s47
    %p54 = scmp.eq.s32.totalorder %s16, 1
    %p55 = por %p53, %p54
    %p56 = scmp.ne.s32.totalorder %s47, %s48
    %p57 = scmp.eq.s32.totalorder %s16, 0
    %p58 = por %p56, %p57
    %p59 = scmp.ne.s32.totalorder %s47, %s48
    %p60 = scmp.eq.s32.totalorder %s17, 1
    %p61 = por %p59, %p60
    %p63 = scmp.ne.s32.totalorder %s48, %s62
    %p64 = scmp.eq.s32.totalorder %s17, 0
    %p65 = por %p63, %p64
    %s67 = sadd.s32 %s66, 1
    %p70 = scmp.eq.s32.totalorder %s11, 1
    %p71 = scmp.ne.s32.totalorder %s66, %s68
    %p72 = scmp.eq.s32.totalorder %s11, 0
    %p73 = por %p71, %p72
    %p74 = scmp.ne.s32.totalorder %s66, %s68
    %p75 = scmp.eq.s32.totalorder %s16, 1
    %p76 = por %p74, %p75
    %p77 = scmp.ne.s32.totalorder %s68, %s69
    %p78 = scmp.eq.s32.totalorder %s16, 0
    %p79 = por %p77, %p78
    %p80 = scmp.ne.s32.totalorder %s68, %s69
    %p81 = scmp.eq.s32.totalorder %s17, 1
    %p82 = por %p80, %p81
    %p84 = scmp.ne.s32.totalorder %s69, %s83
    %p85 = scmp.eq.s32.totalorder %s17, 0
    %p86 = por %p84, %p85
    %s88 = sadd.s32 %s87, 1
    %p91 = scmp.eq.s32.totalorder %s11, 1
    %p92 = scmp.ne.s32.totalorder %s87, %s89
    %p93 = scmp.eq.s32.totalorder %s11, 0
    %p94 = por %p92, %p93
    %p95 = scmp.ne.s32.totalorder %s87, %s89
    %p96 = scmp.eq.s32.totalorder %s16, 1
    %p97 = por %p95, %p96
    %p98 = scmp.ne.s32.totalorder %s89, %s90
    %p99 = scmp.eq.s32.totalorder %s16, 0
    %p100 = por %p98, %p99
    %p101 = scmp.ne.s32.totalorder %s89, %s90
    %p102 = scmp.eq.s32.totalorder %s17, 1
    %p103 = por %p101, %p102
    %p105 = scmp.ne.s32.totalorder %s90, %s104
    %p106 = scmp.eq.s32.totalorder %s17, 0
    %p107 = por %p105, %p106
    %s109 = sadd.s32 %s108, 1
    %p112 = scmp.eq.s32.totalorder %s11, 1
    %p113 = scmp.ne.s32.totalorder %s108, %s110
    %p114 = scmp.eq.s32.totalorder %s11, 0
    %p115 = por %p113, %p114
    %p116 = scmp.ne.s32.totalorder %s108, %s110
    %p117 = scmp.eq.s32.totalorder %s16, 1
    %p118 = por %p116, %p117
    %p119 = scmp.ne.s32.totalorder %s110, %s111
    %p120 = scmp.eq.s32.totalorder %s16, 0
    %p121 = por %p119, %p120
    %p122 = scmp.ne.s32.totalorder %s110, %s111
    %p123 = scmp.eq.s32.totalorder %s17, 1
    %p124 = por %p122, %p123
    %p126 = scmp.ne.s32.totalorder %s111, %s125
    %p127 = scmp.eq.s32.totalorder %s17, 0
    %p128 = por %p126, %p127
    %s129 = ssub.s32 %s11, %s18
    %p130 = scmp.eq.s32.totalorder %s129, 0
    %s132 = sadd.s32 %s131, 1
    %s133 = scalar_select %p130, %s131, %s132
    %p136 = pneg %p130
    %p137 = scmp.eq.s32.totalorder %s11, 1
    %p138 = por %p136, %p137
    %p139 = scmp.ne.s32.totalorder %s131, %s134
    %p140 = scmp.eq.s32.totalorder %s11, 0
    %p141 = por %p139, %p140
    %p142 = scmp.ne.s32.totalorder %s131, %s134
    %p143 = scmp.eq.s32.totalorder %s16, 1
    %p144 = por %p142, %p143
    %p145 = scmp.ne.s32.totalorder %s134, %s135
    %p146 = scmp.eq.s32.totalorder %s16, 0
    %p147 = por %p145, %p146
    %p148 = scmp.ne.s32.totalorder %s134, %s135
    %p149 = scmp.eq.s32.totalorder %s17, 1
    %p150 = por %p148, %p149
    %p152 = scmp.ne.s32.totalorder %s135, %s151
    %p153 = scmp.eq.s32.totalorder %s17, 0
    %p154 = por %p152, %p153
    %p155 = scmp.le.s32.totalorder 1, %s11
    %p156 = scmp.lt.s32.totalorder %s11, 3
    %p157 = pnand %p155, %p156
    %p158 = pneg %p157
    // Predicated region
    $region9: #{tpu_custom_call.1} parent=5 // pred_check
      _
    $region10: #{tpu_custom_call.1} parent=5 // pred_check_branch
      %160 = sbr.rel (%p157) target = $region12
    $region11: #{tpu_custom_call.1} parent=5 // pred_region
      %s161 = ssub.s32 %s11, 1
      // Predicated region
      $region13: #{tpu_custom_call.1} parent=11 // pred_check
        %p162 = pneg %p58
      $region14: #{tpu_custom_call.1} parent=11 // pred_check_branch
        %164 = sbr.rel (%p162) target = $region16
      $region15: #{tpu_custom_call.1} parent=11 // pred_region
        _
      $region16: #{tpu_custom_call.1} parent=11 // pred_fallthru
        _
      // Predicated region
      $region17: #{tpu_custom_call.1} parent=11 // pred_check
        %p165 = pneg %p79
      $region18: #{tpu_custom_call.1} parent=11 // pred_check_branch
        %167 = sbr.rel (%p165) target = $region20
      $region19: #{tpu_custom_call.1} parent=11 // pred_region
        _
      $region20: #{tpu_custom_call.1} parent=11 // pred_fallthru
        _
      // Predicated region
      $region21: #{tpu_custom_call.1} parent=11 // pred_check
        %p168 = pneg %p100
      $region22: #{tpu_custom_call.1} parent=11 // pred_check_branch
        %170 = sbr.rel (%p168) target = $region24
      $region23: #{tpu_custom_call.1} parent=11 // pred_region
        _
      $region24: #{tpu_custom_call.1} parent=11 // pred_fallthru
        _
      // Predicated region
      $region25: #{tpu_custom_call.1} parent=11 // pred_check
        %p171 = pneg %p121
      $region26: #{tpu_custom_call.1} parent=11 // pred_check_branch
        %173 = sbr.rel (%p171) target = $region28
      $region27: #{tpu_custom_call.1} parent=11 // pred_region
        _
      $region28: #{tpu_custom_call.1} parent=11 // pred_fallthru
        _
    $region12: #{tpu_custom_call.1} parent=5 // pred_fallthru
      _
    %p174 = scmp.lt.s32.totalorder %s11, 2
    // Predicated region
    $region29: #{tpu_custom_call.1} parent=5 // pred_check
      %p175 = pneg %p174
    $region30: #{tpu_custom_call.1} parent=5 // pred_check_branch
      %177 = sbr.rel (%p175) target = $region32
    $region31: #{tpu_custom_call.1} parent=5 // pred_region
      // Predicated region
      $region33: #{tpu_custom_call.1} parent=31 // pred_check
        %p178 = pneg %p31
      $region34: #{tpu_custom_call.1} parent=31 // pred_check_branch
        %180 = sbr.rel (%p178) target = $region36
      $region35: #{tpu_custom_call.1} parent=31 // pred_region
        %p181 = scmp.lt.s32.totalorder %s11, 1
        %s182 = scalar_select %p181, %s11, 1
        %s183 = smul.addr %s182, 4
        %s184 = smul.addr %s183, 4
        %s185 = scalar_lea.vmem %s0, %s184
      $region36: #{tpu_custom_call.1} parent=31 // pred_fallthru
        _
    $region32: #{tpu_custom_call.1} parent=5 // pred_fallthru
      _
    %p186 = scmp.le.s32.totalorder 1, %s11
    %p187 = scmp.lt.s32.totalorder %s11, 3
    %p188 = pnand %p186, %p187
    %p189 = pneg %p188
    // Predicated region
    $region37: #{tpu_custom_call.1} parent=5 // pred_check
      _
    $region38: #{tpu_custom_call.1} parent=5 // pred_check_branch
      %191 = sbr.rel (%p188) target = $region40
    $region39: #{tpu_custom_call.1} parent=5 // pred_region
      %s192 = ssub.s32 %s11, 1
      %p193 = scmp.lt.s32.totalorder %s16, 1
      %s194 = scalar_select %p193, %s16, 1
      %s195 = smul.addr %s194, 4
      %s196 = smul.addr %s195, 4
      %s197 = scalar_lea.vmem %s0, %s196
      %p198 = pneg %p37
      %p199 = pneg %p34
      %p200 = pneg %p58
      %p201 = pneg %p55
      %p202 = pneg %p79
      %p203 = pneg %p76
      %p204 = pneg %p100
      %p205 = pneg %p97
      %p206 = pneg %p121
      %p207 = pneg %p118
      %p208 = pneg %p147
      %p209 = pneg %p144
      %p210 = scmp.lt.s32.totalorder %s16, 1
      %s211 = scalar_select %p210, %s16, 1
      %s212 = smul.addr %s211, 4
      %s213 = smul.addr %s212, 8
      %s214 = scalar_lea.vmem %s5, %s213
      %p215 = scmp.lt.s32.totalorder %s16, 1
      %s216 = scalar_select %p215, %s16, 1
      %s217 = smul.addr %s216, 4
      %s218 = smul.addr %s217, 4
      %s219 = scalar_lea.vmem %s0, %s218
      %p220 = scmp.lt.s32.totalorder %s16, 1
      %s221 = scalar_select %p220, %s16, 1
      %s222 = smul.addr %s221, 4
      %s223 = smul.addr %s222, 8
      %s224 = scalar_lea.vmem %s5, %s223
      %v226 = vld [vmem:[%s219] sm:$0xf]
      %v227 = vld [vmem:[%s219 + $0x4] sm:$0xf]
      %v228 = vld [vmem:[%s219 + $0x8] sm:$0xf]
      %v229 = vld [vmem:[%s219 + $0xc] sm:$0xf]
      %v230 = vld [vmem:[%s1] sm:$0xf]
      %v231 = vld [vmem:[%s1 + $0x4] sm:$0xf]
      %v232 = vld [vmem:[%s1 + $0x8] sm:$0xf]
      %v233 = vld [vmem:[%s1 + $0xc] sm:$0xf]
      %v234 = vld [vmem:[%s1 + $0x10] sm:$0xf]
      %v235 = vld [vmem:[%s1 + $0x14] sm:$0xf]
      %v236 = vld [vmem:[%s1 + $0x18] sm:$0xf]
      %v237 = vld [vmem:[%s1 + $0x1c] sm:$0xf]
      %v238 = vld [vmem:[%s1 + $0x20] sm:$0xf]
      %v239 = vld [vmem:[%s1 + $0x24] sm:$0xf]
      %v240 = vld [vmem:[%s1 + $0x28] sm:$0xf]
      %v241 = vld [vmem:[%s1 + $0x2c] sm:$0xf]
      %v242 = vld [vmem:[%s3] sm:$0xf]
      %v243 = vld [vmem:[%s3 + $0x4] sm:$0xf]
      %v244 = vld [vmem:[%s3 + $0x8] sm:$0xf]
      %v245 = vld [vmem:[%s3 + $0xc] sm:$0xf]
      %v246 = vld [vmem:[%s2] sm:$0xff]
      %v247 = vld [vmem:[%s2 + $0x8] sm:$0xff]
      %v248 = vld [vmem:[%s2 + $0x10] sm:$0xff]
      %v249 = vld [vmem:[%s2 + $0x18] sm:$0xff]
      %v250 = vld [vmem:[%s2 + $0x20] sm:$0xff]
      %v251 = vld [vmem:[%s2 + $0x28] sm:$0xff]
      %v252 = vld [vmem:[%s2 + $0x30] sm:$0xff]
      %v253 = vld [vmem:[%s2 + $0x38] sm:$0xff]
      %v254 = vld [vmem:[%s2 + $0x40] sm:$0xff]
      %v255 = vld [vmem:[%s2 + $0x48] sm:$0xff]
      %v256 = vld [vmem:[%s2 + $0x50] sm:$0xff]
      %v257 = vld [vmem:[%s2 + $0x58] sm:$0xff]
      %v258 = vld [vmem:[%s4] sm:$0xff]
      %v259 = vld [vmem:[%s4 + $0x8] sm:$0xff]
      %v260 = vld [vmem:[%s4 + $0x10] sm:$0xff]
      %v261 = vld [vmem:[%s4 + $0x18] sm:$0xff]
      %263 = vset.pattern.permute.xlu0 0
      %264 = vperm.xlu0 %263, %v246
      %v265 = vpop.permute.xlu0 %264
      %268 = vset.pattern.permute.xlu0 0
      %269 = vperm.xlu0 %268, %v247
      %v270 = vpop.permute.xlu0 %269
      %273 = vset.pattern.permute.xlu0 0
      %274 = vperm.xlu0 %273, %v248
      %v275 = vpop.permute.xlu0 %274
      %278 = vset.pattern.permute.xlu0 0
      %279 = vperm.xlu0 %278, %v249
      %v280 = vpop.permute.xlu0 %279
      %283 = vset.pattern.permute.xlu0 0
      %284 = vperm.xlu0 %283, %v250
      %v285 = vpop.permute.xlu0 %284
      %288 = vset.pattern.permute.xlu0 0
      %289 = vperm.xlu0 %288, %v251
      %v290 = vpop.permute.xlu0 %289
      %293 = vset.pattern.permute.xlu0 0
      %294 = vperm.xlu0 %293, %v252
      %v295 = vpop.permute.xlu0 %294
      %298 = vset.pattern.permute.xlu0 0
      %299 = vperm.xlu0 %298, %v253
      %v300 = vpop.permute.xlu0 %299
      %303 = vset.pattern.permute.xlu0 0
      %304 = vperm.xlu0 %303, %v254
      %v305 = vpop.permute.xlu0 %304
      %308 = vset.pattern.permute.xlu0 0
      %309 = vperm.xlu0 %308, %v255
      %v310 = vpop.permute.xlu0 %309
      %313 = vset.pattern.permute.xlu0 0
      %314 = vperm.xlu0 %313, %v256
      %v315 = vpop.permute.xlu0 %314
      %318 = vset.pattern.permute.xlu0 0
      %319 = vperm.xlu0 %318, %v257
      %v320 = vpop.permute.xlu0 %319
      %v334 = vunpack.c.l.b16 %v230
      %v335 = vunpack.c.l.b16 %v231
      %v336 = vunpack.c.l.b16 %v232
      %v337 = vunpack.c.l.b16 %v233
      %v338 = vunpack.c.l.b16 %v234
      %v339 = vunpack.c.l.b16 %v235
      %v340 = vunpack.c.l.b16 %v236
      %v341 = vunpack.c.l.b16 %v237
      %v342 = vunpack.c.l.b16 %v238
      %v343 = vunpack.c.l.b16 %v239
      %v344 = vunpack.c.l.b16 %v240
      %v345 = vunpack.c.l.b16 %v241
      %v346 = vpack.c.b16 %v335, %v334
      %v347 = vpack.c.b16 %v337, %v336
      %v348 = vpack.c.b16 %v339, %v338
      %v349 = vpack.c.b16 %v341, %v340
      %v350 = vpack.c.b16 %v343, %v342
      %v351 = vpack.c.b16 %v345, %v344
      %v356 = vunpack.c.l.b16 %v226
      %v357 = vunpack.c.l.b16 %v227
      %v358 = vunpack.c.l.b16 %v228
      %v359 = vunpack.c.l.b16 %v229
      %v360 = vpack.c.b16 %v357, %v356
      %v361 = vpack.c.b16 %v359, %v358
      %vm364 = vcmask 261120
      %v366 = vsel %vm364, %v346, 0
      %v369 = vsel %vm364, %v347, 0
      %v372 = vsel %vm364, %v348, 0
      %v375 = vsel %vm364, %v349, 0
      %v378 = vsel %vm364, %v350, 0
      %v381 = vsel %vm364, %v351, 0
      %383 = vmatpush.bf16.msra.mxu0 0
      %384 = vmatpush.bf16.msra.mxu0 0
      %385 = vmatpush.bf16.msra.mxu0 0
      %386 = vmatpush.bf16.msra.mxu0 0
      %387 = vmatpush.bf16.msra.mxu0 0
      %388 = vmatpush.bf16.msra.mxu0 0
      %389 = vmatpush.bf16.msra.mxu0 %v361
      %390 = vmatpush.bf16.msra.mxu0 %v360
      %391 = vmatmul.bf16.gmra.mxu0 %v366
      %v392 = vpop.f32.mrf.mxu0
      %v393 = vadd.f32 %v265, %v392
      %v394 = vpop.f32.mrf.mxu0
      %v395 = vadd.f32 %v270, %v394
      %396 = vmatmul.bf16.gmra.mxu0 %v369
      %v397 = vpop.f32.mrf.mxu0
      %v398 = vadd.f32 %v275, %v397
      %v399 = vpop.f32.mrf.mxu0
      %v400 = vadd.f32 %v280, %v399
      %401 = vmatmul.bf16.gmra.mxu0 %v372
      %v402 = vpop.f32.mrf.mxu0
      %v403 = vadd.f32 %v285, %v402
      %v404 = vpop.f32.mrf.mxu0
      %v405 = vadd.f32 %v290, %v404
      %406 = vmatmul.bf16.gmra.mxu0 %v375
      %v407 = vpop.f32.mrf.mxu0
      %v408 = vadd.f32 %v295, %v407
      %v409 = vpop.f32.mrf.mxu0
      %v410 = vadd.f32 %v300, %v409
      %411 = vmatmul.bf16.gmra.mxu0 %v378
      %v412 = vpop.f32.mrf.mxu0
      %v413 = vadd.f32 %v305, %v412
      %v414 = vpop.f32.mrf.mxu0
      %v415 = vadd.f32 %v310, %v414
      %416 = vmatmul.bf16.gmra.mxu0 %v381
      %v417 = vpop.f32.mrf.mxu0
      %v418 = vadd.f32 %v315, %v417
      %v419 = vpop.f32.mrf.mxu0
      %v420 = vadd.f32 %v320, %v419
      %421 = vdwg.mxu0
      %v434 = vrot.slane %v393, 4
      %v435 = vrot.slane %v395, 4
      %v436 = vrot.slane %v398, 4
      %v437 = vrot.slane %v400, 4
      %v438 = vrot.slane %v403, 4
      %v439 = vrot.slane %v405, 4
      %v440 = vrot.slane %v408, 4
      %v441 = vrot.slane %v410, 4
      %v442 = vrot.slane %v413, 4
      %v443 = vrot.slane %v415, 4
      %v444 = vrot.slane %v418, 4
      %v445 = vrot.slane %v420, 4
      %v458 = vmul.f32 %v393, 0.5
      %v459 = vmul.f32 %v434, 0.5
      %v460 = vmul.f32 %v395, 0.5
      %v461 = vmul.f32 %v435, 0.5
      %v462 = vmul.f32 %v398, 0.5
      %v463 = vmul.f32 %v436, 0.5
      %v464 = vmul.f32 %v400, 0.5
      %v465 = vmul.f32 %v437, 0.5
      %466 = vxpose.xlu0.b32.start [1/16] %v458, 128
      %467 = vxpose.xlu0.b32.cont [2/16] 0.0, 128
      %468 = vxpose.xlu0.b32.cont [3/16] 0.0, 128
      %469 = vxpose.xlu0.b32.cont [4/16] 0.0, 128
      %470 = vxpose.xlu0.b32.cont [5/16] 0.0, 128
      %471 = vxpose.xlu0.b32.cont [6/16] 0.0, 128
      %472 = vxpose.xlu0.b32.cont [7/16] 0.0, 128
      %473 = vxpose.xlu0.b32.cont [8/16] 0.0, 128
      %474 = vxpose.xlu0.b32.cont [9/16] 0.0, 128
      %475 = vxpose.xlu0.b32.cont [10/16] 0.0, 128
      %476 = vxpose.xlu0.b32.cont [11/16] 0.0, 128
      %477 = vxpose.xlu0.b32.cont [12/16] 0.0, 128
      %478 = vxpose.xlu0.b32.cont [13/16] 0.0, 128
      %479 = vxpose.xlu0.b32.cont [14/16] 0.0, 128
      %480 = vxpose.xlu0.b32.cont [15/16] 0.0, 128
      %481 = vxpose.xlu0.b32.end [16/16] 0.0, 128
      %v482 = vpop.trf.xlu0
      %v483 = vpop.trf.xlu0
      %v484 = vpop.trf.xlu0
      %v485 = vpop.trf.xlu0
      %v486 = vpop.trf.xlu0
      %v487 = vpop.trf.xlu0
      %v488 = vpop.trf.xlu0
      %v489 = vpop.trf.xlu0
      %v490 = vpop.trf.xlu0
      %v491 = vpop.trf.xlu0
      %v492 = vpop.trf.xlu0
      %v493 = vpop.trf.xlu0
      %v494 = vpop.trf.xlu0
      %v495 = vpop.trf.xlu0
      %v496 = vpop.trf.xlu0
      %v497 = vpop.trf.xlu0
      %498 = vxpose.xlu0.b32.start [1/16] %v459, 128
      %499 = vxpose.xlu0.b32.cont [2/16] 0.0, 128
      %500 = vxpose.xlu0.b32.cont [3/16] 0.0, 128
      %501 = vxpose.xlu0.b32.cont [4/16] 0.0, 128
      %502 = vxpose.xlu0.b32.cont [5/16] 0.0, 128
      %503 = vxpose.xlu0.b32.cont [6/16] 0.0, 128
      %504 = vxpose.xlu0.b32.cont [7/16] 0.0, 128
      %505 = vxpose.xlu0.b32.cont [8/16] 0.0, 128
      %506 = vxpose.xlu0.b32.cont [9/16] 0.0, 128
      %507 = vxpose.xlu0.b32.cont [10/16] 0.0, 128
      %508 = vxpose.xlu0.b32.cont [11/16] 0.0, 128
      %509 = vxpose.xlu0.b32.cont [12/16] 0.0, 128
      %510 = vxpose.xlu0.b32.cont [13/16] 0.0, 128
      %511 = vxpose.xlu0.b32.cont [14/16] 0.0, 128
      %512 = vxpose.xlu0.b32.cont [15/16] 0.0, 128
      %513 = vxpose.xlu0.b32.end [16/16] 0.0, 128
      %v514 = vpop.trf.xlu0
      %v515 = vpop.trf.xlu0
      %v516 = vpop.trf.xlu0
      %v517 = vpop.trf.xlu0
      %v518 = vpop.trf.xlu0
      %v519 = vpop.trf.xlu0
      %v520 = vpop.trf.xlu0
      %v521 = vpop.trf.xlu0
      %v522 = vpop.trf.xlu0
      %v523 = vpop.trf.xlu0
      %v524 = vpop.trf.xlu0
      %v525 = vpop.trf.xlu0
      %v526 = vpop.trf.xlu0
      %v527 = vpop.trf.xlu0
      %v528 = vpop.trf.xlu0
      %v529 = vpop.trf.xlu0
      %530 = vxpose.xlu0.b32.start [1/16] %v460, 128
      %531 = vxpose.xlu0.b32.cont [2/16] 0.0, 128
      %532 = vxpose.xlu0.b32.cont [3/16] 0.0, 128
      %533 = vxpose.xlu0.b32.cont [4/16] 0.0, 128
      %534 = vxpose.xlu0.b32.cont [5/16] 0.0, 128
      %535 = vxpose.xlu0.b32.cont [6/16] 0.0, 128
      %536 = vxpose.xlu0.b32.cont [7/16] 0.0, 128
      %537 = vxpose.xlu0.b32.cont [8/16] 0.0, 128
      %538 = vxpose.xlu0.b32.cont [9/16] 0.0, 128
      %539 = vxpose.xlu0.b32.cont [10/16] 0.0, 128
      %540 = vxpose.xlu0.b32.cont [11/16] 0.0, 128
      %541 = vxpose.xlu0.b32.cont [12/16] 0.0, 128
      %542 = vxpose.xlu0.b32.cont [13/16] 0.0, 128
      %543 = vxpose.xlu0.b32.cont [14/16] 0.0, 128
      %544 = vxpose.xlu0.b32.cont [15/16] 0.0, 128
      %545 = vxpose.xlu0.b32.end [16/16] 0.0, 128
      %v546 = vpop.trf.xlu0
      %v547 = vpop.trf.xlu0
      %v548 = vpop.trf.xlu0
      %v549 = vpop.trf.xlu0
      %v550 = vpop.trf.xlu0
      %v551 = vpop.trf.xlu0
      %v552 = vpop.trf.xlu0
      %v553 = vpop.trf.xlu0
      %v554 = vpop.trf.xlu0
      %v555 = vpop.trf.xlu0
      %v556 = vpop.trf.xlu0
      %v557 = vpop.trf.xlu0
      %v558 = vpop.trf.xlu0
      %v559 = vpop.trf.xlu0
      %v560 = vpop.trf.xlu0
      %v561 = vpop.trf.xlu0
      %562 = vxpose.xlu0.b32.start [1/16] %v461, 128
      %563 = vxpose.xlu0.b32.cont [2/16] 0.0, 128
      %564 = vxpose.xlu0.b32.cont [3/16] 0.0, 128
      %565 = vxpose.xlu0.b32.cont [4/16] 0.0, 128
      %566 = vxpose.xlu0.b32.cont [5/16] 0.0, 128
      %567 = vxpose.xlu0.b32.cont [6/16] 0.0, 128
      %568 = vxpose.xlu0.b32.cont [7/16] 0.0, 128
      %569 = vxpose.xlu0.b32.cont [8/16] 0.0, 128
      %570 = vxpose.xlu0.b32.cont [9/16] 0.0, 128
      %571 = vxpose.xlu0.b32.cont [10/16] 0.0, 128
      %572 = vxpose.xlu0.b32.cont [11/16] 0.0, 128
      %573 = vxpose.xlu0.b32.cont [12/16] 0.0, 128
      %574 = vxpose.xlu0.b32.cont [13/16] 0.0, 128
      %575 = vxpose.xlu0.b32.cont [14/16] 0.0, 128
      %576 = vxpose.xlu0.b32.cont [15/16] 0.0, 128
      %577 = vxpose.xlu0.b32.end [16/16] 0.0, 128
      %v578 = vpop.trf.xlu0
      %v579 = vpop.trf.xlu0
      %v580 = vpop.trf.xlu0
      %v581 = vpop.trf.xlu0
      %v582 = vpop.trf.xlu0
      %v583 = vpop.trf.xlu0
      %v584 = vpop.trf.xlu0
      %v585 = vpop.trf.xlu0
      %v586 = vpop.trf.xlu0
      %v587 = vpop.trf.xlu0
      %v588 = vpop.trf.xlu0
      %v589 = vpop.trf.xlu0
      %v590 = vpop.trf.xlu0
      %v591 = vpop.trf.xlu0
      %v592 = vpop.trf.xlu0
      %v593 = vpop.trf.xlu0
      %594 = vxpose.xlu0.b32.start [1/16] %v462, 128
      %595 = vxpose.xlu0.b32.cont [2/16] 0.0, 128
      %596 = vxpose.xlu0.b32.cont [3/16] 0.0, 128
      %597 = vxpose.xlu0.b32.cont [4/16] 0.0, 128
      %598 = vxpose.xlu0.b32.cont [5/16] 0.0, 128
      %599 = vxpose.xlu0.b32.cont [6/16] 0.0, 128
      %600 = vxpose.xlu0.b32.cont [7/16] 0.0, 128
      %601 = vxpose.xlu0.b32.cont [8/16] 0.0, 128
      %602 = vxpose.xlu0.b32.cont [9/16] 0.0, 128
      %603 = vxpose.xlu0.b32.cont [10/16] 0.0, 128
      %604 = vxpose.xlu0.b32.cont [11/16] 0.0, 128
      %605 = vxpose.xlu0.b32.cont [12/16] 0.0, 128
      %606 = vxpose.xlu0.b32.cont [13/16] 0.0, 128
      %607 = vxpose.xlu0.b32.cont [14/16] 0.0, 128
      %608 = vxpose.xlu0.b32.cont [15/16] 0.0, 128
      %609 = vxpose.xlu0.b32.end [16/16] 0.0, 128
      %v610 = vpop.trf.xlu0
      %v611 = vpop.trf.xlu0
      %v612 = vpop.trf.xlu0
      %v613 = vpop.trf.xlu0
      %v614 = vpop.trf.xlu0
      %v615 = vpop.trf.xlu0
      %v616 = vpop.trf.xlu0
      %v617 = vpop.trf.xlu0
      %v618 = vpop.trf.xlu0
      %v619 = vpop.trf.xlu0
      %v620 = vpop.trf.xlu0
      %v621 = vpop.trf.xlu0
      %v622 = vpop.trf.xlu0
      %v623 = vpop.trf.xlu0
      %v624 = vpop.trf.xlu0
      %v625 = vpop.trf.xlu0
      %626 = vxpose.xlu0.b32.start [1/16] %v463, 128
      %627 = vxpose.xlu0.b32.cont [2/16] 0.0, 128
      %628 = vxpose.xlu0.b32.cont [3/16] 0.0, 128
      %629 = vxpose.xlu0.b32.cont [4/16] 0.0, 128
      %630 = vxpose.xlu0.b32.cont [5/16] 0.0, 128
      %631 = vxpose.xlu0.b32.cont [6/16] 0.0, 128
      %632 = vxpose.xlu0.b32.cont [7/16] 0.0, 128
      %633 = vxpose.xlu0.b32.cont [8/16] 0.0, 128
      %634 = vxpose.xlu0.b32.cont [9/16] 0.0, 128
      %635 = vxpose.xlu0.b32.cont [10/16] 0.0, 128
      %636 = vxpose.xlu0.b32.cont [11/16] 0.0, 128
      %637 = vxpose.xlu0.b32.cont [12/16] 0.0, 128
      %638 = vxpose.xlu0.b32.cont [13/16] 0.0, 128
      %639 = vxpose.xlu0.b32.cont [14/16] 0.0, 128
      %640 = vxpose.xlu0.b32.cont [15/16] 0.0, 128
      %641 = vxpose.xlu0.b32.end [16/16] 0.0, 128
      %v642 = vpop.trf.xlu0
      %v643 = vpop.trf.xlu0
      %v644 = vpop.trf.xlu0
      %v645 = vpop.trf.xlu0
      %v646 = vpop.trf.xlu0
      %v647 = vpop.trf.xlu0
      %v648 = vpop.trf.xlu0
      %v649 = vpop.trf.xlu0
      %v650 = vpop.trf.xlu0
      %v651 = vpop.trf.xlu0
      %v652 = vpop.trf.xlu0
      %v653 = vpop.trf.xlu0
      %v654 = vpop.trf.xlu0
      %v655 = vpop.trf.xlu0
      %v656 = vpop.trf.xlu0
      %v657 = vpop.trf.xlu0
      %658 = vxpose.xlu0.b32.start [1/16] %v464, 128
      %659 = vxpose.xlu0.b32.cont [2/16] 0.0, 128
      %660 = vxpose.xlu0.b32.cont [3/16] 0.0, 128
      %661 = vxpose.xlu0.b32.cont [4/16] 0.0, 128
      %662 = vxpose.xlu0.b32.cont [5/16] 0.0, 128
      %663 = vxpose.xlu0.b32.cont [6/16] 0.0, 128
      %664 = vxpose.xlu0.b32.cont [7/16] 0.0, 128
      %665 = vxpose.xlu0.b32.cont [8/16] 0.0, 128
      %666 = vxpose.xlu0.b32.cont [9/16] 0.0, 128
      %667 = vxpose.xlu0.b32.cont [10/16] 0.0, 128
      %668 = vxpose.xlu0.b32.cont [11/16] 0.0, 128
      %669 = vxpose.xlu0.b32.cont [12/16] 0.0, 128
      %670 = vxpose.xlu0.b32.cont [13/16] 0.0, 128
      %671 = vxpose.xlu0.b32.cont [14/16] 0.0, 128
      %672 = vxpose.xlu0.b32.cont [15/16] 0.0, 128
      %673 = vxpose.xlu0.b32.end [16/16] 0.0, 128
      %v674 = vpop.trf.xlu0
      %v675 = vpop.trf.xlu0
      %v676 = vpop.trf.xlu0
      %v677 = vpop.trf.xlu0
      %v678 = vpop.trf.xlu0
      %v679 = vpop.trf.xlu0
      %v680 = vpop.trf.xlu0
      %v681 = vpop.trf.xlu0
      %v682 = vpop.trf.xlu0
      %v683 = vpop.trf.xlu0
      %v684 = vpop.trf.xlu0
      %v685 = vpop.trf.xlu0
      %v686 = vpop.trf.xlu0
      %v687 = vpop.trf.xlu0
      %v688 = vpop.trf.xlu0
      %v689 = vpop.trf.xlu0
      %690 = vxpose.xlu0.b32.start [1/16] %v465, 128
      %691 = vxpose.xlu0.b32.cont [2/16] 0.0, 128
      %692 = vxpose.xlu0.b32.cont [3/16] 0.0, 128
      %693 = vxpose.xlu0.b32.cont [4/16] 0.0, 128
      %694 = vxpose.xlu0.b32.cont [5/16] 0.0, 128
      %695 = vxpose.xlu0.b32.cont [6/16] 0.0, 128
      %696 = vxpose.xlu0.b32.cont [7/16] 0.0, 128
      %697 = vxpose.xlu0.b32.cont [8/16] 0.0, 128
      %698 = vxpose.xlu0.b32.cont [9/16] 0.0, 128
      %699 = vxpose.xlu0.b32.cont [10/16] 0.0, 128
      %700 = vxpose.xlu0.b32.cont [11/16] 0.0, 128
      %701 = vxpose.xlu0.b32.cont [12/16] 0.0, 128
      %702 = vxpose.xlu0.b32.cont [13/16] 0.0, 128
      %703 = vxpose.xlu0.b32.cont [14/16] 0.0, 128
      %704 = vxpose.xlu0.b32.cont [15/16] 0.0, 128
      %705 = vxpose.xlu0.b32.end [16/16] 0.0, 128
      %v706 = vpop.trf.xlu0
      %v707 = vpop.trf.xlu0
      %v708 = vpop.trf.xlu0
      %v709 = vpop.trf.xlu0
      %v710 = vpop.trf.xlu0
      %v711 = vpop.trf.xlu0
      %v712 = vpop.trf.xlu0
      %v713 = vpop.trf.xlu0
      %v714 = vpop.trf.xlu0
      %v715 = vpop.trf.xlu0
      %v716 = vpop.trf.xlu0
      %v717 = vpop.trf.xlu0
      %v718 = vpop.trf.xlu0
      %v719 = vpop.trf.xlu0
      %v720 = vpop.trf.xlu0
      %v721 = vpop.trf.xlu0
      %v722 = vpack.c.bf16 %v482, %v482
      %v723 = vpack.c.bf16 %v514, %v514
      %v724 = vpack.c.bf16 %v546, %v546
      %v725 = vpack.c.bf16 %v578, %v578
      %v726 = vpack.c.bf16 %v610, %v610
      %v727 = vpack.c.bf16 %v642, %v642
      %v728 = vpack.c.bf16 %v674, %v674
      %v729 = vpack.c.bf16 %v706, %v706
      %v730 = vpack.c.bf16 %v403, %v403
      %v731 = vpack.c.bf16 %v438, %v438
      %v732 = vpack.c.bf16 %v405, %v405
      %v733 = vpack.c.bf16 %v439, %v439
      %v734 = vpack.c.bf16 %v408, %v408
      %v735 = vpack.c.bf16 %v440, %v440
      %v736 = vpack.c.bf16 %v410, %v410
      %v737 = vpack.c.bf16 %v441, %v441
      %738 = vxpose.xlu0.b32.start [1/16] %v413, 128
      %739 = vxpose.xlu0.b32.cont [2/16] 0.0, 128
      %740 = vxpose.xlu0.b32.cont [3/16] 0.0, 128
      %741 = vxpose.xlu0.b32.cont [4/16] 0.0, 128
      %742 = vxpose.xlu0.b32.cont [5/16] 0.0, 128
      %743 = vxpose.xlu0.b32.cont [6/16] 0.0, 128
      %744 = vxpose.xlu0.b32.cont [7/16] 0.0, 128
      %745 = vxpose.xlu0.b32.cont [8/16] 0.0, 128
      %746 = vxpose.xlu0.b32.cont [9/16] 0.0, 128
      %747 = vxpose.xlu0.b32.cont [10/16] 0.0, 128
      %748 = vxpose.xlu0.b32.cont [11/16] 0.0, 128
      %749 = vxpose.xlu0.b32.cont [12/16] 0.0, 128
      %750 = vxpose.xlu0.b32.cont [13/16] 0.0, 128
      %751 = vxpose.xlu0.b32.cont [14/16] 0.0, 128
      %752 = vxpose.xlu0.b32.cont [15/16] 0.0, 128
      %753 = vxpose.xlu0.b32.end [16/16] 0.0, 128
      %v754 = vpop.trf.xlu0
      %v755 = vpop.trf.xlu0
      %v756 = vpop.trf.xlu0
      %v757 = vpop.trf.xlu0
      %v758 = vpop.trf.xlu0
      %v759 = vpop.trf.xlu0
      %v760 = vpop.trf.xlu0
      %v761 = vpop.trf.xlu0
      %v762 = vpop.trf.xlu0
      %v763 = vpop.trf.xlu0
      %v764 = vpop.trf.xlu0
      %v765 = vpop.trf.xlu0
      %v766 = vpop.trf.xlu0
      %v767 = vpop.trf.xlu0
      %v768 = vpop.trf.xlu0
      %v769 = vpop.trf.xlu0
      %770 = vxpose.xlu0.b32.start [1/16] %v442, 128
      %771 = vxpose.xlu0.b32.cont [2/16] 0.0, 128
      %772 = vxpose.xlu0.b32.cont [3/16] 0.0, 128
      %773 = vxpose.xlu0.b32.cont [4/16] 0.0, 128
      %774 = vxpose.xlu0.b32.cont [5/16] 0.0, 128
      %775 = vxpose.xlu0.b32.cont [6/16] 0.0, 128
      %776 = vxpose.xlu0.b32.cont [7/16] 0.0, 128
      %777 = vxpose.xlu0.b32.cont [8/16] 0.0, 128
      %778 = vxpose.xlu0.b32.cont [9/16] 0.0, 128
      %779 = vxpose.xlu0.b32.cont [10/16] 0.0, 128
      %780 = vxpose.xlu0.b32.cont [11/16] 0.0, 128
      %781 = vxpose.xlu0.b32.cont [12/16] 0.0, 128
      %782 = vxpose.xlu0.b32.cont [13/16] 0.0, 128
      %783 = vxpose.xlu0.b32.cont [14/16] 0.0, 128
      %784 = vxpose.xlu0.b32.cont [15/16] 0.0, 128
      %785 = vxpose.xlu0.b32.end [16/16] 0.0, 128
      %v786 = vpop.trf.xlu0
      %v787 = vpop.trf.xlu0
      %v788 = vpop.trf.xlu0
      %v789 = vpop.trf.xlu0
      %v790 = vpop.trf.xlu0
      %v791 = vpop.trf.xlu0
      %v792 = vpop.trf.xlu0
      %v793 = vpop.trf.xlu0
      %v794 = vpop.trf.xlu0
      %v795 = vpop.trf.xlu0
      %v796 = vpop.trf.xlu0
      %v797 = vpop.trf.xlu0
      %v798 = vpop.trf.xlu0
      %v799 = vpop.trf.xlu0
      %v800 = vpop.trf.xlu0
      %v801 = vpop.trf.xlu0
      %802 = vxpose.xlu0.b32.start [1/16] %v415, 128
      %803 = vxpose.xlu0.b32.cont [2/16] 0.0, 128
      %804 = vxpose.xlu0.b32.cont [3/16] 0.0, 128
      %805 = vxpose.xlu0.b32.cont [4/16] 0.0, 128
      %806 = vxpose.xlu0.b32.cont [5/16] 0.0, 128
      %807 = vxpose.xlu0.b32.cont [6/16] 0.0, 128
      %808 = vxpose.xlu0.b32.cont [7/16] 0.0, 128
      %809 = vxpose.xlu0.b32.cont [8/16] 0.0, 128
      %810 = vxpose.xlu0.b32.cont [9/16] 0.0, 128
      %811 = vxpose.xlu0.b32.cont [10/16] 0.0, 128
      %812 = vxpose.xlu0.b32.cont [11/16] 0.0, 128
      %813 = vxpose.xlu0.b32.cont [12/16] 0.0, 128
      %814 = vxpose.xlu0.b32.cont [13/16] 0.0, 128
      %815 = vxpose.xlu0.b32.cont [14/16] 0.0, 128
      %816 = vxpose.xlu0.b32.cont [15/16] 0.0, 128
      %817 = vxpose.xlu0.b32.end [16/16] 0.0, 128
      %v818 = vpop.trf.xlu0
      %v819 = vpop.trf.xlu0
      %v820 = vpop.trf.xlu0
      %v821 = vpop.trf.xlu0
      %v822 = vpop.trf.xlu0
      %v823 = vpop.trf.xlu0
      %v824 = vpop.trf.xlu0
      %v825 = vpop.trf.xlu0
      %v826 = vpop.trf.xlu0
      %v827 = vpop.trf.xlu0
      %v828 = vpop.trf.xlu0
      %v829 = vpop.trf.xlu0
      %v830 = vpop.trf.xlu0
      %v831 = vpop.trf.xlu0
      %v832 = vpop.trf.xlu0
      %v833 = vpop.trf.xlu0
      %834 = vxpose.xlu0.b32.start [1/16] %v443, 128
      %835 = vxpose.xlu0.b32.cont [2/16] 0.0, 128
      %836 = vxpose.xlu0.b32.cont [3/16] 0.0, 128
      %837 = vxpose.xlu0.b32.cont [4/16] 0.0, 128
      %838 = vxpose.xlu0.b32.cont [5/16] 0.0, 128
      %839 = vxpose.xlu0.b32.cont [6/16] 0.0, 128
      %840 = vxpose.xlu0.b32.cont [7/16] 0.0, 128
      %841 = vxpose.xlu0.b32.cont [8/16] 0.0, 128
      %842 = vxpose.xlu0.b32.cont [9/16] 0.0, 128
      %843 = vxpose.xlu0.b32.cont [10/16] 0.0, 128
      %844 = vxpose.xlu0.b32.cont [11/16] 0.0, 128
      %845 = vxpose.xlu0.b32.cont [12/16] 0.0, 128
      %846 = vxpose.xlu0.b32.cont [13/16] 0.0, 128
      %847 = vxpose.xlu0.b32.cont [14/16] 0.0, 128
      %848 = vxpose.xlu0.b32.cont [15/16] 0.0, 128
      %849 = vxpose.xlu0.b32.end [16/16] 0.0, 128
      %v850 = vpop.trf.xlu0
      %v851 = vpop.trf.xlu0
      %v852 = vpop.trf.xlu0
      %v853 = vpop.trf.xlu0
      %v854 = vpop.trf.xlu0
      %v855 = vpop.trf.xlu0
      %v856 = vpop.trf.xlu0
      %v857 = vpop.trf.xlu0
      %v858 = vpop.trf.xlu0
      %v859 = vpop.trf.xlu0
      %v860 = vpop.trf.xlu0
      %v861 = vpop.trf.xlu0
      %v862 = vpop.trf.xlu0
      %v863 = vpop.trf.xlu0
      %v864 = vpop.trf.xlu0
      %v865 = vpop.trf.xlu0
      %866 = vxpose.xlu0.b32.start [1/16] %v418, 128
      %867 = vxpose.xlu0.b32.cont [2/16] 0.0, 128
      %868 = vxpose.xlu0.b32.cont [3/16] 0.0, 128
      %869 = vxpose.xlu0.b32.cont [4/16] 0.0, 128
      %870 = vxpose.xlu0.b32.cont [5/16] 0.0, 128
      %871 = vxpose.xlu0.b32.cont [6/16] 0.0, 128
      %872 = vxpose.xlu0.b32.cont [7/16] 0.0, 128
      %873 = vxpose.xlu0.b32.cont [8/16] 0.0, 128
      %874 = vxpose.xlu0.b32.cont [9/16] 0.0, 128
      %875 = vxpose.xlu0.b32.cont [10/16] 0.0, 128
      %876 = vxpose.xlu0.b32.cont [11/16] 0.0, 128
      %877 = vxpose.xlu0.b32.cont [12/16] 0.0, 128
      %878 = vxpose.xlu0.b32.cont [13/16] 0.0, 128
      %879 = vxpose.xlu0.b32.cont [14/16] 0.0, 128
      %880 = vxpose.xlu0.b32.cont [15/16] 0.0, 128
      %881 = vxpose.xlu0.b32.end [16/16] 0.0, 128
      %v882 = vpop.trf.xlu0
      %v883 = vpop.trf.xlu0
      %v884 = vpop.trf.xlu0
      %v885 = vpop.trf.xlu0
      %v886 = vpop.trf.xlu0
      %v887 = vpop.trf.xlu0
      %v888 = vpop.trf.xlu0
      %v889 = vpop.trf.xlu0
      %v890 = vpop.trf.xlu0
      %v891 = vpop.trf.xlu0
      %v892 = vpop.trf.xlu0
      %v893 = vpop.trf.xlu0
      %v894 = vpop.trf.xlu0
      %v895 = vpop.trf.xlu0
      %v896 = vpop.trf.xlu0
      %v897 = vpop.trf.xlu0
      %898 = vxpose.xlu0.b32.start [1/16] %v444, 128
      %899 = vxpose.xlu0.b32.cont [2/16] 0.0, 128
      %900 = vxpose.xlu0.b32.cont [3/16] 0.0, 128
      %901 = vxpose.xlu0.b32.cont [4/16] 0.0, 128
      %902 = vxpose.xlu0.b32.cont [5/16] 0.0, 128
      %903 = vxpose.xlu0.b32.cont [6/16] 0.0, 128
      %904 = vxpose.xlu0.b32.cont [7/16] 0.0, 128
      %905 = vxpose.xlu0.b32.cont [8/16] 0.0, 128
      %906 = vxpose.xlu0.b32.cont [9/16] 0.0, 128
      %907 = vxpose.xlu0.b32.cont [10/16] 0.0, 128
      %908 = vxpose.xlu0.b32.cont [11/16] 0.0, 128
      %909 = vxpose.xlu0.b32.cont [12/16] 0.0, 128
      %910 = vxpose.xlu0.b32.cont [13/16] 0.0, 128
      %911 = vxpose.xlu0.b32.cont [14/16] 0.0, 128
      %912 = vxpose.xlu0.b32.cont [15/16] 0.0, 128
      %913 = vxpose.xlu0.b32.end [16/16] 0.0, 128
      %v914 = vpop.trf.xlu0
      %v915 = vpop.trf.xlu0
      %v916 = vpop.trf.xlu0
      %v917 = vpop.trf.xlu0
      %v918 = vpop.trf.xlu0
      %v919 = vpop.trf.xlu0
      %v920 = vpop.trf.xlu0
      %v921 = vpop.trf.xlu0
      %v922 = vpop.trf.xlu0
      %v923 = vpop.trf.xlu0
      %v924 = vpop.trf.xlu0
      %v925 = vpop.trf.xlu0
      %v926 = vpop.trf.xlu0
      %v927 = vpop.trf.xlu0
      %v928 = vpop.trf.xlu0
      %v929 = vpop.trf.xlu0
      %930 = vxpose.xlu0.b32.start [1/16] %v420, 128
      %931 = vxpose.xlu0.b32.cont [2/16] 0.0, 128
      %932 = vxpose.xlu0.b32.cont [3/16] 0.0, 128
      %933 = vxpose.xlu0.b32.cont [4/16] 0.0, 128
      %934 = vxpose.xlu0.b32.cont [5/16] 0.0, 128
      %935 = vxpose.xlu0.b32.cont [6/16] 0.0, 128
      %936 = vxpose.xlu0.b32.cont [7/16] 0.0, 128
      %937 = vxpose.xlu0.b32.cont [8/16] 0.0, 128
      %938 = vxpose.xlu0.b32.cont [9/16] 0.0, 128
      %939 = vxpose.xlu0.b32.cont [10/16] 0.0, 128
      %940 = vxpose.xlu0.b32.cont [11/16] 0.0, 128
      %941 = vxpose.xlu0.b32.cont [12/16] 0.0, 128
      %942 = vxpose.xlu0.b32.cont [13/16] 0.0, 128
      %943 = vxpose.xlu0.b32.cont [14/16] 0.0, 128
      %944 = vxpose.xlu0.b32.cont [15/16] 0.0, 128
      %945 = vxpose.xlu0.b32.end [16/16] 0.0, 128
      %v946 = vpop.trf.xlu0
      %v947 = vpop.trf.xlu0
      %v948 = vpop.trf.xlu0
      %v949 = vpop.trf.xlu0
      %v950 = vpop.trf.xlu0
      %v951 = vpop.trf.xlu0
      %v952 = vpop.trf.xlu0
      %v953 = vpop.trf.xlu0
      %v954 = vpop.trf.xlu0
      %v955 = vpop.trf.xlu0
      %v956 = vpop.trf.xlu0
      %v957 = vpop.trf.xlu0
      %v958 = vpop.trf.xlu0
      %v959 = vpop.trf.xlu0
      %v960 = vpop.trf.xlu0
      %v961 = vpop.trf.xlu0
      %962 = vxpose.xlu0.b32.start [1/16] %v445, 128
      %963 = vxpose.xlu0.b32.cont [2/16] 0.0, 128
      %964 = vxpose.xlu0.b32.cont [3/16] 0.0, 128
      %965 = vxpose.xlu0.b32.cont [4/16] 0.0, 128
      %966 = vxpose.xlu0.b32.cont [5/16] 0.0, 128
      %967 = vxpose.xlu0.b32.cont [6/16] 0.0, 128
      %968 = vxpose.xlu0.b32.cont [7/16] 0.0, 128
      %969 = vxpose.xlu0.b32.cont [8/16] 0.0, 128
      %970 = vxpose.xlu0.b32.cont [9/16] 0.0, 128
      %971 = vxpose.xlu0.b32.cont [10/16] 0.0, 128
      %972 = vxpose.xlu0.b32.cont [11/16] 0.0, 128
      %973 = vxpose.xlu0.b32.cont [12/16] 0.0, 128
      %974 = vxpose.xlu0.b32.cont [13/16] 0.0, 128
      %975 = vxpose.xlu0.b32.cont [14/16] 0.0, 128
      %976 = vxpose.xlu0.b32.cont [15/16] 0.0, 128
      %977 = vxpose.xlu0.b32.end [16/16] 0.0, 128
      %v978 = vpop.trf.xlu0
      %v979 = vpop.trf.xlu0
      %v980 = vpop.trf.xlu0
      %v981 = vpop.trf.xlu0
      %v982 = vpop.trf.xlu0
      %v983 = vpop.trf.xlu0
      %v984 = vpop.trf.xlu0
      %v985 = vpop.trf.xlu0
      %v986 = vpop.trf.xlu0
      %v987 = vpop.trf.xlu0
      %v988 = vpop.trf.xlu0
      %v989 = vpop.trf.xlu0
      %v990 = vpop.trf.xlu0
      %v991 = vpop.trf.xlu0
      %v992 = vpop.trf.xlu0
      %v993 = vpop.trf.xlu0
      %v994 = vpack.c.bf16 %v754, %v754
      %v995 = vpack.c.bf16 %v786, %v786
      %v996 = vpack.c.bf16 %v818, %v818
      %v997 = vpack.c.bf16 %v850, %v850
      %v998 = vpack.c.bf16 %v882, %v882
      %v999 = vpack.c.bf16 %v914, %v914
      %v1000 = vpack.c.bf16 %v946, %v946
      %v1001 = vpack.c.bf16 %v978, %v978
      %vm1002 = vcmask 31744
      %v1004 = vsel %vm1002, %v722, 0
      %vm1006 = vcmask 1041408
      %v1008 = vsel %vm1006, %v730, 0
      %1010 = vmatpush.bf16.msra.mxu0 0
      %1011 = vmatpush.bf16.msra.mxu0 0
      %1012 = vmatpush.bf16.msra.mxu0 0
      %1013 = vmatpush.bf16.msra.mxu0 0
      %1014 = vmatpush.bf16.msra.mxu0 0
      %1015 = vmatpush.bf16.msra.mxu0 0
      %1016 = vmatpush.bf16.msra.mxu0 0
      %1017 = vmatpush.bf16.msra.mxu0 %v1008
      %1018 = vmatmul.bf16.gmra.mxu0 %v1004
      %v1019 = vpop.f32.mrf.mxu0
      %v1020 = vadd.f32 0.0, %v1019
      %v1021 = vpop.f32.mrf.mxu0
      %1022 = vdwg.mxu0
      %v1024 = vsel %vm1002, %v723, 0
      %v1027 = vsel %vm1006, %v731, 0
      %1029 = vmatpush.bf16.msra.mxu0 0
      %1030 = vmatpush.bf16.msra.mxu0 0
      %1031 = vmatpush.bf16.msra.mxu0 0
      %1032 = vmatpush.bf16.msra.mxu0 0
      %1033 = vmatpush.bf16.msra.mxu0 0
      %1034 = vmatpush.bf16.msra.mxu0 0
      %1035 = vmatpush.bf16.msra.mxu0 0
      %1036 = vmatpush.bf16.msra.mxu0 %v1027
      %1037 = vmatmul.bf16.gmra.mxu0 %v1024
      %v1038 = vpop.f32.mrf.mxu0
      %v1039 = vadd.f32 0.0, %v1038
      %v1040 = vpop.f32.mrf.mxu0
      %1041 = vdwg.mxu0
      %v1043 = vsel %vm1002, %v724, 0
      %v1046 = vsel %vm1006, %v732, 0
      %1048 = vmatpush.bf16.msra.mxu0 0
      %1049 = vmatpush.bf16.msra.mxu0 0
      %1050 = vmatpush.bf16.msra.mxu0 0
      %1051 = vmatpush.bf16.msra.mxu0 0
      %1052 = vmatpush.bf16.msra.mxu0 0
      %1053 = vmatpush.bf16.msra.mxu0 0
      %1054 = vmatpush.bf16.msra.mxu0 0
      %1055 = vmatpush.bf16.msra.mxu0 %v1046
      %1056 = vmatmul.bf16.gmra.mxu0 %v1043
      %v1057 = vpop.f32.mrf.mxu0
      %v1058 = vadd.f32 0.0, %v1057
      %v1059 = vpop.f32.mrf.mxu0
      %1060 = vdwg.mxu0
      %v1062 = vsel %vm1002, %v725, 0
      %v1065 = vsel %vm1006, %v733, 0
      %1067 = vmatpush.bf16.msra.mxu0 0
      %1068 = vmatpush.bf16.msra.mxu0 0
      %1069 = vmatpush.bf16.msra.mxu0 0
      %1070 = vmatpush.bf16.msra.mxu0 0
      %1071 = vmatpush.bf16.msra.mxu0 0
      %1072 = vmatpush.bf16.msra.mxu0 0
      %1073 = vmatpush.bf16.msra.mxu0 0
      %1074 = vmatpush.bf16.msra.mxu0 %v1065
      %1075 = vmatmul.bf16.gmra.mxu0 %v1062
      %v1076 = vpop.f32.mrf.mxu0
      %v1077 = vadd.f32 0.0, %v1076
      %v1078 = vpop.f32.mrf.mxu0
      %1079 = vdwg.mxu0
      %v1081 = vsel %vm1002, %v726, 0
      %v1084 = vsel %vm1006, %v734, 0
      %1086 = vmatpush.bf16.msra.mxu0 0
      %1087 = vmatpush.bf16.msra.mxu0 0
      %1088 = vmatpush.bf16.msra.mxu0 0
      %1089 = vmatpush.bf16.msra.mxu0 0
      %1090 = vmatpush.bf16.msra.mxu0 0
      %1091 = vmatpush.bf16.msra.mxu0 0
      %1092 = vmatpush.bf16.msra.mxu0 0
      %1093 = vmatpush.bf16.msra.mxu0 %v1084
      %1094 = vmatmul.bf16.gmra.mxu0 %v1081
      %v1095 = vpop.f32.mrf.mxu0
      %v1096 = vadd.f32 0.0, %v1095
      %v1097 = vpop.f32.mrf.mxu0
      %1098 = vdwg.mxu0
      %v1100 = vsel %vm1002, %v727, 0
      %v1103 = vsel %vm1006, %v735, 0
      %1105 = vmatpush.bf16.msra.mxu0 0
      %1106 = vmatpush.bf16.msra.mxu0 0
      %1107 = vmatpush.bf16.msra.mxu0 0
      %1108 = vmatpush.bf16.msra.mxu0 0
      %1109 = vmatpush.bf16.msra.mxu0 0
      %1110 = vmatpush.bf16.msra.mxu0 0
      %1111 = vmatpush.bf16.msra.mxu0 0
      %1112 = vmatpush.bf16.msra.mxu0 %v1103
      %1113 = vmatmul.bf16.gmra.mxu0 %v1100
      %v1114 = vpop.f32.mrf.mxu0
      %v1115 = vadd.f32 0.0, %v1114
      %v1116 = vpop.f32.mrf.mxu0
      %1117 = vdwg.mxu0
      %v1119 = vsel %vm1002, %v728, 0
      %v1122 = vsel %vm1006, %v736, 0
      %1124 = vmatpush.bf16.msra.mxu0 0
      %1125 = vmatpush.bf16.msra.mxu0 0
      %1126 = vmatpush.bf16.msra.mxu0 0
      %1127 = vmatpush.bf16.msra.mxu0 0
      %1128 = vmatpush.bf16.msra.mxu0 0
      %1129 = vmatpush.bf16.msra.mxu0 0
      %1130 = vmatpush.bf16.msra.mxu0 0
      %1131 = vmatpush.bf16.msra.mxu0 %v1122
      %1132 = vmatmul.bf16.gmra.mxu0 %v1119
      %v1133 = vpop.f32.mrf.mxu0
      %v1134 = vadd.f32 0.0, %v1133
      %v1135 = vpop.f32.mrf.mxu0
      %1136 = vdwg.mxu0
      %v1138 = vsel %vm1002, %v729, 0
      %v1141 = vsel %vm1006, %v737, 0
      %1143 = vmatpush.bf16.msra.mxu0 0
      %1144 = vmatpush.bf16.msra.mxu0 0
      %1145 = vmatpush.bf16.msra.mxu0 0
      %1146 = vmatpush.bf16.msra.mxu0 0
      %1147 = vmatpush.bf16.msra.mxu0 0
      %1148 = vmatpush.bf16.msra.mxu0 0
      %1149 = vmatpush.bf16.msra.mxu0 0
      %1150 = vmatpush.bf16.msra.mxu0 %v1141
      %1151 = vmatmul.bf16.gmra.mxu0 %v1138
      %v1152 = vpop.f32.mrf.mxu0
      %v1153 = vadd.f32 0.0, %v1152
      %v1154 = vpop.f32.mrf.mxu0
      %1155 = vdwg.mxu0
      %vm1156 = vcmask 64512
      %v1157 = vsel %vm1156, %v1020, -inf
      %1158 = vmax.xlane.f32.xlu0 %v1157
      %v1159 = vpop.xlane.xlu0 %1158
      %v1160 = vsel %vm1156, %v1039, -inf
      %1161 = vmax.xlane.f32.xlu0 %v1160
      %v1162 = vpop.xlane.xlu0 %1161
      %v1163 = vsel %vm1156, %v1058, -inf
      %1164 = vmax.xlane.f32.xlu0 %v1163
      %v1165 = vpop.xlane.xlu0 %1164
      %v1166 = vsel %vm1156, %v1077, -inf
      %1167 = vmax.xlane.f32.xlu0 %v1166
      %v1168 = vpop.xlane.xlu0 %1167
      %v1169 = vsel %vm1156, %v1096, -inf
      %1170 = vmax.xlane.f32.xlu0 %v1169
      %v1171 = vpop.xlane.xlu0 %1170
      %v1172 = vsel %vm1156, %v1115, -inf
      %1173 = vmax.xlane.f32.xlu0 %v1172
      %v1174 = vpop.xlane.xlu0 %1173
      %v1175 = vsel %vm1156, %v1134, -inf
      %1176 = vmax.xlane.f32.xlu0 %v1175
      %v1177 = vpop.xlane.xlu0 %1176
      %v1178 = vsel %vm1156, %v1153, -inf
      %1179 = vmax.xlane.f32.xlu0 %v1178
      %v1180 = vpop.xlane.xlu0 %1179
      %v1181 = vsub.f32 -inf, %v1159
      %v1182 = vsub.f32 -inf, %v1162
      %v1183 = vsub.f32 -inf, %v1165
      %v1184 = vsub.f32 -inf, %v1168
      %v1185 = vsub.f32 -inf, %v1171
      %v1186 = vsub.f32 -inf, %v1174
      %v1187 = vsub.f32 -inf, %v1177
      %v1188 = vsub.f32 -inf, %v1180
      %v1189 = vmul.f32 %v1181, 1.442695
      %v1190 = vpow.pop %v1189
      %v1191 = vmul.f32 %v1182, 1.442695
      %v1192 = vpow.pop %v1191
      %v1193 = vmul.f32 %v1183, 1.442695
      %v1194 = vpow.pop %v1193
      %v1195 = vmul.f32 %v1184, 1.442695
      %v1196 = vpow.pop %v1195
      %v1197 = vmul.f32 %v1185, 1.442695
      %v1198 = vpow.pop %v1197
      %v1199 = vmul.f32 %v1186, 1.442695
      %v1200 = vpow.pop %v1199
      %v1201 = vmul.f32 %v1187, 1.442695
      %v1202 = vpow.pop %v1201
      %v1203 = vmul.f32 %v1188, 1.442695
      %v1204 = vpow.pop %v1203
      %v1205 = vsub.f32 %v1020, %v1159
      %v1206 = vsub.f32 %v1039, %v1162
      %v1207 = vsub.f32 %v1058, %v1165
      %v1208 = vsub.f32 %v1077, %v1168
      %v1209 = vsub.f32 %v1096, %v1171
      %v1210 = vsub.f32 %v1115, %v1174
      %v1211 = vsub.f32 %v1134, %v1177
      %v1212 = vsub.f32 %v1153, %v1180
      %v1213 = vmul.f32 %v1205, 1.442695
      %v1214 = vpow.pop %v1213
      %v1215 = vmul.f32 %v1206, 1.442695
      %v1216 = vpow.pop %v1215
      %v1217 = vmul.f32 %v1207, 1.442695
      %v1218 = vpow.pop %v1217
      %v1219 = vmul.f32 %v1208, 1.442695
      %v1220 = vpow.pop %v1219
      %v1221 = vmul.f32 %v1209, 1.442695
      %v1222 = vpow.pop %v1221
      %v1223 = vmul.f32 %v1210, 1.442695
      %v1224 = vpow.pop %v1223
      %v1225 = vmul.f32 %v1211, 1.442695
      %v1226 = vpow.pop %v1225
      %v1227 = vmul.f32 %v1212, 1.442695
      %v1228 = vpow.pop %v1227
      %v1229 = vmul.f32 %v1190, 0.0
      %v1230 = vmul.f32 %v1192, 0.0
      %v1231 = vmul.f32 %v1194, 0.0
      %v1232 = vmul.f32 %v1196, 0.0
      %v1233 = vmul.f32 %v1198, 0.0
      %v1234 = vmul.f32 %v1200, 0.0
      %v1235 = vmul.f32 %v1202, 0.0
      %v1236 = vmul.f32 %v1204, 0.0
      %v1237 = vsel %vm1156, %v1214, 0.0
      %1238 = vadd.xlane.f32.xlu0 %v1237
      %v1239 = vpop.xlane.xlu0 %1238
      %v1240 = vsel %vm1156, %v1216, 0.0
      %1241 = vadd.xlane.f32.xlu0 %v1240
      %v1242 = vpop.xlane.xlu0 %1241
      %v1243 = vsel %vm1156, %v1218, 0.0
      %1244 = vadd.xlane.f32.xlu0 %v1243
      %v1245 = vpop.xlane.xlu0 %1244
      %v1246 = vsel %vm1156, %v1220, 0.0
      %1247 = vadd.xlane.f32.xlu0 %v1246
      %v1248 = vpop.xlane.xlu0 %1247
      %v1249 = vsel %vm1156, %v1222, 0.0
      %1250 = vadd.xlane.f32.xlu0 %v1249
      %v1251 = vpop.xlane.xlu0 %1250
      %v1252 = vsel %vm1156, %v1224, 0.0
      %1253 = vadd.xlane.f32.xlu0 %v1252
      %v1254 = vpop.xlane.xlu0 %1253
      %v1255 = vsel %vm1156, %v1226, 0.0
      %1256 = vadd.xlane.f32.xlu0 %v1255
      %v1257 = vpop.xlane.xlu0 %1256
      %v1258 = vsel %vm1156, %v1228, 0.0
      %1259 = vadd.xlane.f32.xlu0 %v1258
      %v1260 = vpop.xlane.xlu0 %1259
      %v1261 = vadd.f32 %v1229, %v1239
      %v1262 = vadd.f32 %v1230, %v1242
      %v1263 = vadd.f32 %v1231, %v1245
      %v1264 = vadd.f32 %v1232, %v1248
      %v1265 = vadd.f32 %v1233, %v1251
      %v1266 = vadd.f32 %v1234, %v1254
      %v1267 = vadd.f32 %v1235, %v1257
      %v1268 = vadd.f32 %v1236, %v1260
      %v1269 = vpack.c.bf16 %v1214, %v1214
      %v1270 = vpack.c.bf16 %v1216, %v1216
      %v1271 = vpack.c.bf16 %v1218, %v1218
      %v1272 = vpack.c.bf16 %v1220, %v1220
      %v1273 = vpack.c.bf16 %v1222, %v1222
      %v1274 = vpack.c.bf16 %v1224, %v1224
      %v1275 = vpack.c.bf16 %v1226, %v1226
      %v1276 = vpack.c.bf16 %v1228, %v1228
      %v1278 = vsel %vm1156, %v1269, 0
      %vm1280 = vcmask 1043456
      %v1282 = vsel %vm1280, %v994, 0
      %1284 = vmatpush.bf16.msra.mxu0 0
      %1285 = vmatpush.bf16.msra.mxu0 0
      %1286 = vmatpush.bf16.msra.mxu0 0
      %1287 = vmatpush.bf16.msra.mxu0 0
      %1288 = vmatpush.bf16.msra.mxu0 0
      %1289 = vmatpush.bf16.msra.mxu0 0
      %1290 = vmatpush.bf16.msra.mxu0 0
      %1291 = vmatpush.bf16.msra.mxu0 %v1282
      %1292 = vmatmul.bf16.gmra.mxu0 %v1278
      %v1293 = vpop.f32.mrf.mxu0
      %v1294 = vadd.f32 0.0, %v1293
      %v1295 = vpop.f32.mrf.mxu0
      %1296 = vdwg.mxu0
      %v1298 = vsel %vm1156, %v1270, 0
      %v1301 = vsel %vm1280, %v995, 0
      %1303 = vmatpush.bf16.msra.mxu0 0
      %1304 = vmatpush.bf16.msra.mxu0 0
      %1305 = vmatpush.bf16.msra.mxu0 0
      %1306 = vmatpush.bf16.msra.mxu0 0
      %1307 = vmatpush.bf16.msra.mxu0 0
      %1308 = vmatpush.bf16.msra.mxu0 0
      %1309 = vmatpush.bf16.msra.mxu0 0
      %1310 = vmatpush.bf16.msra.mxu0 %v1301
      %1311 = vmatmul.bf16.gmra.mxu0 %v1298
      %v1312 = vpop.f32.mrf.mxu0
      %v1313 = vadd.f32 0.0, %v1312
      %v1314 = vpop.f32.mrf.mxu0
      %1315 = vdwg.mxu0
      %v1317 = vsel %vm1156, %v1271, 0
      %v1320 = vsel %vm1280, %v996, 0
      %1322 = vmatpush.bf16.msra.mxu0 0
      %1323 = vmatpush.bf16.msra.mxu0 0
      %1324 = vmatpush.bf16.msra.mxu0 0
      %1325 = vmatpush.bf16.msra.mxu0 0
      %1326 = vmatpush.bf16.msra.mxu0 0
      %1327 = vmatpush.bf16.msra.mxu0 0
      %1328 = vmatpush.bf16.msra.mxu0 0
      %1329 = vmatpush.bf16.msra.mxu0 %v1320
      %1330 = vmatmul.bf16.gmra.mxu0 %v1317
      %v1331 = vpop.f32.mrf.mxu0
      %v1332 = vadd.f32 0.0, %v1331
      %v1333 = vpop.f32.mrf.mxu0
      %1334 = vdwg.mxu0
      %v1336 = vsel %vm1156, %v1272, 0
      %v1339 = vsel %vm1280, %v997, 0
      %1341 = vmatpush.bf16.msra.mxu0 0
      %1342 = vmatpush.bf16.msra.mxu0 0
      %1343 = vmatpush.bf16.msra.mxu0 0
      %1344 = vmatpush.bf16.msra.mxu0 0
      %1345 = vmatpush.bf16.msra.mxu0 0
      %1346 = vmatpush.bf16.msra.mxu0 0
      %1347 = vmatpush.bf16.msra.mxu0 0
      %1348 = vmatpush.bf16.msra.mxu0 %v1339
      %1349 = vmatmul.bf16.gmra.mxu0 %v1336
      %v1350 = vpop.f32.mrf.mxu0
      %v1351 = vadd.f32 0.0, %v1350
      %v1352 = vpop.f32.mrf.mxu0
      %1353 = vdwg.mxu0
      %v1355 = vsel %vm1156, %v1273, 0
      %v1358 = vsel %vm1280, %v998, 0
      %1360 = vmatpush.bf16.msra.mxu0 0
      %1361 = vmatpush.bf16.msra.mxu0 0
      %1362 = vmatpush.bf16.msra.mxu0 0
      %1363 = vmatpush.bf16.msra.mxu0 0
      %1364 = vmatpush.bf16.msra.mxu0 0
      %1365 = vmatpush.bf16.msra.mxu0 0
      %1366 = vmatpush.bf16.msra.mxu0 0
      %1367 = vmatpush.bf16.msra.mxu0 %v1358
      %1368 = vmatmul.bf16.gmra.mxu0 %v1355
      %v1369 = vpop.f32.mrf.mxu0
      %v1370 = vadd.f32 0.0, %v1369
      %v1371 = vpop.f32.mrf.mxu0
      %1372 = vdwg.mxu0
      %v1374 = vsel %vm1156, %v1274, 0
      %v1377 = vsel %vm1280, %v999, 0
      %1379 = vmatpush.bf16.msra.mxu0 0
      %1380 = vmatpush.bf16.msra.mxu0 0
      %1381 = vmatpush.bf16.msra.mxu0 0
      %1382 = vmatpush.bf16.msra.mxu0 0
      %1383 = vmatpush.bf16.msra.mxu0 0
      %1384 = vmatpush.bf16.msra.mxu0 0
      %1385 = vmatpush.bf16.msra.mxu0 0
      %1386 = vmatpush.bf16.msra.mxu0 %v1377
      %1387 = vmatmul.bf16.gmra.mxu0 %v1374
      %v1388 = vpop.f32.mrf.mxu0
      %v1389 = vadd.f32 0.0, %v1388
      %v1390 = vpop.f32.mrf.mxu0
      %1391 = vdwg.mxu0
      %v1393 = vsel %vm1156, %v1275, 0
      %v1396 = vsel %vm1280, %v1000, 0
      %1398 = vmatpush.bf16.msra.mxu0 0
      %1399 = vmatpush.bf16.msra.mxu0 0
      %1400 = vmatpush.bf16.msra.mxu0 0
      %1401 = vmatpush.bf16.msra.mxu0 0
      %1402 = vmatpush.bf16.msra.mxu0 0
      %1403 = vmatpush.bf16.msra.mxu0 0
      %1404 = vmatpush.bf16.msra.mxu0 0
      %1405 = vmatpush.bf16.msra.mxu0 %v1396
      %1406 = vmatmul.bf16.gmra.mxu0 %v1393
      %v1407 = vpop.f32.mrf.mxu0
      %v1408 = vadd.f32 0.0, %v1407
      %v1409 = vpop.f32.mrf.mxu0
      %1410 = vdwg.mxu0
      %v1412 = vsel %vm1156, %v1276, 0
      %v1415 = vsel %vm1280, %v1001, 0
      %1417 = vmatpush.bf16.msra.mxu0 0
      %1418 = vmatpush.bf16.msra.mxu0 0
      %1419 = vmatpush.bf16.msra.mxu0 0
      %1420 = vmatpush.bf16.msra.mxu0 0
      %1421 = vmatpush.bf16.msra.mxu0 0
      %1422 = vmatpush.bf16.msra.mxu0 0
      %1423 = vmatpush.bf16.msra.mxu0 0
      %1424 = vmatpush.bf16.msra.mxu0 %v1415
      %1425 = vmatmul.bf16.gmra.mxu0 %v1412
      %v1426 = vpop.f32.mrf.mxu0
      %v1427 = vadd.f32 0.0, %v1426
      %v1428 = vpop.f32.mrf.mxu0
      %1429 = vdwg.mxu0
      %v1430 = vadd.f32 %v1229, %v1294
      %v1431 = vadd.f32 %v1230, %v1313
      %v1432 = vadd.f32 %v1231, %v1332
      %v1433 = vadd.f32 %v1232, %v1351
      %v1434 = vadd.f32 %v1233, %v1370
      %v1435 = vadd.f32 %v1234, %v1389
      %v1436 = vadd.f32 %v1235, %v1408
      %v1437 = vadd.f32 %v1236, %v1427
      %v1438 = vrcp.pop %v1261
      %v1439 = vrcp.pop %v1262
      %v1440 = vrcp.pop %v1263
      %v1441 = vrcp.pop %v1264
      %v1442 = vrcp.pop %v1265
      %v1443 = vrcp.pop %v1266
      %v1444 = vrcp.pop %v1267
      %v1445 = vrcp.pop %v1268
      %v1446 = vmul.f32 %v1430, %v1438
      %v1447 = vmul.f32 %v1431, %v1439
      %v1448 = vmul.f32 %v1432, %v1440
      %v1449 = vmul.f32 %v1433, %v1441
      %v1450 = vmul.f32 %v1434, %v1442
      %v1451 = vmul.f32 %v1435, %v1443
      %v1452 = vmul.f32 %v1436, %v1444
      %v1453 = vmul.f32 %v1437, %v1445
      %1454 = vxpose.xlu0.b32.start [1/16] %v1446, 128
      %1455 = vxpose.xlu0.b32.cont [2/16] 0.0, 128
      %1456 = vxpose.xlu0.b32.cont [3/16] 0.0, 128
      %1457 = vxpose.xlu0.b32.cont [4/16] 0.0, 128
      %1458 = vxpose.xlu0.b32.cont [5/16] 0.0, 128
      %1459 = vxpose.xlu0.b32.cont [6/16] 0.0, 128
      %1460 = vxpose.xlu0.b32.cont [7/16] 0.0, 128
      %1461 = vxpose.xlu0.b32.cont [8/16] 0.0, 128
      %1462 = vxpose.xlu0.b32.cont [9/16] 0.0, 128
      %1463 = vxpose.xlu0.b32.cont [10/16] 0.0, 128
      %1464 = vxpose.xlu0.b32.cont [11/16] 0.0, 128
      %1465 = vxpose.xlu0.b32.cont [12/16] 0.0, 128
      %1466 = vxpose.xlu0.b32.cont [13/16] 0.0, 128
      %1467 = vxpose.xlu0.b32.cont [14/16] 0.0, 128
      %1468 = vxpose.xlu0.b32.cont [15/16] 0.0, 128
      %1469 = vxpose.xlu0.b32.end [16/16] 0.0, 128
      %v1470 = vpop.trf.xlu0
      %v1471 = vpop.trf.xlu0
      %v1472 = vpop.trf.xlu0
      %v1473 = vpop.trf.xlu0
      %v1474 = vpop.trf.xlu0
      %v1475 = vpop.trf.xlu0
      %v1476 = vpop.trf.xlu0
      %v1477 = vpop.trf.xlu0
      %v1478 = vpop.trf.xlu0
      %v1479 = vpop.trf.xlu0
      %v1480 = vpop.trf.xlu0
      %v1481 = vpop.trf.xlu0
      %v1482 = vpop.trf.xlu0
      %v1483 = vpop.trf.xlu0
      %v1484 = vpop.trf.xlu0
      %v1485 = vpop.trf.xlu0
      %1486 = vxpose.xlu0.b32.start [1/16] %v1447, 128
      %1487 = vxpose.xlu0.b32.cont [2/16] 0.0, 128
      %1488 = vxpose.xlu0.b32.cont [3/16] 0.0, 128
      %1489 = vxpose.xlu0.b32.cont [4/16] 0.0, 128
      %1490 = vxpose.xlu0.b32.cont [5/16] 0.0, 128
      %1491 = vxpose.xlu0.b32.cont [6/16] 0.0, 128
      %1492 = vxpose.xlu0.b32.cont [7/16] 0.0, 128
      %1493 = vxpose.xlu0.b32.cont [8/16] 0.0, 128
      %1494 = vxpose.xlu0.b32.cont [9/16] 0.0, 128
      %1495 = vxpose.xlu0.b32.cont [10/16] 0.0, 128
      %1496 = vxpose.xlu0.b32.cont [11/16] 0.0, 128
      %1497 = vxpose.xlu0.b32.cont [12/16] 0.0, 128
      %1498 = vxpose.xlu0.b32.cont [13/16] 0.0, 128
      %1499 = vxpose.xlu0.b32.cont [14/16] 0.0, 128
      %1500 = vxpose.xlu0.b32.cont [15/16] 0.0, 128
      %1501 = vxpose.xlu0.b32.end [16/16] 0.0, 128
      %v1502 = vpop.trf.xlu0
      %v1503 = vpop.trf.xlu0
      %v1504 = vpop.trf.xlu0
      %v1505 = vpop.trf.xlu0
      %v1506 = vpop.trf.xlu0
      %v1507 = vpop.trf.xlu0
      %v1508 = vpop.trf.xlu0
      %v1509 = vpop.trf.xlu0
      %v1510 = vpop.trf.xlu0
      %v1511 = vpop.trf.xlu0
      %v1512 = vpop.trf.xlu0
      %v1513 = vpop.trf.xlu0
      %v1514 = vpop.trf.xlu0
      %v1515 = vpop.trf.xlu0
      %v1516 = vpop.trf.xlu0
      %v1517 = vpop.trf.xlu0
      %1518 = vxpose.xlu0.b32.start [1/16] %v1448, 128
      %1519 = vxpose.xlu0.b32.cont [2/16] 0.0, 128
      %1520 = vxpose.xlu0.b32.cont [3/16] 0.0, 128
      %1521 = vxpose.xlu0.b32.cont [4/16] 0.0, 128
      %1522 = vxpose.xlu0.b32.cont [5/16] 0.0, 128
      %1523 = vxpose.xlu0.b32.cont [6/16] 0.0, 128
      %1524 = vxpose.xlu0.b32.cont [7/16] 0.0, 128
      %1525 = vxpose.xlu0.b32.cont [8/16] 0.0, 128
      %1526 = vxpose.xlu0.b32.cont [9/16] 0.0, 128
      %1527 = vxpose.xlu0.b32.cont [10/16] 0.0, 128
      %1528 = vxpose.xlu0.b32.cont [11/16] 0.0, 128
      %1529 = vxpose.xlu0.b32.cont [12/16] 0.0, 128
      %1530 = vxpose.xlu0.b32.cont [13/16] 0.0, 128
      %1531 = vxpose.xlu0.b32.cont [14/16] 0.0, 128
      %1532 = vxpose.xlu0.b32.cont [15/16] 0.0, 128
      %1533 = vxpose.xlu0.b32.end [16/16] 0.0, 128
      %v1534 = vpop.trf.xlu0
      %v1535 = vpop.trf.xlu0
      %v1536 = vpop.trf.xlu0
      %v1537 = vpop.trf.xlu0
      %v1538 = vpop.trf.xlu0
      %v1539 = vpop.trf.xlu0
      %v1540 = vpop.trf.xlu0
      %v1541 = vpop.trf.xlu0
      %v1542 = vpop.trf.xlu0
      %v1543 = vpop.trf.xlu0
      %v1544 = vpop.trf.xlu0
      %v1545 = vpop.trf.xlu0
      %v1546 = vpop.trf.xlu0
      %v1547 = vpop.trf.xlu0
      %v1548 = vpop.trf.xlu0
      %v1549 = vpop.trf.xlu0
      %1550 = vxpose.xlu0.b32.start [1/16] %v1449, 128
      %1551 = vxpose.xlu0.b32.cont [2/16] 0.0, 128
      %1552 = vxpose.xlu0.b32.cont [3/16] 0.0, 128
      %1553 = vxpose.xlu0.b32.cont [4/16] 0.0, 128
      %1554 = vxpose.xlu0.b32.cont [5/16] 0.0, 128
      %1555 = vxpose.xlu0.b32.cont [6/16] 0.0, 128
      %1556 = vxpose.xlu0.b32.cont [7/16] 0.0, 128
      %1557 = vxpose.xlu0.b32.cont [8/16] 0.0, 128
      %1558 = vxpose.xlu0.b32.cont [9/16] 0.0, 128
      %1559 = vxpose.xlu0.b32.cont [10/16] 0.0, 128
      %1560 = vxpose.xlu0.b32.cont [11/16] 0.0, 128
      %1561 = vxpose.xlu0.b32.cont [12/16] 0.0, 128
      %1562 = vxpose.xlu0.b32.cont [13/16] 0.0, 128
      %1563 = vxpose.xlu0.b32.cont [14/16] 0.0, 128
      %1564 = vxpose.xlu0.b32.cont [15/16] 0.0, 128
      %1565 = vxpose.xlu0.b32.end [16/16] 0.0, 128
      %v1566 = vpop.trf.xlu0
      %v1567 = vpop.trf.xlu0
      %v1568 = vpop.trf.xlu0
      %v1569 = vpop.trf.xlu0
      %v1570 = vpop.trf.xlu0
      %v1571 = vpop.trf.xlu0
      %v1572 = vpop.trf.xlu0
      %v1573 = vpop.trf.xlu0
      %v1574 = vpop.trf.xlu0
      %v1575 = vpop.trf.xlu0
      %v1576 = vpop.trf.xlu0
      %v1577 = vpop.trf.xlu0
      %v1578 = vpop.trf.xlu0
      %v1579 = vpop.trf.xlu0
      %v1580 = vpop.trf.xlu0
      %v1581 = vpop.trf.xlu0
      %1582 = vxpose.xlu0.b32.start [1/16] %v1450, 128
      %1583 = vxpose.xlu0.b32.cont [2/16] 0.0, 128
      %1584 = vxpose.xlu0.b32.cont [3/16] 0.0, 128
      %1585 = vxpose.xlu0.b32.cont [4/16] 0.0, 128
      %1586 = vxpose.xlu0.b32.cont [5/16] 0.0, 128
      %1587 = vxpose.xlu0.b32.cont [6/16] 0.0, 128
      %1588 = vxpose.xlu0.b32.cont [7/16] 0.0, 128
      %1589 = vxpose.xlu0.b32.cont [8/16] 0.0, 128
      %1590 = vxpose.xlu0.b32.cont [9/16] 0.0, 128
      %1591 = vxpose.xlu0.b32.cont [10/16] 0.0, 128
      %1592 = vxpose.xlu0.b32.cont [11/16] 0.0, 128
      %1593 = vxpose.xlu0.b32.cont [12/16] 0.0, 128
      %1594 = vxpose.xlu0.b32.cont [13/16] 0.0, 128
      %1595 = vxpose.xlu0.b32.cont [14/16] 0.0, 128
      %1596 = vxpose.xlu0.b32.cont [15/16] 0.0, 128
      %1597 = vxpose.xlu0.b32.end [16/16] 0.0, 128
      %v1598 = vpop.trf.xlu0
      %v1599 = vpop.trf.xlu0
      %v1600 = vpop.trf.xlu0
      %v1601 = vpop.trf.xlu0
      %v1602 = vpop.trf.xlu0
      %v1603 = vpop.trf.xlu0
      %v1604 = vpop.trf.xlu0
      %v1605 = vpop.trf.xlu0
      %v1606 = vpop.trf.xlu0
      %v1607 = vpop.trf.xlu0
      %v1608 = vpop.trf.xlu0
      %v1609 = vpop.trf.xlu0
      %v1610 = vpop.trf.xlu0
      %v1611 = vpop.trf.xlu0
      %v1612 = vpop.trf.xlu0
      %v1613 = vpop.trf.xlu0
      %1614 = vxpose.xlu0.b32.start [1/16] %v1451, 128
      %1615 = vxpose.xlu0.b32.cont [2/16] 0.0, 128
      %1616 = vxpose.xlu0.b32.cont [3/16] 0.0, 128
      %1617 = vxpose.xlu0.b32.cont [4/16] 0.0, 128
      %1618 = vxpose.xlu0.b32.cont [5/16] 0.0, 128
      %1619 = vxpose.xlu0.b32.cont [6/16] 0.0, 128
      %1620 = vxpose.xlu0.b32.cont [7/16] 0.0, 128
      %1621 = vxpose.xlu0.b32.cont [8/16] 0.0, 128
      %1622 = vxpose.xlu0.b32.cont [9/16] 0.0, 128
      %1623 = vxpose.xlu0.b32.cont [10/16] 0.0, 128
      %1624 = vxpose.xlu0.b32.cont [11/16] 0.0, 128
      %1625 = vxpose.xlu0.b32.cont [12/16] 0.0, 128
      %1626 = vxpose.xlu0.b32.cont [13/16] 0.0, 128
      %1627 = vxpose.xlu0.b32.cont [14/16] 0.0, 128
      %1628 = vxpose.xlu0.b32.cont [15/16] 0.0, 128
      %1629 = vxpose.xlu0.b32.end [16/16] 0.0, 128
      %v1630 = vpop.trf.xlu0
      %v1631 = vpop.trf.xlu0
      %v1632 = vpop.trf.xlu0
      %v1633 = vpop.trf.xlu0
      %v1634 = vpop.trf.xlu0
      %v1635 = vpop.trf.xlu0
      %v1636 = vpop.trf.xlu0
      %v1637 = vpop.trf.xlu0
      %v1638 = vpop.trf.xlu0
      %v1639 = vpop.trf.xlu0
      %v1640 = vpop.trf.xlu0
      %v1641 = vpop.trf.xlu0
      %v1642 = vpop.trf.xlu0
      %v1643 = vpop.trf.xlu0
      %v1644 = vpop.trf.xlu0
      %v1645 = vpop.trf.xlu0
      %1646 = vxpose.xlu0.b32.start [1/16] %v1452, 128
      %1647 = vxpose.xlu0.b32.cont [2/16] 0.0, 128
      %1648 = vxpose.xlu0.b32.cont [3/16] 0.0, 128
      %1649 = vxpose.xlu0.b32.cont [4/16] 0.0, 128
      %1650 = vxpose.xlu0.b32.cont [5/16] 0.0, 128
      %1651 = vxpose.xlu0.b32.cont [6/16] 0.0, 128
      %1652 = vxpose.xlu0.b32.cont [7/16] 0.0, 128
      %1653 = vxpose.xlu0.b32.cont [8/16] 0.0, 128
      %1654 = vxpose.xlu0.b32.cont [9/16] 0.0, 128
      %1655 = vxpose.xlu0.b32.cont [10/16] 0.0, 128
      %1656 = vxpose.xlu0.b32.cont [11/16] 0.0, 128
      %1657 = vxpose.xlu0.b32.cont [12/16] 0.0, 128
      %1658 = vxpose.xlu0.b32.cont [13/16] 0.0, 128
      %1659 = vxpose.xlu0.b32.cont [14/16] 0.0, 128
      %1660 = vxpose.xlu0.b32.cont [15/16] 0.0, 128
      %1661 = vxpose.xlu0.b32.end [16/16] 0.0, 128
      %v1662 = vpop.trf.xlu0
      %v1663 = vpop.trf.xlu0
      %v1664 = vpop.trf.xlu0
      %v1665 = vpop.trf.xlu0
      %v1666 = vpop.trf.xlu0
      %v1667 = vpop.trf.xlu0
      %v1668 = vpop.trf.xlu0
      %v1669 = vpop.trf.xlu0
      %v1670 = vpop.trf.xlu0
      %v1671 = vpop.trf.xlu0
      %v1672 = vpop.trf.xlu0
      %v1673 = vpop.trf.xlu0
      %v1674 = vpop.trf.xlu0
      %v1675 = vpop.trf.xlu0
      %v1676 = vpop.trf.xlu0
      %v1677 = vpop.trf.xlu0
      %1678 = vxpose.xlu0.b32.start [1/16] %v1453, 128
      %1679 = vxpose.xlu0.b32.cont [2/16] 0.0, 128
      %1680 = vxpose.xlu0.b32.cont [3/16] 0.0, 128
      %1681 = vxpose.xlu0.b32.cont [4/16] 0.0, 128
      %1682 = vxpose.xlu0.b32.cont [5/16] 0.0, 128
      %1683 = vxpose.xlu0.b32.cont [6/16] 0.0, 128
      %1684 = vxpose.xlu0.b32.cont [7/16] 0.0, 128
      %1685 = vxpose.xlu0.b32.cont [8/16] 0.0, 128
      %1686 = vxpose.xlu0.b32.cont [9/16] 0.0, 128
      %1687 = vxpose.xlu0.b32.cont [10/16] 0.0, 128
      %1688 = vxpose.xlu0.b32.cont [11/16] 0.0, 128
      %1689 = vxpose.xlu0.b32.cont [12/16] 0.0, 128
      %1690 = vxpose.xlu0.b32.cont [13/16] 0.0, 128
      %1691 = vxpose.xlu0.b32.cont [14/16] 0.0, 128
      %1692 = vxpose.xlu0.b32.cont [15/16] 0.0, 128
      %1693 = vxpose.xlu0.b32.end [16/16] 0.0, 128
      %v1694 = vpop.trf.xlu0
      %v1695 = vpop.trf.xlu0
      %v1696 = vpop.trf.xlu0
      %v1697 = vpop.trf.xlu0
      %v1698 = vpop.trf.xlu0
      %v1699 = vpop.trf.xlu0
      %v1700 = vpop.trf.xlu0
      %v1701 = vpop.trf.xlu0
      %v1702 = vpop.trf.xlu0
      %v1703 = vpop.trf.xlu0
      %v1704 = vpop.trf.xlu0
      %v1705 = vpop.trf.xlu0
      %v1706 = vpop.trf.xlu0
      %v1707 = vpop.trf.xlu0
      %v1708 = vpop.trf.xlu0
      %v1709 = vpop.trf.xlu0
      %1718 = vst [vmem:[#allocation1] ss:$2 sm:$0xff] %v1470
      %s1719 = scalar_lea.vmem [#allocation1], 1
      %1720 = vst [vmem:[%s1719] ss:$2 sm:$0xff] %v1502
      %s1721 = scalar_lea.vmem [#allocation1], 16
      %1722 = vst [vmem:[%s1721] ss:$2 sm:$0xff] %v1534
      %s1723 = scalar_lea.vmem [#allocation1], 17
      %1724 = vst [vmem:[%s1723] ss:$2 sm:$0xff] %v1566
      %s1725 = scalar_lea.vmem [#allocation1], 32
      %1726 = vst [vmem:[%s1725] ss:$2 sm:$0xff] %v1598
      %s1727 = scalar_lea.vmem [#allocation1], 33
      %1728 = vst [vmem:[%s1727] ss:$2 sm:$0xff] %v1630
      %s1729 = scalar_lea.vmem [#allocation1], 48
      %1730 = vst [vmem:[%s1729] ss:$2 sm:$0xff] %v1662
      %s1731 = scalar_lea.vmem [#allocation1], 49
      %1732 = vst [vmem:[%s1731] ss:$2 sm:$0xff] %v1694
      %v1733 = vld.sshfl [vmem:[#allocation1] sm:$0xff pattern:$0x75316420]
      %v1734 = vld.sshfl [vmem:[#allocation1 + $0x10] sm:$0xff pattern:$0x75316420]
      %v1735 = vld.sshfl [vmem:[#allocation1 + $0x20] sm:$0xff pattern:$0x75316420]
      %v1736 = vld.sshfl [vmem:[#allocation1 + $0x30] sm:$0xff pattern:$0x75316420]
      %v1741 = vpack.c.bf16 %v1734, %v1733
      %v1742 = vpack.c.bf16 %v1736, %v1735
      %1744 = vset.pattern.permute.xlu0 0
      %1745 = vperm.xlu0 %1744, %v258
      %v1746 = vpop.permute.xlu0 %1745
      %1749 = vset.pattern.permute.xlu0 0
      %1750 = vperm.xlu0 %1749, %v259
      %v1751 = vpop.permute.xlu0 %1750
      %1754 = vset.pattern.permute.xlu0 0
      %1755 = vperm.xlu0 %1754, %v260
      %v1756 = vpop.permute.xlu0 %1755
      %1759 = vset.pattern.permute.xlu0 0
      %1760 = vperm.xlu0 %1759, %v261
      %v1761 = vpop.permute.xlu0 %1760
      %v1767 = vunpack.c.l.b16 %v242
      %v1768 = vunpack.c.l.b16 %v243
      %v1769 = vunpack.c.l.b16 %v244
      %v1770 = vunpack.c.l.b16 %v245
      %v1771 = vpack.c.b16 %v1768, %v1767
      %v1772 = vpack.c.b16 %v1770, %v1769
      %v1774 = vsel %vm364, %v1771, 0
      %v1777 = vsel %vm364, %v1772, 0
      %1779 = vmatpush.bf16.msra.mxu0 0
      %1780 = vmatpush.bf16.msra.mxu0 0
      %1781 = vmatpush.bf16.msra.mxu0 0
      %1782 = vmatpush.bf16.msra.mxu0 0
      %1783 = vmatpush.bf16.msra.mxu0 0
      %1784 = vmatpush.bf16.msra.mxu0 0
      %1785 = vmatpush.bf16.msra.mxu0 %v1742
      %1786 = vmatpush.bf16.msra.mxu0 %v1741
      %1787 = vmatmul.bf16.gmra.mxu0 %v1774
      %v1788 = vpop.f32.mrf.mxu0
      %v1789 = vadd.f32 %v1746, %v1788
      %v1790 = vpop.f32.mrf.mxu0
      %v1791 = vadd.f32 %v1751, %v1790
      %1792 = vmatmul.bf16.gmra.mxu0 %v1777
      %v1793 = vpop.f32.mrf.mxu0
      %v1794 = vadd.f32 %v1756, %v1793
      %v1795 = vpop.f32.mrf.mxu0
      %v1796 = vadd.f32 %v1761, %v1795
      %1797 = vdwg.mxu0
      %1798 = vst.msk [vmem:[%s224] sm:$0xff] %vm1156, %v1789
      %1799 = vst.msk [vmem:[%s224 + $0x8] sm:$0xff] %vm1156, %v1791
      %1800 = vst.msk [vmem:[%s224 + $0x10] sm:$0xff] %vm1156, %v1794
      %1801 = vst.msk [vmem:[%s224 + $0x18] sm:$0xff] %vm1156, %v1796
      %p1802 = scmp.lt.s32.totalorder %s16, 1
      %s1803 = scalar_select %p1802, %s16, 1
      %s1804 = smul.addr %s1803, 4
      %s1805 = smul.addr %s1804, 8
      %s1806 = scalar_lea.vmem %s5, %s1805
      // Predicated region
      $region41: #{tpu_custom_call.1} parent=39 // pred_check
        %p1807 = pneg %p144
      $region42: #{tpu_custom_call.1} parent=39 // pred_check_branch
        %1809 = sbr.rel (%p1807) target = $region44
      $region43: #{tpu_custom_call.1} parent=39 // pred_region
        _
      $region44: #{tpu_custom_call.1} parent=39 // pred_fallthru
        _
    $region40: #{tpu_custom_call.1} parent=5 // pred_fallthru
      _
    %p1810 = scmp.le.s32.totalorder 2, %s11
    // Predicated region
    $region45: #{tpu_custom_call.1} parent=5 // pred_check
      %p1811 = pneg %p1810
    $region46: #{tpu_custom_call.1} parent=5 // pred_check_branch
      %1813 = sbr.rel (%p1811) target = $region48
    $region47: #{tpu_custom_call.1} parent=5 // pred_region
      %s1814 = ssub.s32 %s11, 2
      // Predicated region
      $region49: #{tpu_custom_call.1} parent=47 // pred_check
        %p1815 = pneg %p150
      $region50: #{tpu_custom_call.1} parent=47 // pred_check_branch
        %1817 = sbr.rel (%p1815) target = $region52
      $region51: #{tpu_custom_call.1} parent=47 // pred_region
        %p1818 = scmp.lt.s32.totalorder %s17, 1
        %s1819 = scalar_select %p1818, %s17, 1
        %s1820 = smul.addr %s1819, 4
        %s1821 = smul.addr %s1820, 8
        %s1822 = scalar_lea.vmem %s5, %s1821
      $region52: #{tpu_custom_call.1} parent=47 // pred_fallthru
        _
    $region48: #{tpu_custom_call.1} parent=5 // pred_fallthru
      _
  $region6: #{tpu_custom_call.1} parent=0 // loop_footer
    %s15 = sadd.s32 1, %s11
  $region7: #{tpu_custom_call.1} parent=0 // loop_footer_branch
    %10 = sbr.rel target = $region3
  $region8: #{tpu_custom_call.1} parent=0 // loop_exit
    _

</llo_original>
